<compile_context>
chip_gen: v7x
topology: tpu7x:2x2x1
jax: 0.10.0
libtpu: 0.0.40
codegen_flags: <defaults>
</compile_context>

<pallas_src>
import functools

import jax
import jax.numpy as jnp
from jax import lax
from jax.experimental import pallas as pl
from jax.experimental.pallas import tpu as pltpu

D_IN = 512                 # GRU input size  (fixed by the module)
H = 512                    # GRU hidden size (fixed by the module)
G3 = 3 * H                 # gate width
C1, C2, C3 = 256, 128, 2   # classifier widths (fixed by the module)


def _gru_head_kernel(x_ref,            # (Tc, Bp, D)   bf16 time-chunk (reverse order over grid)
                     wih_ref,          # (D, 3H)       bf16
                     whh_ref,          # (H, 3H)       bf16
                     bih_ref,          # (1, 3H)       f32
                     bhh_ref,          # (1, 3H)       f32
                     w1_ref, b1_ref,   # (512,256), (1,256)  f32
                     w2_ref, b2_ref,   # (256,128), (1,128)  f32
                     w3_ref, b3_ref,   # (128,2),   (1,2)    f32
                     out_ref,          # (Bp, 2)       f32
                     gi_ref,           # VMEM scratch (Tc, Bp, 3H) f32
                     h_ref,            # VMEM scratch (Bp, H)      f32 (persists over grid)
                     *, seq_len, tc, n_chunks):
    g = pl.program_id(0)
    bp = x_ref.shape[1]

    @pl.when(g == 0)
    def _():
        h_ref[...] = jnp.zeros_like(h_ref)

    # (1) Input projection for the whole chunk: ONE big MXU matmul, b_ih folded in.
    xc = x_ref[...].reshape(tc * bp, D_IN)                       # bf16
    gi = jnp.dot(xc, wih_ref[...], preferred_element_type=jnp.float32)
    gi_ref[...] = (gi + bih_ref[...]).reshape(tc, bp, G3)

    chunk = n_chunks - 1 - g          # chunks visited in reverse time order
    t0 = chunk * tc

    bhh = bhh_ref[...]                # (1, 3H) f32, hoisted out of the loop

    # (2) Serial recurrence. h is a loop carry (no per-step VMEM round trip).
    def step(i, h):
        lt = tc - 1 - i                                          # local t: Tc-1 .. 0
        gi_t = gi_ref[lt]                                        # (Bp, 3H) f32
        gh = jnp.dot(h.astype(jnp.bfloat16), whh_ref[...],
                     preferred_element_type=jnp.float32) + bhh
        r = jax.nn.sigmoid(gi_t[:, 0:H] + gh[:, 0:H])
        z = jax.nn.sigmoid(gi_t[:, H:2 * H] + gh[:, H:2 * H])
        n = jnp.tanh(gi_t[:, 2 * H:G3] + r * gh[:, 2 * H:G3])    # r*(W_hn h + b_hn)
        h_new = (1.0 - z) * n + z * h
        valid = (t0 + lt) < seq_len                              # skip zero-padded tail
        return jnp.where(valid, h_new, h)

    h_out = lax.fori_loop(0, tc, step, h_ref[...])
    h_ref[...] = h_out

    # (3) Classifier head once, after the last (earliest-time) chunk.
    #     Dropout == identity at inference.
    @pl.when(g == n_chunks - 1)
    def _():
        a1 = jnp.maximum(
            jnp.dot(h_out, w1_ref[...], preferred_element_type=jnp.float32)
            + b1_ref[...], 0.0)
        a2 = jnp.maximum(
            jnp.dot(a1, w2_ref[...], preferred_element_type=jnp.float32)
            + b2_ref[...], 0.0)
        out_ref[...] = (
            jnp.dot(a2, w3_ref[...], preferred_element_type=jnp.float32)
            + b3_ref[...])


@functools.partial(jax.jit, static_argnames=("tc",))
def wav2vec_gru_forward(x, params, *, tc=128):
    """x: (B, T, 512) float32, batch-first (PyTorch layout). Returns (B, 2)."""
    B, T, D = x.shape
    assert D == D_IN
    bp = max(8, -(-B // 8) * 8)          # pad batch to a full sublane group
    tc = min(tc, T)                      # time-chunk size
    n_chunks = pl.cdiv(T, tc)
    t_pad = n_chunks * tc

    # Time-major, zero-padded, bf16 for the MXU input projection.
    x_tm = jnp.transpose(x, (1, 0, 2))                           # (T, B, D)
    x_tm = jnp.pad(x_tm, ((0, t_pad - T), (0, bp - B), (0, 0)))
    x_tm = x_tm.astype(jnp.bfloat16)

    wih = params["wih"].astype(jnp.bfloat16)
    whh = params["whh"].astype(jnp.bfloat16)
    operands = (x_tm, wih, whh, params["bih"], params["bhh"],
                params["w1"], params["b1"], params["w2"], params["b2"],
                params["w3"], params["b3"])

    def full_spec(a):
        # Whole-array block, constant index map -> DMA'd once, stays resident.
        return pl.BlockSpec(a.shape, lambda g: (0,) * a.ndim)

    grid_spec = pltpu.PrefetchScalarGridSpec(
        num_scalar_prefetch=0,
        grid=(n_chunks,),
        in_specs=(
            [pl.BlockSpec((tc, bp, D_IN), lambda g: (n_chunks - 1 - g, 0, 0))]
            + [full_spec(a) for a in operands[1:]]),
        out_specs=pl.BlockSpec((bp, C3), lambda g: (0, 0)),
        scratch_shapes=[pltpu.VMEM((tc, bp, G3), jnp.float32),
                        pltpu.VMEM((bp, H), jnp.float32)],
    )

    flops = 2 * T * B * (D_IN + H) * G3 + 2 * B * (H * C1 + C1 * C2 + C2 * C3)
    transcendentals = 3 * T * B * H
    bytes_accessed = (t_pad * bp * D_IN * 2                       # x (bf16)
                      + (D_IN + H) * G3 * 2 + 2 * G3 * 4          # GRU weights/biases
                      + (H * C1 + C1 * C2 + C2 * C3 + C1 + C2 + C3) * 4
                      + bp * C3 * 4)

    kernel = functools.partial(_gru_head_kernel,
                               seq_len=T, tc=tc, n_chunks=n_chunks)
    out = pl.pallas_call(
        kernel,
        out_shape=jax.ShapeDtypeStruct((bp, C3), jnp.float32),
        grid_spec=grid_spec,
        compiler_params=pltpu.CompilerParams(
            dimension_semantics=("arbitrary",),       # h carries across chunks
            vmem_limit_bytes=32 * 1024 * 1024),
        cost_estimate=pl.CostEstimate(flops=flops,
                                      transcendentals=transcendentals,
                                      bytes_accessed=bytes_accessed),
    )(*operands)
    return out[:B]


def init_params(key):
    """Deterministic synthetic parameters with PyTorch-style uniform(-k, k) init."""
    ks = jax.random.split(key, 10)
    kg = 1.0 / jnp.sqrt(H)

    def u(k, shape, bound):
        return jax.random.uniform(k, shape, jnp.float32, -bound, bound)

    return {
        # GRU (reverse direction) weights, stored transposed: (in, 3H)
        "wih": u(ks[0], (D_IN, G3), kg),
        "whh": u(ks[1], (H, G3), kg),
        "bih": u(ks[2], (1, G3), kg),
        "bhh": u(ks[3], (1, G3), kg),
        # classifier, stored transposed: (in, out)
        "w1": u(ks[4], (H, C1), 1.0 / jnp.sqrt(H)),
        "b1": u(ks[5], (1, C1), 1.0 / jnp.sqrt(H)),
        "w2": u(ks[6], (C1, C2), 1.0 / jnp.sqrt(C1)),
        "b2": u(ks[7], (1, C2), 1.0 / jnp.sqrt(C1)),
        "w3": u(ks[8], (C2, C3), 1.0 / jnp.sqrt(C2)),
        "b3": u(ks[9], (1, C3), 1.0 / jnp.sqrt(C2)),
    }


def reference_forward(x, p):
    """Pure-JAX f32 reference of the same forward pass (backward GRU + classifier)."""
    B, T, _ = x.shape
    h = jnp.zeros((B, H), jnp.float32)
    for t in range(T - 1, -1, -1):
        xt = x[:, t, :]
        gi = xt @ p["wih"] + p["bih"]
        gh = h @ p["whh"] + p["bhh"]
        r = jax.nn.sigmoid(gi[:, :H] + gh[:, :H])
        z = jax.nn.sigmoid(gi[:, H:2 * H] + gh[:, H:2 * H])
        n = jnp.tanh(gi[:, 2 * H:] + r * gh[:, 2 * H:])
        h = (1.0 - z) * n + z * h
    a1 = jnp.maximum(h @ p["w1"] + p["b1"], 0.0)
    a2 = jnp.maximum(a1 @ p["w2"] + p["b2"], 0.0)
    return a2 @ p["w3"] + p["b3"]


if __name__ == "__main__":
    key = jax.random.PRNGKey(0)
    k_x, k_p = jax.random.split(key)

    B, T = 2, 8                      # small batch / sequence length
    x = jax.random.normal(k_x, (B, T, D_IN), jnp.float32)
    params = init_params(k_p)

    out = jax.block_until_ready(wav2vec_gru_forward(x, params))
    ref = reference_forward(x, params)
    assert out.shape == (B, C3)
    # bf16 MXU operands vs f32 reference -> slightly loosened tolerance.
    assert jnp.allclose(out, ref, atol=3e-2, rtol=3e-2), (out, ref)

    # TODO(synk): PyTorch training-mode Dropout RNG is not replicated; inference
    # (identity dropout) semantics are implemented.
    print("KERNEL_OK")
</pallas_src>

<mosaic_0001>
module attributes {stable_mosaic.version = 11 : i64} {
  func.func @_gru_head_kernel(%arg0: i32, %arg1: memref<8x8x512xbf16, #tpu.memory_space<vmem>>, %arg2: memref<512x1536xbf16, #tpu.memory_space<vmem>>, %arg3: memref<512x1536xbf16, #tpu.memory_space<vmem>>, %arg4: memref<1x1536xf32, #tpu.memory_space<vmem>>, %arg5: memref<1x1536xf32, #tpu.memory_space<vmem>>, %arg6: memref<512x256xf32, #tpu.memory_space<vmem>>, %arg7: memref<1x256xf32, #tpu.memory_space<vmem>>, %arg8: memref<256x128xf32, #tpu.memory_space<vmem>>, %arg9: memref<1x128xf32, #tpu.memory_space<vmem>>, %arg10: memref<128x2xf32, #tpu.memory_space<vmem>>, %arg11: memref<1x2xf32, #tpu.memory_space<vmem>>, %arg12: memref<8x2xf32, #tpu.memory_space<vmem>>, %arg13: memref<8x8x1536xf32, #tpu.memory_space<vmem>>, %arg14: memref<8x512xf32, #tpu.memory_space<vmem>>) attributes {dimension_semantics = [#tpu.dimension_semantics<arbitrary>], iteration_bounds = array<i64: 1>, scalar_prefetch = 0 : i64, scratch_operands = 2 : i64, tpu.core_type = #tpu.core_type<tc>, window_params = [{transform_indices = @transform_0, window_bounds = array<i64: 8, 8, 512>}, {pipeline_mode = #tpu.pipeline_mode<synchronous>, transform_indices = @transform_1, window_bounds = array<i64: 512, 1536>}, {pipeline_mode = #tpu.pipeline_mode<synchronous>, transform_indices = @transform_2, window_bounds = array<i64: 512, 1536>}, {pipeline_mode = #tpu.pipeline_mode<synchronous>, transform_indices = @transform_3, window_bounds = array<i64: 1, 1536>}, {pipeline_mode = #tpu.pipeline_mode<synchronous>, transform_indices = @transform_4, window_bounds = array<i64: 1, 1536>}, {pipeline_mode = #tpu.pipeline_mode<synchronous>, transform_indices = @transform_5, window_bounds = array<i64: 512, 256>}, {pipeline_mode = #tpu.pipeline_mode<synchronous>, transform_indices = @transform_6, window_bounds = array<i64: 1, 256>}, {pipeline_mode = #tpu.pipeline_mode<synchronous>, transform_indices = @transform_7, window_bounds = array<i64: 256, 128>}, {pipeline_mode = #tpu.pipeline_mode<synchronous>, transform_indices = @transform_8, window_bounds = array<i64: 1, 128>}, {pipeline_mode = #tpu.pipeline_mode<synchronous>, transform_indices = @transform_9, window_bounds = array<i64: 128, 2>}, {pipeline_mode = #tpu.pipeline_mode<synchronous>, transform_indices = @transform_10, window_bounds = array<i64: 1, 2>}, {pipeline_mode = #tpu.pipeline_mode<synchronous>, transform_indices = @transform_11, window_bounds = array<i64: 8, 2>}]} {
    %c0_i32 = arith.constant 0 : i32
    %0 = arith.cmpi eq, %arg0, %c0_i32 : i32
    %1 = arith.extui %0 : i1 to i32
    %c0_i32_0 = arith.constant 0 : i32
    %2 = arith.cmpi ne, %1, %c0_i32_0 : i32
    scf.if %2 {
      %cst_22 = arith.constant 0.000000e+00 : f32
      %22 = vector.broadcast %cst_22 : f32 to vector<8x512xf32>
      %c0_23 = arith.constant 0 : index
      %c0_24 = arith.constant 0 : index
      %23 = vector.load %arg14[%c0_23, %c0_24] : memref<8x512xf32, #tpu.memory_space<vmem>>, vector<8x512xf32>
      tpu.vector_store %arg14[%c0_23, %c0_24], %22 {strides = array<i32>} : memref<8x512xf32, #tpu.memory_space<vmem>>, vector<8x512xf32>,
    } else {
    }
    %c0 = arith.constant 0 : index
    %c0_1 = arith.constant 0 : index
    %c0_2 = arith.constant 0 : index
    %3 = vector.load %arg1[%c0, %c0_1, %c0_2] : memref<8x8x512xbf16, #tpu.memory_space<vmem>>, vector<8x8x512xbf16>
    %4 = vector.shape_cast %3 : vector<8x8x512xbf16> to vector<64x512xbf16>
    %c0_3 = arith.constant 0 : index
    %c0_4 = arith.constant 0 : index
    %5 = vector.load %arg2[%c0_3, %c0_4] : memref<512x1536xbf16, #tpu.memory_space<vmem>>, vector<512x1536xbf16>
    %cst = arith.constant dense<0.000000e+00> : vector<64x1536xf32>
    %6 = tpu.matmul %4, %5, %cst {dimension_numbers = #tpu.dot_dimension_numbers<[1], [0], [0], [1], [0, 0, 1, 1], [], []>} : vector<64x512xbf16>, vector<512x1536xbf16>, vector<64x1536xf32> -> vector<64x1536xf32>
    %c0_5 = arith.constant 0 : index
    %c0_6 = arith.constant 0 : index
    %7 = vector.load %arg4[%c0_5, %c0_6] : memref<1x1536xf32, #tpu.memory_space<vmem>>, vector<1x1536xf32>
    %8 = vector.broadcast %7 : vector<1x1536xf32> to vector<64x1536xf32>
    %9 = arith.addf %6, %8 : vector<64x1536xf32>
    %10 = vector.shape_cast %9 : vector<64x1536xf32> to vector<8x8x1536xf32>
    %c0_7 = arith.constant 0 : index
    %c0_8 = arith.constant 0 : index
    %c0_9 = arith.constant 0 : index
    %11 = vector.load %arg13[%c0_7, %c0_8, %c0_9] : memref<8x8x1536xf32, #tpu.memory_space<vmem>>, vector<8x8x1536xf32>
    tpu.vector_store %arg13[%c0_7, %c0_8, %c0_9], %10 {strides = array<i32>} : memref<8x8x1536xf32, #tpu.memory_space<vmem>>, vector<8x8x1536xf32>,
    %c0_i32_10 = arith.constant 0 : i32
    %12 = arith.subi %c0_i32_10, %arg0 : i32
    %c8_i32 = arith.constant 8 : i32
    %13 = arith.muli %12, %c8_i32 : i32
    %c0_11 = arith.constant 0 : index
    %c0_12 = arith.constant 0 : index
    %14 = vector.load %arg5[%c0_11, %c0_12] : memref<1x1536xf32, #tpu.memory_space<vmem>>, vector<1x1536xf32>
    %c0_13 = arith.constant 0 : index
    %c0_14 = arith.constant 0 : index
    %15 = vector.load %arg14[%c0_13, %c0_14] : memref<8x512xf32, #tpu.memory_space<vmem>>, vector<8x512xf32>
    %c0_i32_15 = arith.constant 0 : i32
    %c8_i32_16 = arith.constant 8 : i32
    %16 = arith.addi %c0_i32_15, %c8_i32_16 : i32
    %c1_i32 = arith.constant 1 : i32
    %17 = scf.for %arg15 = %c0_i32_15 to %16 step %c1_i32 iter_args(%arg16 = %15) -> (vector<8x512xf32>)  : i32 {
      %c7_i32 = arith.constant 7 : i32
      %22 = arith.subi %c7_i32, %arg15 : i32
      %23 = arith.index_cast %22 : i32 to index
      %c0_22 = arith.constant 0 : index
      %c0_23 = arith.constant 0 : index
      %24 = vector.load %arg13[%23, %c0_22, %c0_23] : memref<8x8x1536xf32, #tpu.memory_space<vmem>>, vector<1x8x1536xf32>
      %25 = vector.shape_cast %24 : vector<1x8x1536xf32> to vector<8x1536xf32>
      %26 = arith.truncf %arg16 : vector<8x512xf32> to vector<8x512xbf16>
      %c0_24 = arith.constant 0 : index
      %c0_25 = arith.constant 0 : index
      %27 = vector.load %arg3[%c0_24, %c0_25] : memref<512x1536xbf16, #tpu.memory_space<vmem>>, vector<512x1536xbf16>
      %cst_26 = arith.constant dense<0.000000e+00> : vector<8x1536xf32>
      %28 = tpu.matmul %26, %27, %cst_26 {dimension_numbers = #tpu.dot_dimension_numbers<[1], [0], [0], [1], [0, 0, 1, 1], [], []>} : vector<8x512xbf16>, vector<512x1536xbf16>, vector<8x1536xf32> -> vector<8x1536xf32>
      %29 = vector.broadcast %14 : vector<1x1536xf32> to vector<8x1536xf32>
      %30 = arith.addf %28, %29 : vector<8x1536xf32>
      %31 = vector.extract_strided_slice %25 {offsets = [0, 0], sizes = [8, 512], strides = [1, 1]} : vector<8x1536xf32> to vector<8x512xf32>
      %32 = vector.extract_strided_slice %30 {offsets = [0, 0], sizes = [8, 512], strides = [1, 1]} : vector<8x1536xf32> to vector<8x512xf32>
      %33 = arith.addf %31, %32 : vector<8x512xf32>
      %34 = arith.negf %33 : vector<8x512xf32>
      %35 = math.exp %34 : vector<8x512xf32>
      %cst_27 = arith.constant 1.000000e+00 : f32
      %36 = vector.broadcast %cst_27 : f32 to vector<8x512xf32>
      %37 = arith.addf %36, %35 : vector<8x512xf32>
      %38 = arith.divf %36, %37 : vector<8x512xf32>
      %39 = vector.extract_strided_slice %25 {offsets = [0, 512], sizes = [8, 512], strides = [1, 1]} : vector<8x1536xf32> to vector<8x512xf32>
      %40 = vector.extract_strided_slice %30 {offsets = [0, 512], sizes = [8, 512], strides = [1, 1]} : vector<8x1536xf32> to vector<8x512xf32>
      %41 = arith.addf %39, %40 : vector<8x512xf32>
      %42 = arith.negf %41 : vector<8x512xf32>
      %43 = math.exp %42 : vector<8x512xf32>
      %cst_28 = arith.constant 1.000000e+00 : f32
      %44 = vector.broadcast %cst_28 : f32 to vector<8x512xf32>
      %45 = arith.addf %44, %43 : vector<8x512xf32>
      %46 = arith.divf %44, %45 : vector<8x512xf32>
      %47 = vector.extract_strided_slice %25 {offsets = [0, 1024], sizes = [8, 512], strides = [1, 1]} : vector<8x1536xf32> to vector<8x512xf32>
      %48 = vector.extract_strided_slice %30 {offsets = [0, 1024], sizes = [8, 512], strides = [1, 1]} : vector<8x1536xf32> to vector<8x512xf32>
      %49 = arith.mulf %38, %48 : vector<8x512xf32>
      %50 = arith.addf %47, %49 : vector<8x512xf32>
      %51 = math.tanh %50 : vector<8x512xf32>
      %cst_29 = arith.constant 1.000000e+00 : f32
      %52 = vector.broadcast %cst_29 : f32 to vector<8x512xf32>
      %53 = arith.subf %52, %46 : vector<8x512xf32>
      %54 = arith.mulf %53, %51 : vector<8x512xf32>
      %55 = arith.mulf %46, %arg16 : vector<8x512xf32>
      %56 = arith.addf %54, %55 : vector<8x512xf32>
      %57 = arith.addi %13, %22 : i32
      %c8_i32_30 = arith.constant 8 : i32
      %58 = arith.cmpi slt, %57, %c8_i32_30 : i32
      %59 = arith.select %58, %56, %arg16 : vector<8x512xf32>
      scf.yield %59 : vector<8x512xf32>
    }
    %c8_i32_17 = arith.constant 8 : i32
    %c0_18 = arith.constant 0 : index
    %c0_19 = arith.constant 0 : index
    %18 = vector.load %arg14[%c0_18, %c0_19] : memref<8x512xf32, #tpu.memory_space<vmem>>, vector<8x512xf32>
    tpu.vector_store %arg14[%c0_18, %c0_19], %17 {strides = array<i32>} : memref<8x512xf32, #tpu.memory_space<vmem>>, vector<8x512xf32>,
    %c0_i32_20 = arith.constant 0 : i32
    %19 = arith.cmpi eq, %arg0, %c0_i32_20 : i32
    %20 = arith.extui %19 : i1 to i32
    %c0_i32_21 = arith.constant 0 : i32
    %21 = arith.cmpi ne, %20, %c0_i32_21 : i32
    scf.if %21 {
      %c0_22 = arith.constant 0 : index
      %c0_23 = arith.constant 0 : index
      %22 = vector.load %arg6[%c0_22, %c0_23] : memref<512x256xf32, #tpu.memory_space<vmem>>, vector<512x256xf32>
      %cst_24 = arith.constant dense<0.000000e+00> : vector<8x256xf32>
      %23 = tpu.matmul %17, %22, %cst_24 {dimension_numbers = #tpu.dot_dimension_numbers<[1], [0], [0], [1], [0, 0, 1, 1], [], []>} : vector<8x512xf32>, vector<512x256xf32>, vector<8x256xf32> -> vector<8x256xf32>
      %c0_25 = arith.constant 0 : index
      %c0_26 = arith.constant 0 : index
      %24 = vector.load %arg7[%c0_25, %c0_26] : memref<1x256xf32, #tpu.memory_space<vmem>>, vector<1x256xf32>
      %25 = vector.broadcast %24 : vector<1x256xf32> to vector<8x256xf32>
      %26 = arith.addf %23, %25 : vector<8x256xf32>
      %cst_27 = arith.constant 0.000000e+00 : f32
      %27 = vector.broadcast %cst_27 : f32 to vector<8x256xf32>
      %28 = arith.maximumf %26, %27 : vector<8x256xf32>
      %c0_28 = arith.constant 0 : index
      %c0_29 = arith.constant 0 : index
      %29 = vector.load %arg8[%c0_28, %c0_29] : memref<256x128xf32, #tpu.memory_space<vmem>>, vector<256x128xf32>
      %cst_30 = arith.constant dense<0.000000e+00> : vector<8x128xf32>
      %30 = tpu.matmul %28, %29, %cst_30 {dimension_numbers = #tpu.dot_dimension_numbers<[1], [0], [0], [1], [0, 0, 1, 1], [], []>} : vector<8x256xf32>, vector<256x128xf32>, vector<8x128xf32> -> vector<8x128xf32>
      %c0_31 = arith.constant 0 : index
      %c0_32 = arith.constant 0 : index
      %31 = vector.load %arg9[%c0_31, %c0_32] : memref<1x128xf32, #tpu.memory_space<vmem>>, vector<1x128xf32>
      %32 = vector.broadcast %31 : vector<1x128xf32> to vector<8x128xf32>
      %33 = arith.addf %30, %32 : vector<8x128xf32>
      %cst_33 = arith.constant 0.000000e+00 : f32
      %34 = vector.broadcast %cst_33 : f32 to vector<8x128xf32>
      %35 = arith.maximumf %33, %34 : vector<8x128xf32>
      %c0_34 = arith.constant 0 : index
      %c0_35 = arith.constant 0 : index
      %36 = vector.load %arg10[%c0_34, %c0_35] : memref<128x2xf32, #tpu.memory_space<vmem>>, vector<128x2xf32>
      %cst_36 = arith.constant dense<0.000000e+00> : vector<8x2xf32>
      %37 = tpu.matmul %35, %36, %cst_36 {dimension_numbers = #tpu.dot_dimension_numbers<[1], [0], [0], [1], [0, 0, 1, 1], [], []>} : vector<8x128xf32>, vector<128x2xf32>, vector<8x2xf32> -> vector<8x2xf32>
      %c0_37 = arith.constant 0 : index
      %c0_38 = arith.constant 0 : index
      %38 = vector.load %arg11[%c0_37, %c0_38] : memref<1x2xf32, #tpu.memory_space<vmem>>, vector<1x2xf32>
      %39 = vector.broadcast %38 : vector<1x2xf32> to vector<8x2xf32>
      %40 = arith.addf %37, %39 : vector<8x2xf32>
      %c0_39 = arith.constant 0 : index
      %c0_40 = arith.constant 0 : index
      %41 = vector.load %arg12[%c0_39, %c0_40] : memref<8x2xf32, #tpu.memory_space<vmem>>, vector<8x2xf32>
      tpu.vector_store %arg12[%c0_39, %c0_40], %40 {strides = array<i32>} : memref<8x2xf32, #tpu.memory_space<vmem>>, vector<8x2xf32>,
    } else {
    }
    return
  }
  func.func @transform_0(%arg0: i32) -> (i32, i32, i32) {
    %c0_i32 = arith.constant 0 : i32
    %0 = arith.subi %c0_i32, %arg0 : i32
    %c0_i32_0 = arith.constant 0 : i32
    %c0_i32_1 = arith.constant 0 : i32
    %c0_i32_2 = arith.constant 0 : i32
    return %0, %c0_i32_0, %c0_i32_1 : i32, i32, i32
  }
  func.func @transform_1(%arg0: i32) -> (i32, i32) {
    %c0_i32 = arith.constant 0 : i32
    %c0_i32_0 = arith.constant 0 : i32
    %c0_i32_1 = arith.constant 0 : i32
    return %c0_i32, %c0_i32_0 : i32, i32
  }
  func.func @transform_2(%arg0: i32) -> (i32, i32) {
    %c0_i32 = arith.constant 0 : i32
    %c0_i32_0 = arith.constant 0 : i32
    %c0_i32_1 = arith.constant 0 : i32
    return %c0_i32, %c0_i32_0 : i32, i32
  }
  func.func @transform_3(%arg0: i32) -> (i32, i32) {
    %c0_i32 = arith.constant 0 : i32
    %c0_i32_0 = arith.constant 0 : i32
    %c0_i32_1 = arith.constant 0 : i32
    return %c0_i32, %c0_i32_0 : i32, i32
  }
  func.func @transform_4(%arg0: i32) -> (i32, i32) {
    %c0_i32 = arith.constant 0 : i32
    %c0_i32_0 = arith.constant 0 : i32
    %c0_i32_1 = arith.constant 0 : i32
    return %c0_i32, %c0_i32_0 : i32, i32
  }
  func.func @transform_5(%arg0: i32) -> (i32, i32) {
    %c0_i32 = arith.constant 0 : i32
    %c0_i32_0 = arith.constant 0 : i32
    %c0_i32_1 = arith.constant 0 : i32
    return %c0_i32, %c0_i32_0 : i32, i32
  }
  func.func @transform_6(%arg0: i32) -> (i32, i32) {
    %c0_i32 = arith.constant 0 : i32
    %c0_i32_0 = arith.constant 0 : i32
    %c0_i32_1 = arith.constant 0 : i32
    return %c0_i32, %c0_i32_0 : i32, i32
  }
  func.func @transform_7(%arg0: i32) -> (i32, i32) {
    %c0_i32 = arith.constant 0 : i32
    %c0_i32_0 = arith.constant 0 : i32
    %c0_i32_1 = arith.constant 0 : i32
    return %c0_i32, %c0_i32_0 : i32, i32
  }
  func.func @transform_8(%arg0: i32) -> (i32, i32) {
    %c0_i32 = arith.constant 0 : i32
    %c0_i32_0 = arith.constant 0 : i32
    %c0_i32_1 = arith.constant 0 : i32
    return %c0_i32, %c0_i32_0 : i32, i32
  }
  func.func @transform_9(%arg0: i32) -> (i32, i32) {
    %c0_i32 = arith.constant 0 : i32
    %c0_i32_0 = arith.constant 0 : i32
    %c0_i32_1 = arith.constant 0 : i32
    return %c0_i32, %c0_i32_0 : i32, i32
  }
  func.func @transform_10(%arg0: i32) -> (i32, i32) {
    %c0_i32 = arith.constant 0 : i32
    %c0_i32_0 = arith.constant 0 : i32
    %c0_i32_1 = arith.constant 0 : i32
    return %c0_i32, %c0_i32_0 : i32, i32
  }
  func.func @transform_11(%arg0: i32) -> (i32, i32) {
    %c0_i32 = arith.constant 0 : i32
    %c0_i32_0 = arith.constant 0 : i32
    %c0_i32_1 = arith.constant 0 : i32
    return %c0_i32, %c0_i32_0 : i32, i32
  }
}

</mosaic_0001>

<llo_original>
// kernel: wav2vec_gru_forward.1
$region0: #{wav2vec_gru_forward.1}
  #allocation0 [shape = 'u32[]', space=smem, size = 0x4, offset = 0x4, fixed_abs, tag = 'smem constant byte address 0x4 - core index']
  #allocation1 [shape = 'u32[144,128]{1,0:T(1,128)}', space=vmem, size = 0x12000, scoped, tag = 'internal scratch']
  #allocation2 [shape = 'f32[8,8,1536]{2,1,0:T(8,128)}', space=vmem, size = 0x60000, scoped, tag = 'scratch operand']
  #allocation3 [shape = 'f32[8,512]{1,0:T(8,128)}', space=vmem, size = 0x4000, scoped, tag = 'scratch operand']
  %s0 = inlined_call_operand.vmem [shape: bf16[8,8,512], index: 0, kind: input, shape index: {}]
  %s1 = inlined_call_operand.vmem [shape: bf16[512,1536], index: 1, kind: input, shape index: {}]
  %s2 = inlined_call_operand.vmem [shape: bf16[512,1536], index: 2, kind: input, shape index: {}]
  %s3 = inlined_call_operand.vmem [shape: f32[1,1536], index: 3, kind: input, shape index: {}]
  %s4 = inlined_call_operand.vmem [shape: f32[1,1536], index: 4, kind: input, shape index: {}]
  %s5 = inlined_call_operand.vmem [shape: f32[512,256], index: 5, kind: input, shape index: {}]
  %s6 = inlined_call_operand.vmem [shape: f32[1,256], index: 6, kind: input, shape index: {}]
  %s7 = inlined_call_operand.vmem [shape: f32[256,128], index: 7, kind: input, shape index: {}]
  %s8 = inlined_call_operand.vmem [shape: f32[1,128], index: 8, kind: input, shape index: {}]
  %s9 = inlined_call_operand.vmem [shape: f32[128,2], index: 9, kind: input, shape index: {}]
  %s10 = inlined_call_operand.vmem [shape: f32[1,2], index: 10, kind: input, shape index: {}]
  %s11 = inlined_call_operand.vmem [shape: f32[8,2], index: 11, kind: output, shape index: {}]
  %s12 = sld [smem:[#allocation0]]
  $region69: #{wav2vec_gru_forward.1} parent=0
    _
  %s14 = ssub.s32 1, %s12
  %s15 = scalar_select 0, %s14, %s12
  // Predicated region
  $region2: #{wav2vec_gru_forward.1} parent=0 // pred_check
    _
  $region3: #{wav2vec_gru_forward.1} parent=0 // pred_check_branch
    %17 = sbr.rel (0) target = $region5
  $region4: #{wav2vec_gru_forward.1} parent=0 // pred_region
    %s18 = ssub.s32 0, 0
    %s19 = smul.u32 8, %s18
    %p20 = scmp.lt.s32.totalorder %s19, 7
    %s21 = scalar_select %p20, %s19, 7
    %s22 = smul.addr %s21, 4
    %s23 = smul.addr %s22, 4
    %s24 = scalar_lea.vmem %s0, %s23
    %s25 = ssub.s32 0, 0
    %s26 = smul.u32 8, %s25
  $region5: #{wav2vec_gru_forward.1} parent=0 // pred_fallthru
    _
  // Predicated region
  $region6: #{wav2vec_gru_forward.1} parent=0 // pred_check
    _
  $region7: #{wav2vec_gru_forward.1} parent=0 // pred_check_branch
    %28 = sbr.rel (0) target = $region9
  $region8: #{wav2vec_gru_forward.1} parent=0 // pred_region
    _
  $region9: #{wav2vec_gru_forward.1} parent=0 // pred_fallthru
    _
  // Predicated region
  $region10: #{wav2vec_gru_forward.1} parent=0 // pred_check
    _
  $region11: #{wav2vec_gru_forward.1} parent=0 // pred_check_branch
    %30 = sbr.rel (0) target = $region13
  $region12: #{wav2vec_gru_forward.1} parent=0 // pred_region
    _
  $region13: #{wav2vec_gru_forward.1} parent=0 // pred_fallthru
    _
  // Predicated region
  $region14: #{wav2vec_gru_forward.1} parent=0 // pred_check
    _
  $region15: #{wav2vec_gru_forward.1} parent=0 // pred_check_branch
    %32 = sbr.rel (0) target = $region17
  $region16: #{wav2vec_gru_forward.1} parent=0 // pred_region
    _
  $region17: #{wav2vec_gru_forward.1} parent=0 // pred_fallthru
    _
  // Predicated region
  $region18: #{wav2vec_gru_forward.1} parent=0 // pred_check
    _
  $region19: #{wav2vec_gru_forward.1} parent=0 // pred_check_branch
    %34 = sbr.rel (0) target = $region21
  $region20: #{wav2vec_gru_forward.1} parent=0 // pred_region
    _
  $region21: #{wav2vec_gru_forward.1} parent=0 // pred_fallthru
    _
  // Predicated region
  $region22: #{wav2vec_gru_forward.1} parent=0 // pred_check
    _
  $region23: #{wav2vec_gru_forward.1} parent=0 // pred_check_branch
    %36 = sbr.rel (0) target = $region25
  $region24: #{wav2vec_gru_forward.1} parent=0 // pred_region
    _
  $region25: #{wav2vec_gru_forward.1} parent=0 // pred_fallthru
    _
  // Predicated region
  $region26: #{wav2vec_gru_forward.1} parent=0 // pred_check
    _
  $region27: #{wav2vec_gru_forward.1} parent=0 // pred_check_branch
    %38 = sbr.rel (0) target = $region29
  $region28: #{wav2vec_gru_forward.1} parent=0 // pred_region
    _
  $region29: #{wav2vec_gru_forward.1} parent=0 // pred_fallthru
    _
  // Predicated region
  $region30: #{wav2vec_gru_forward.1} parent=0 // pred_check
    _
  $region31: #{wav2vec_gru_forward.1} parent=0 // pred_check_branch
    %40 = sbr.rel (0) target = $region33
  $region32: #{wav2vec_gru_forward.1} parent=0 // pred_region
    _
  $region33: #{wav2vec_gru_forward.1} parent=0 // pred_fallthru
    _
  // Predicated region
  $region34: #{wav2vec_gru_forward.1} parent=0 // pred_check
    _
  $region35: #{wav2vec_gru_forward.1} parent=0 // pred_check_branch
    %42 = sbr.rel (0) target = $region37
  $region36: #{wav2vec_gru_forward.1} parent=0 // pred_region
    _
  $region37: #{wav2vec_gru_forward.1} parent=0 // pred_fallthru
    _
  // Predicated region
  $region38: #{wav2vec_gru_forward.1} parent=0 // pred_check
    _
  $region39: #{wav2vec_gru_forward.1} parent=0 // pred_check_branch
    %44 = sbr.rel (0) target = $region41
  $region40: #{wav2vec_gru_forward.1} parent=0 // pred_region
    _
  $region41: #{wav2vec_gru_forward.1} parent=0 // pred_fallthru
    _
  // Predicated region
  $region42: #{wav2vec_gru_forward.1} parent=0 // pred_check
    _
  $region43: #{wav2vec_gru_forward.1} parent=0 // pred_check_branch
    %46 = sbr.rel (0) target = $region45
  $region44: #{wav2vec_gru_forward.1} parent=0 // pred_region
    _
  $region45: #{wav2vec_gru_forward.1} parent=0 // pred_fallthru
    _
  %s47 = ssub.s32 0, 0
  %s48 = smul.u32 8, %s47
  %p49 = scmp.lt.s32.totalorder %s48, 7
  %s50 = scalar_select %p49, %s48, 7
  %s51 = smul.addr %s50, 4
  %s52 = smul.addr %s51, 4
  %s53 = scalar_lea.vmem %s0, %s52
  %s54 = ssub.s32 0, 0
  %s55 = smul.u32 8, %s54
  %p56 = scmp.lt.s32.totalorder %s55, 7
  %s57 = scalar_select %p56, %s55, 7
  %s58 = smul.addr %s57, 4
  %s59 = smul.addr %s58, 4
  %s60 = scalar_lea.vmem %s0, %s59
  %s61 = ssub.s32 0, 0
  %s62 = smul.u32 8, %s61
  %p63 = scmp.eq.s32.totalorder 0, 0
  // Predicated region
  $region46: #{wav2vec_gru_forward.1} parent=0 // pred_check
    %p64 = pneg %p63
  $region47: #{wav2vec_gru_forward.1} parent=0 // pred_check_branch
    %66 = sbr.rel (%p64) target = $region49
  $region48: #{wav2vec_gru_forward.1} parent=0 // pred_region
    %67 = vst [vmem:[#allocation3] sm:$0xff] 0.0
    %68 = vst [vmem:[#allocation3 + $0x8] sm:$0xff] 0.0
    %69 = vst [vmem:[#allocation3 + $0x10] sm:$0xff] 0.0
    %70 = vst [vmem:[#allocation3 + $0x18] sm:$0xff] 0.0
  $region49: #{wav2vec_gru_forward.1} parent=0 // pred_fallthru
    _
  %v71 = vld [vmem:[%s60] sm:$0xff]
  %v72 = vld [vmem:[%s60 + $0x8] sm:$0xff]
  %v73 = vld [vmem:[%s60 + $0x10] sm:$0xff]
  %v74 = vld [vmem:[%s60 + $0x18] sm:$0xff]
  %v75 = vld [vmem:[%s60 + $0x20] sm:$0xff]
  %v76 = vld [vmem:[%s60 + $0x28] sm:$0xff]
  %v77 = vld [vmem:[%s60 + $0x30] sm:$0xff]
  %v78 = vld [vmem:[%s60 + $0x38] sm:$0xff]
  %v79 = vld [vmem:[%s60 + $0x40] sm:$0xff]
  %v80 = vld [vmem:[%s60 + $0x48] sm:$0xff]
  %v81 = vld [vmem:[%s60 + $0x50] sm:$0xff]
  %v82 = vld [vmem:[%s60 + $0x58] sm:$0xff]
  %v83 = vld [vmem:[%s60 + $0x60] sm:$0xff]
  %v84 = vld [vmem:[%s60 + $0x68] sm:$0xff]
  %v85 = vld [vmem:[%s60 + $0x70] sm:$0xff]
  %v86 = vld [vmem:[%s60 + $0x78] sm:$0xff]
  %v87 = vld [vmem:[%s1] sm:$0xff]
  %v88 = vld [vmem:[%s1 + $0x8] sm:$0xff]
  %v89 = vld [vmem:[%s1 + $0x10] sm:$0xff]
  %v90 = vld [vmem:[%s1 + $0x18] sm:$0xff]
  %v91 = vld [vmem:[%s1 + $0x20] sm:$0xff]
  %v92 = vld [vmem:[%s1 + $0x28] sm:$0xff]
  %v93 = vld [vmem:[%s1 + $0x30] sm:$0xff]
  %v94 = vld [vmem:[%s1 + $0x38] sm:$0xff]
  %v95 = vld [vmem:[%s1 + $0x40] sm:$0xff]
  %v96 = vld [vmem:[%s1 + $0x48] sm:$0xff]
  %v97 = vld [vmem:[%s1 + $0x50] sm:$0xff]
  %v98 = vld [vmem:[%s1 + $0x58] sm:$0xff]
  %v99 = vld [vmem:[%s1 + $0x60] sm:$0xff]
  %v100 = vld [vmem:[%s1 + $0x68] sm:$0xff]
  %v101 = vld [vmem:[%s1 + $0x70] sm:$0xff]
  %v102 = vld [vmem:[%s1 + $0x78] sm:$0xff]
  %v103 = vld [vmem:[%s1 + $0x80] sm:$0xff]
  %v104 = vld [vmem:[%s1 + $0x88] sm:$0xff]
  %v105 = vld [vmem:[%s1 + $0x90] sm:$0xff]
  %v106 = vld [vmem:[%s1 + $0x98] sm:$0xff]
  %v107 = vld [vmem:[%s1 + $0xa0] sm:$0xff]
  %v108 = vld [vmem:[%s1 + $0xa8] sm:$0xff]
  %v109 = vld [vmem:[%s1 + $0xb0] sm:$0xff]
  %v110 = vld [vmem:[%s1 + $0xb8] sm:$0xff]
  %v111 = vld [vmem:[%s1 + $0xc0] sm:$0xff]
  %v112 = vld [vmem:[%s1 + $0xc8] sm:$0xff]
  %v113 = vld [vmem:[%s1 + $0xd0] sm:$0xff]
  %v114 = vld [vmem:[%s1 + $0xd8] sm:$0xff]
  %v115 = vld [vmem:[%s1 + $0xe0] sm:$0xff]
  %v116 = vld [vmem:[%s1 + $0xe8] sm:$0xff]
  %v117 = vld [vmem:[%s1 + $0xf0] sm:$0xff]
  %v118 = vld [vmem:[%s1 + $0xf8] sm:$0xff]
  %v119 = vld [vmem:[%s1 + $0x100] sm:$0xff]
  %v120 = vld [vmem:[%s1 + $0x108] sm:$0xff]
  %v121 = vld [vmem:[%s1 + $0x110] sm:$0xff]
  %v122 = vld [vmem:[%s1 + $0x118] sm:$0xff]
  %v123 = vld [vmem:[%s1 + $0x120] sm:$0xff]
  %v124 = vld [vmem:[%s1 + $0x128] sm:$0xff]
  %v125 = vld [vmem:[%s1 + $0x130] sm:$0xff]
  %v126 = vld [vmem:[%s1 + $0x138] sm:$0xff]
  %v127 = vld [vmem:[%s1 + $0x140] sm:$0xff]
  %v128 = vld [vmem:[%s1 + $0x148] sm:$0xff]
  %v129 = vld [vmem:[%s1 + $0x150] sm:$0xff]
  %v130 = vld [vmem:[%s1 + $0x158] sm:$0xff]
  %v131 = vld [vmem:[%s1 + $0x160] sm:$0xff]
  %v132 = vld [vmem:[%s1 + $0x168] sm:$0xff]
  %v133 = vld [vmem:[%s1 + $0x170] sm:$0xff]
  %v134 = vld [vmem:[%s1 + $0x178] sm:$0xff]
  %v135 = vld [vmem:[%s1 + $0x180] sm:$0xff]
  %v136 = vld [vmem:[%s1 + $0x188] sm:$0xff]
  %v137 = vld [vmem:[%s1 + $0x190] sm:$0xff]
  %v138 = vld [vmem:[%s1 + $0x198] sm:$0xff]
  %v139 = vld [vmem:[%s1 + $0x1a0] sm:$0xff]
  %v140 = vld [vmem:[%s1 + $0x1a8] sm:$0xff]
  %v141 = vld [vmem:[%s1 + $0x1b0] sm:$0xff]
  %v142 = vld [vmem:[%s1 + $0x1b8] sm:$0xff]
  %v143 = vld [vmem:[%s1 + $0x1c0] sm:$0xff]
  %v144 = vld [vmem:[%s1 + $0x1c8] sm:$0xff]
  %v145 = vld [vmem:[%s1 + $0x1d0] sm:$0xff]
  %v146 = vld [vmem:[%s1 + $0x1d8] sm:$0xff]
  %v147 = vld [vmem:[%s1 + $0x1e0] sm:$0xff]
  %v148 = vld [vmem:[%s1 + $0x1e8] sm:$0xff]
  %v149 = vld [vmem:[%s1 + $0x1f0] sm:$0xff]
  %v150 = vld [vmem:[%s1 + $0x1f8] sm:$0xff]
  %v151 = vld [vmem:[%s1 + $0x200] sm:$0xff]
  %v152 = vld [vmem:[%s1 + $0x208] sm:$0xff]
  %v153 = vld [vmem:[%s1 + $0x210] sm:$0xff]
  %v154 = vld [vmem:[%s1 + $0x218] sm:$0xff]
  %v155 = vld [vmem:[%s1 + $0x220] sm:$0xff]
  %v156 = vld [vmem:[%s1 + $0x228] sm:$0xff]
  %v157 = vld [vmem:[%s1 + $0x230] sm:$0xff]
  %v158 = vld [vmem:[%s1 + $0x238] sm:$0xff]
  %v159 = vld [vmem:[%s1 + $0x240] sm:$0xff]
  %v160 = vld [vmem:[%s1 + $0x248] sm:$0xff]
  %v161 = vld [vmem:[%s1 + $0x250] sm:$0xff]
  %v162 = vld [vmem:[%s1 + $0x258] sm:$0xff]
  %v163 = vld [vmem:[%s1 + $0x260] sm:$0xff]
  %v164 = vld [vmem:[%s1 + $0x268] sm:$0xff]
  %v165 = vld [vmem:[%s1 + $0x270] sm:$0xff]
  %v166 = vld [vmem:[%s1 + $0x278] sm:$0xff]
  %v167 = vld [vmem:[%s1 + $0x280] sm:$0xff]
  %v168 = vld [vmem:[%s1 + $0x288] sm:$0xff]
  %v169 = vld [vmem:[%s1 + $0x290] sm:$0xff]
  %v170 = vld [vmem:[%s1 + $0x298] sm:$0xff]
  %v171 = vld [vmem:[%s1 + $0x2a0] sm:$0xff]
  %v172 = vld [vmem:[%s1 + $0x2a8] sm:$0xff]
  %v173 = vld [vmem:[%s1 + $0x2b0] sm:$0xff]
  %v174 = vld [vmem:[%s1 + $0x2b8] sm:$0xff]
  %v175 = vld [vmem:[%s1 + $0x2c0] sm:$0xff]
  %v176 = vld [vmem:[%s1 + $0x2c8] sm:$0xff]
  %v177 = vld [vmem:[%s1 + $0x2d0] sm:$0xff]
  %v178 = vld [vmem:[%s1 + $0x2d8] sm:$0xff]
  %v179 = vld [vmem:[%s1 + $0x2e0] sm:$0xff]
  %v180 = vld [vmem:[%s1 + $0x2e8] sm:$0xff]
  %v181 = vld [vmem:[%s1 + $0x2f0] sm:$0xff]
  %v182 = vld [vmem:[%s1 + $0x2f8] sm:$0xff]
  %v183 = vld [vmem:[%s1 + $0x300] sm:$0xff]
  %v184 = vld [vmem:[%s1 + $0x308] sm:$0xff]
  %v185 = vld [vmem:[%s1 + $0x310] sm:$0xff]
  %v186 = vld [vmem:[%s1 + $0x318] sm:$0xff]
  %v187 = vld [vmem:[%s1 + $0x320] sm:$0xff]
  %v188 = vld [vmem:[%s1 + $0x328] sm:$0xff]
  %v189 = vld [vmem:[%s1 + $0x330] sm:$0xff]
  %v190 = vld [vmem:[%s1 + $0x338] sm:$0xff]
  %v191 = vld [vmem:[%s1 + $0x340] sm:$0xff]
  %v192 = vld [vmem:[%s1 + $0x348] sm:$0xff]
  %v193 = vld [vmem:[%s1 + $0x350] sm:$0xff]
  %v194 = vld [vmem:[%s1 + $0x358] sm:$0xff]
  %v195 = vld [vmem:[%s1 + $0x360] sm:$0xff]
  %v196 = vld [vmem:[%s1 + $0x368] sm:$0xff]
  %v197 = vld [vmem:[%s1 + $0x370] sm:$0xff]
  %v198 = vld [vmem:[%s1 + $0x378] sm:$0xff]
  %v199 = vld [vmem:[%s1 + $0x380] sm:$0xff]
  %v200 = vld [vmem:[%s1 + $0x388] sm:$0xff]
  %v201 = vld [vmem:[%s1 + $0x390] sm:$0xff]
  %v202 = vld [vmem:[%s1 + $0x398] sm:$0xff]
  %v203 = vld [vmem:[%s1 + $0x3a0] sm:$0xff]
  %v204 = vld [vmem:[%s1 + $0x3a8] sm:$0xff]
  %v205 = vld [vmem:[%s1 + $0x3b0] sm:$0xff]
  %v206 = vld [vmem:[%s1 + $0x3b8] sm:$0xff]
  %v207 = vld [vmem:[%s1 + $0x3c0] sm:$0xff]
  %v208 = vld [vmem:[%s1 + $0x3c8] sm:$0xff]
  %v209 = vld [vmem:[%s1 + $0x3d0] sm:$0xff]
  %v210 = vld [vmem:[%s1 + $0x3d8] sm:$0xff]
  %v211 = vld [vmem:[%s1 + $0x3e0] sm:$0xff]
  %v212 = vld [vmem:[%s1 + $0x3e8] sm:$0xff]
  %v213 = vld [vmem:[%s1 + $0x3f0] sm:$0xff]
  %v214 = vld [vmem:[%s1 + $0x3f8] sm:$0xff]
  %v215 = vld [vmem:[%s1 + $0x400] sm:$0xff]
  %v216 = vld [vmem:[%s1 + $0x408] sm:$0xff]
  %v217 = vld [vmem:[%s1 + $0x410] sm:$0xff]
  %v218 = vld [vmem:[%s1 + $0x418] sm:$0xff]
  %v219 = vld [vmem:[%s1 + $0x420] sm:$0xff]
  %v220 = vld [vmem:[%s1 + $0x428] sm:$0xff]
  %v221 = vld [vmem:[%s1 + $0x430] sm:$0xff]
  %v222 = vld [vmem:[%s1 + $0x438] sm:$0xff]
  %v223 = vld [vmem:[%s1 + $0x440] sm:$0xff]
  %v224 = vld [vmem:[%s1 + $0x448] sm:$0xff]
  %v225 = vld [vmem:[%s1 + $0x450] sm:$0xff]
  %v226 = vld [vmem:[%s1 + $0x458] sm:$0xff]
  %v227 = vld [vmem:[%s1 + $0x460] sm:$0xff]
  %v228 = vld [vmem:[%s1 + $0x468] sm:$0xff]
  %v229 = vld [vmem:[%s1 + $0x470] sm:$0xff]
  %v230 = vld [vmem:[%s1 + $0x478] sm:$0xff]
  %v231 = vld [vmem:[%s1 + $0x480] sm:$0xff]
  %v232 = vld [vmem:[%s1 + $0x488] sm:$0xff]
  %v233 = vld [vmem:[%s1 + $0x490] sm:$0xff]
  %v234 = vld [vmem:[%s1 + $0x498] sm:$0xff]
  %v235 = vld [vmem:[%s1 + $0x4a0] sm:$0xff]
  %v236 = vld [vmem:[%s1 + $0x4a8] sm:$0xff]
  %v237 = vld [vmem:[%s1 + $0x4b0] sm:$0xff]
  %v238 = vld [vmem:[%s1 + $0x4b8] sm:$0xff]
  %v239 = vld [vmem:[%s1 + $0x4c0] sm:$0xff]
  %v240 = vld [vmem:[%s1 + $0x4c8] sm:$0xff]
  %v241 = vld [vmem:[%s1 + $0x4d0] sm:$0xff]
  %v242 = vld [vmem:[%s1 + $0x4d8] sm:$0xff]
  %v243 = vld [vmem:[%s1 + $0x4e0] sm:$0xff]
  %v244 = vld [vmem:[%s1 + $0x4e8] sm:$0xff]
  %v245 = vld [vmem:[%s1 + $0x4f0] sm:$0xff]
  %v246 = vld [vmem:[%s1 + $0x4f8] sm:$0xff]
  %v247 = vld [vmem:[%s1 + $0x500] sm:$0xff]
  %v248 = vld [vmem:[%s1 + $0x508] sm:$0xff]
  %v249 = vld [vmem:[%s1 + $0x510] sm:$0xff]
  %v250 = vld [vmem:[%s1 + $0x518] sm:$0xff]
  %v251 = vld [vmem:[%s1 + $0x520] sm:$0xff]
  %v252 = vld [vmem:[%s1 + $0x528] sm:$0xff]
  %v253 = vld [vmem:[%s1 + $0x530] sm:$0xff]
  %v254 = vld [vmem:[%s1 + $0x538] sm:$0xff]
  %v255 = vld [vmem:[%s1 + $0x540] sm:$0xff]
  %v256 = vld [vmem:[%s1 + $0x548] sm:$0xff]
  %v257 = vld [vmem:[%s1 + $0x550] sm:$0xff]
  %v258 = vld [vmem:[%s1 + $0x558] sm:$0xff]
  %v259 = vld [vmem:[%s1 + $0x560] sm:$0xff]
  %v260 = vld [vmem:[%s1 + $0x568] sm:$0xff]
  %v261 = vld [vmem:[%s1 + $0x570] sm:$0xff]
  %v262 = vld [vmem:[%s1 + $0x578] sm:$0xff]
  %v263 = vld [vmem:[%s1 + $0x580] sm:$0xff]
  %v264 = vld [vmem:[%s1 + $0x588] sm:$0xff]
  %v265 = vld [vmem:[%s1 + $0x590] sm:$0xff]
  %v266 = vld [vmem:[%s1 + $0x598] sm:$0xff]
  %v267 = vld [vmem:[%s1 + $0x5a0] sm:$0xff]
  %v268 = vld [vmem:[%s1 + $0x5a8] sm:$0xff]
  %v269 = vld [vmem:[%s1 + $0x5b0] sm:$0xff]
  %v270 = vld [vmem:[%s1 + $0x5b8] sm:$0xff]
  %v271 = vld [vmem:[%s1 + $0x5c0] sm:$0xff]
  %v272 = vld [vmem:[%s1 + $0x5c8] sm:$0xff]
  %v273 = vld [vmem:[%s1 + $0x5d0] sm:$0xff]
  %v274 = vld [vmem:[%s1 + $0x5d8] sm:$0xff]
  %v275 = vld [vmem:[%s1 + $0x5e0] sm:$0xff]
  %v276 = vld [vmem:[%s1 + $0x5e8] sm:$0xff]
  %v277 = vld [vmem:[%s1 + $0x5f0] sm:$0xff]
  %v278 = vld [vmem:[%s1 + $0x5f8] sm:$0xff]
  %v279 = vld [vmem:[%s1 + $0x600] sm:$0xff]
  %v280 = vld [vmem:[%s1 + $0x608] sm:$0xff]
  %v281 = vld [vmem:[%s1 + $0x610] sm:$0xff]
  %v282 = vld [vmem:[%s1 + $0x618] sm:$0xff]
  %v283 = vld [vmem:[%s1 + $0x620] sm:$0xff]
  %v284 = vld [vmem:[%s1 + $0x628] sm:$0xff]
  %v285 = vld [vmem:[%s1 + $0x630] sm:$0xff]
  %v286 = vld [vmem:[%s1 + $0x638] sm:$0xff]
  %v287 = vld [vmem:[%s1 + $0x640] sm:$0xff]
  %v288 = vld [vmem:[%s1 + $0x648] sm:$0xff]
  %v289 = vld [vmem:[%s1 + $0x650] sm:$0xff]
  %v290 = vld [vmem:[%s1 + $0x658] sm:$0xff]
  %v291 = vld [vmem:[%s1 + $0x660] sm:$0xff]
  %v292 = vld [vmem:[%s1 + $0x668] sm:$0xff]
  %v293 = vld [vmem:[%s1 + $0x670] sm:$0xff]
  %v294 = vld [vmem:[%s1 + $0x678] sm:$0xff]
  %v295 = vld [vmem:[%s1 + $0x680] sm:$0xff]
  %v296 = vld [vmem:[%s1 + $0x688] sm:$0xff]
  %v297 = vld [vmem:[%s1 + $0x690] sm:$0xff]
  %v298 = vld [vmem:[%s1 + $0x698] sm:$0xff]
  %v299 = vld [vmem:[%s1 + $0x6a0] sm:$0xff]
  %v300 = vld [vmem:[%s1 + $0x6a8] sm:$0xff]
  %v301 = vld [vmem:[%s1 + $0x6b0] sm:$0xff]
  %v302 = vld [vmem:[%s1 + $0x6b8] sm:$0xff]
  %v303 = vld [vmem:[%s1 + $0x6c0] sm:$0xff]
  %v304 = vld [vmem:[%s1 + $0x6c8] sm:$0xff]
  %v305 = vld [vmem:[%s1 + $0x6d0] sm:$0xff]
  %v306 = vld [vmem:[%s1 + $0x6d8] sm:$0xff]
  %v307 = vld [vmem:[%s1 + $0x6e0] sm:$0xff]
  %v308 = vld [vmem:[%s1 + $0x6e8] sm:$0xff]
  %v309 = vld [vmem:[%s1 + $0x6f0] sm:$0xff]
  %v310 = vld [vmem:[%s1 + $0x6f8] sm:$0xff]
  %v311 = vld [vmem:[%s1 + $0x700] sm:$0xff]
  %v312 = vld [vmem:[%s1 + $0x708] sm:$0xff]
  %v313 = vld [vmem:[%s1 + $0x710] sm:$0xff]
  %v314 = vld [vmem:[%s1 + $0x718] sm:$0xff]
  %v315 = vld [vmem:[%s1 + $0x720] sm:$0xff]
  %v316 = vld [vmem:[%s1 + $0x728] sm:$0xff]
  %v317 = vld [vmem:[%s1 + $0x730] sm:$0xff]
  %v318 = vld [vmem:[%s1 + $0x738] sm:$0xff]
  %v319 = vld [vmem:[%s1 + $0x740] sm:$0xff]
  %v320 = vld [vmem:[%s1 + $0x748] sm:$0xff]
  %v321 = vld [vmem:[%s1 + $0x750] sm:$0xff]
  %v322 = vld [vmem:[%s1 + $0x758] sm:$0xff]
  %v323 = vld [vmem:[%s1 + $0x760] sm:$0xff]
  %v324 = vld [vmem:[%s1 + $0x768] sm:$0xff]
  %v325 = vld [vmem:[%s1 + $0x770] sm:$0xff]
  %v326 = vld [vmem:[%s1 + $0x778] sm:$0xff]
  %v327 = vld [vmem:[%s1 + $0x780] sm:$0xff]
  %v328 = vld [vmem:[%s1 + $0x788] sm:$0xff]
  %v329 = vld [vmem:[%s1 + $0x790] sm:$0xff]
  %v330 = vld [vmem:[%s1 + $0x798] sm:$0xff]
  %v331 = vld [vmem:[%s1 + $0x7a0] sm:$0xff]
  %v332 = vld [vmem:[%s1 + $0x7a8] sm:$0xff]
  %v333 = vld [vmem:[%s1 + $0x7b0] sm:$0xff]
  %v334 = vld [vmem:[%s1 + $0x7b8] sm:$0xff]
  %v335 = vld [vmem:[%s1 + $0x7c0] sm:$0xff]
  %v336 = vld [vmem:[%s1 + $0x7c8] sm:$0xff]
  %v337 = vld [vmem:[%s1 + $0x7d0] sm:$0xff]
  %v338 = vld [vmem:[%s1 + $0x7d8] sm:$0xff]
  %v339 = vld [vmem:[%s1 + $0x7e0] sm:$0xff]
  %v340 = vld [vmem:[%s1 + $0x7e8] sm:$0xff]
  %v341 = vld [vmem:[%s1 + $0x7f0] sm:$0xff]
  %v342 = vld [vmem:[%s1 + $0x7f8] sm:$0xff]
  %v343 = vld [vmem:[%s1 + $0x800] sm:$0xff]
  %v344 = vld [vmem:[%s1 + $0x808] sm:$0xff]
  %v345 = vld [vmem:[%s1 + $0x810] sm:$0xff]
  %v346 = vld [vmem:[%s1 + $0x818] sm:$0xff]
  %v347 = vld [vmem:[%s1 + $0x820] sm:$0xff]
  %v348 = vld [vmem:[%s1 + $0x828] sm:$0xff]
  %v349 = vld [vmem:[%s1 + $0x830] sm:$0xff]
  %v350 = vld [vmem:[%s1 + $0x838] sm:$0xff]
  %v351 = vld [vmem:[%s1 + $0x840] sm:$0xff]
  %v352 = vld [vmem:[%s1 + $0x848] sm:$0xff]
  %v353 = vld [vmem:[%s1 + $0x850] sm:$0xff]
  %v354 = vld [vmem:[%s1 + $0x858] sm:$0xff]
  %v355 = vld [vmem:[%s1 + $0x860] sm:$0xff]
  %v356 = vld [vmem:[%s1 + $0x868] sm:$0xff]
  %v357 = vld [vmem:[%s1 + $0x870] sm:$0xff]
  %v358 = vld [vmem:[%s1 + $0x878] sm:$0xff]
  %v359 = vld [vmem:[%s1 + $0x880] sm:$0xff]
  %v360 = vld [vmem:[%s1 + $0x888] sm:$0xff]
  %v361 = vld [vmem:[%s1 + $0x890] sm:$0xff]
  %v362 = vld [vmem:[%s1 + $0x898] sm:$0xff]
  %v363 = vld [vmem:[%s1 + $0x8a0] sm:$0xff]
  %v364 = vld [vmem:[%s1 + $0x8a8] sm:$0xff]
  %v365 = vld [vmem:[%s1 + $0x8b0] sm:$0xff]
  %v366 = vld [vmem:[%s1 + $0x8b8] sm:$0xff]
  %v367 = vld [vmem:[%s1 + $0x8c0] sm:$0xff]
  %v368 = vld [vmem:[%s1 + $0x8c8] sm:$0xff]
  %v369 = vld [vmem:[%s1 + $0x8d0] sm:$0xff]
  %v370 = vld [vmem:[%s1 + $0x8d8] sm:$0xff]
  %v371 = vld [vmem:[%s1 + $0x8e0] sm:$0xff]
  %v372 = vld [vmem:[%s1 + $0x8e8] sm:$0xff]
  %v373 = vld [vmem:[%s1 + $0x8f0] sm:$0xff]
  %v374 = vld [vmem:[%s1 + $0x8f8] sm:$0xff]
  %v375 = vld [vmem:[%s1 + $0x900] sm:$0xff]
  %v376 = vld [vmem:[%s1 + $0x908] sm:$0xff]
  %v377 = vld [vmem:[%s1 + $0x910] sm:$0xff]
  %v378 = vld [vmem:[%s1 + $0x918] sm:$0xff]
  %v379 = vld [vmem:[%s1 + $0x920] sm:$0xff]
  %v380 = vld [vmem:[%s1 + $0x928] sm:$0xff]
  %v381 = vld [vmem:[%s1 + $0x930] sm:$0xff]
  %v382 = vld [vmem:[%s1 + $0x938] sm:$0xff]
  %v383 = vld [vmem:[%s1 + $0x940] sm:$0xff]
  %v384 = vld [vmem:[%s1 + $0x948] sm:$0xff]
  %v385 = vld [vmem:[%s1 + $0x950] sm:$0xff]
  %v386 = vld [vmem:[%s1 + $0x958] sm:$0xff]
  %v387 = vld [vmem:[%s1 + $0x960] sm:$0xff]
  %v388 = vld [vmem:[%s1 + $0x968] sm:$0xff]
  %v389 = vld [vmem:[%s1 + $0x970] sm:$0xff]
  %v390 = vld [vmem:[%s1 + $0x978] sm:$0xff]
  %v391 = vld [vmem:[%s1 + $0x980] sm:$0xff]
  %v392 = vld [vmem:[%s1 + $0x988] sm:$0xff]
  %v393 = vld [vmem:[%s1 + $0x990] sm:$0xff]
  %v394 = vld [vmem:[%s1 + $0x998] sm:$0xff]
  %v395 = vld [vmem:[%s1 + $0x9a0] sm:$0xff]
  %v396 = vld [vmem:[%s1 + $0x9a8] sm:$0xff]
  %v397 = vld [vmem:[%s1 + $0x9b0] sm:$0xff]
  %v398 = vld [vmem:[%s1 + $0x9b8] sm:$0xff]
  %v399 = vld [vmem:[%s1 + $0x9c0] sm:$0xff]
  %v400 = vld [vmem:[%s1 + $0x9c8] sm:$0xff]
  %v401 = vld [vmem:[%s1 + $0x9d0] sm:$0xff]
  %v402 = vld [vmem:[%s1 + $0x9d8] sm:$0xff]
  %v403 = vld [vmem:[%s1 + $0x9e0] sm:$0xff]
  %v404 = vld [vmem:[%s1 + $0x9e8] sm:$0xff]
  %v405 = vld [vmem:[%s1 + $0x9f0] sm:$0xff]
  %v406 = vld [vmem:[%s1 + $0x9f8] sm:$0xff]
  %v407 = vld [vmem:[%s1 + $0xa00] sm:$0xff]
  %v408 = vld [vmem:[%s1 + $0xa08] sm:$0xff]
  %v409 = vld [vmem:[%s1 + $0xa10] sm:$0xff]
  %v410 = vld [vmem:[%s1 + $0xa18] sm:$0xff]
  %v411 = vld [vmem:[%s1 + $0xa20] sm:$0xff]
  %v412 = vld [vmem:[%s1 + $0xa28] sm:$0xff]
  %v413 = vld [vmem:[%s1 + $0xa30] sm:$0xff]
  %v414 = vld [vmem:[%s1 + $0xa38] sm:$0xff]
  %v415 = vld [vmem:[%s1 + $0xa40] sm:$0xff]
  %v416 = vld [vmem:[%s1 + $0xa48] sm:$0xff]
  %v417 = vld [vmem:[%s1 + $0xa50] sm:$0xff]
  %v418 = vld [vmem:[%s1 + $0xa58] sm:$0xff]
  %v419 = vld [vmem:[%s1 + $0xa60] sm:$0xff]
  %v420 = vld [vmem:[%s1 + $0xa68] sm:$0xff]
  %v421 = vld [vmem:[%s1 + $0xa70] sm:$0xff]
  %v422 = vld [vmem:[%s1 + $0xa78] sm:$0xff]
  %v423 = vld [vmem:[%s1 + $0xa80] sm:$0xff]
  %v424 = vld [vmem:[%s1 + $0xa88] sm:$0xff]
  %v425 = vld [vmem:[%s1 + $0xa90] sm:$0xff]
  %v426 = vld [vmem:[%s1 + $0xa98] sm:$0xff]
  %v427 = vld [vmem:[%s1 + $0xaa0] sm:$0xff]
  %v428 = vld [vmem:[%s1 + $0xaa8] sm:$0xff]
  %v429 = vld [vmem:[%s1 + $0xab0] sm:$0xff]
  %v430 = vld [vmem:[%s1 + $0xab8] sm:$0xff]
  %v431 = vld [vmem:[%s1 + $0xac0] sm:$0xff]
  %v432 = vld [vmem:[%s1 + $0xac8] sm:$0xff]
  %v433 = vld [vmem:[%s1 + $0xad0] sm:$0xff]
  %v434 = vld [vmem:[%s1 + $0xad8] sm:$0xff]
  %v435 = vld [vmem:[%s1 + $0xae0] sm:$0xff]
  %v436 = vld [vmem:[%s1 + $0xae8] sm:$0xff]
  %v437 = vld [vmem:[%s1 + $0xaf0] sm:$0xff]
  %v438 = vld [vmem:[%s1 + $0xaf8] sm:$0xff]
  %v439 = vld [vmem:[%s1 + $0xb00] sm:$0xff]
  %v440 = vld [vmem:[%s1 + $0xb08] sm:$0xff]
  %v441 = vld [vmem:[%s1 + $0xb10] sm:$0xff]
  %v442 = vld [vmem:[%s1 + $0xb18] sm:$0xff]
  %v443 = vld [vmem:[%s1 + $0xb20] sm:$0xff]
  %v444 = vld [vmem:[%s1 + $0xb28] sm:$0xff]
  %v445 = vld [vmem:[%s1 + $0xb30] sm:$0xff]
  %v446 = vld [vmem:[%s1 + $0xb38] sm:$0xff]
  %v447 = vld [vmem:[%s1 + $0xb40] sm:$0xff]
  %v448 = vld [vmem:[%s1 + $0xb48] sm:$0xff]
  %v449 = vld [vmem:[%s1 + $0xb50] sm:$0xff]
  %v450 = vld [vmem:[%s1 + $0xb58] sm:$0xff]
  %v451 = vld [vmem:[%s1 + $0xb60] sm:$0xff]
  %v452 = vld [vmem:[%s1 + $0xb68] sm:$0xff]
  %v453 = vld [vmem:[%s1 + $0xb70] sm:$0xff]
  %v454 = vld [vmem:[%s1 + $0xb78] sm:$0xff]
  %v455 = vld [vmem:[%s1 + $0xb80] sm:$0xff]
  %v456 = vld [vmem:[%s1 + $0xb88] sm:$0xff]
  %v457 = vld [vmem:[%s1 + $0xb90] sm:$0xff]
  %v458 = vld [vmem:[%s1 + $0xb98] sm:$0xff]
  %v459 = vld [vmem:[%s1 + $0xba0] sm:$0xff]
  %v460 = vld [vmem:[%s1 + $0xba8] sm:$0xff]
  %v461 = vld [vmem:[%s1 + $0xbb0] sm:$0xff]
  %v462 = vld [vmem:[%s1 + $0xbb8] sm:$0xff]
  %v463 = vld [vmem:[%s1 + $0xbc0] sm:$0xff]
  %v464 = vld [vmem:[%s1 + $0xbc8] sm:$0xff]
  %v465 = vld [vmem:[%s1 + $0xbd0] sm:$0xff]
  %v466 = vld [vmem:[%s1 + $0xbd8] sm:$0xff]
  %v467 = vld [vmem:[%s1 + $0xbe0] sm:$0xff]
  %v468 = vld [vmem:[%s1 + $0xbe8] sm:$0xff]
  %v469 = vld [vmem:[%s1 + $0xbf0] sm:$0xff]
  %v470 = vld [vmem:[%s1 + $0xbf8] sm:$0xff]
  %v471 = vld [vmem:[%s3] sm:$0xff]
  %v472 = vld [vmem:[%s3 + $0x8] sm:$0xf]
  %v475 = vlaneseq
  %v476 = vshrl.u32 %v475, 7
  %v477 = vsub.s32 0, %v476
  %v478 = vrot.slane %v471, %v477
  %v479 = vlaneseq
  %v480 = vshrl.u32 %v479, 7
  %v481 = vsub.s32 1, %v480
  %v482 = vrot.slane %v471, %v481
  %v483 = vlaneseq
  %v484 = vshrl.u32 %v483, 7
  %v485 = vsub.s32 2, %v484
  %v486 = vrot.slane %v471, %v485
  %v487 = vlaneseq
  %v488 = vshrl.u32 %v487, 7
  %v489 = vsub.s32 3, %v488
  %v490 = vrot.slane %v471, %v489
  %v491 = vlaneseq
  %v492 = vshrl.u32 %v491, 7
  %v493 = vsub.s32 4, %v492
  %v494 = vrot.slane %v471, %v493
  %v495 = vlaneseq
  %v496 = vshrl.u32 %v495, 7
  %v497 = vsub.s32 5, %v496
  %v498 = vrot.slane %v471, %v497
  %v499 = vlaneseq
  %v500 = vshrl.u32 %v499, 7
  %v501 = vsub.s32 6, %v500
  %v502 = vrot.slane %v471, %v501
  %v503 = vlaneseq
  %v504 = vshrl.u32 %v503, 7
  %v505 = vsub.s32 7, %v504
  %v506 = vrot.slane %v471, %v505
  %v507 = vlaneseq
  %v508 = vshrl.u32 %v507, 7
  %v509 = vsub.s32 0, %v508
  %v510 = vrot.slane %v472, %v509
  %v511 = vlaneseq
  %v512 = vshrl.u32 %v511, 7
  %v513 = vsub.s32 1, %v512
  %v514 = vrot.slane %v472, %v513
  %v515 = vlaneseq
  %v516 = vshrl.u32 %v515, 7
  %v517 = vsub.s32 2, %v516
  %v518 = vrot.slane %v472, %v517
  %v519 = vlaneseq
  %v520 = vshrl.u32 %v519, 7
  %v521 = vsub.s32 3, %v520
  %v522 = vrot.slane %v472, %v521
  %v551 = vunpack.c.l.b16 %v71
  %v552 = vunpack.c.h.b16 %v71
  %v553 = vunpack.c.l.b16 %v72
  %v554 = vunpack.c.h.b16 %v72
  %v555 = vunpack.c.l.b16 %v73
  %v556 = vunpack.c.h.b16 %v73
  %v557 = vunpack.c.l.b16 %v74
  %v558 = vunpack.c.h.b16 %v74
  %v559 = vunpack.c.l.b16 %v75
  %v560 = vunpack.c.h.b16 %v75
  %v561 = vunpack.c.l.b16 %v76
  %v562 = vunpack.c.h.b16 %v76
  %v563 = vunpack.c.l.b16 %v77
  %v564 = vunpack.c.h.b16 %v77
  %v565 = vunpack.c.l.b16 %v78
  %v566 = vunpack.c.h.b16 %v78
  %v567 = vunpack.c.l.b16 %v79
  %v568 = vunpack.c.h.b16 %v79
  %v569 = vunpack.c.l.b16 %v80
  %v570 = vunpack.c.h.b16 %v80
  %v571 = vunpack.c.l.b16 %v81
  %v572 = vunpack.c.h.b16 %v81
  %v573 = vunpack.c.l.b16 %v82
  %v574 = vunpack.c.h.b16 %v82
  %v575 = vunpack.c.l.b16 %v83
  %v576 = vunpack.c.h.b16 %v83
  %v577 = vunpack.c.l.b16 %v84
  %v578 = vunpack.c.h.b16 %v84
  %v579 = vunpack.c.l.b16 %v85
  %v580 = vunpack.c.h.b16 %v85
  %v581 = vunpack.c.l.b16 %v86
  %v582 = vunpack.c.h.b16 %v86
  %v583 = vpack.c.b16 %v555, %v551
  %v584 = vpack.c.b16 %v556, %v552
  %v585 = vpack.c.b16 %v557, %v553
  %v586 = vpack.c.b16 %v558, %v554
  %v587 = vpack.c.b16 %v563, %v559
  %v588 = vpack.c.b16 %v564, %v560
  %v589 = vpack.c.b16 %v565, %v561
  %v590 = vpack.c.b16 %v566, %v562
  %v591 = vpack.c.b16 %v571, %v567
  %v592 = vpack.c.b16 %v572, %v568
  %v593 = vpack.c.b16 %v573, %v569
  %v594 = vpack.c.b16 %v574, %v570
  %v595 = vpack.c.b16 %v579, %v575
  %v596 = vpack.c.b16 %v580, %v576
  %v597 = vpack.c.b16 %v581, %v577
  %v598 = vpack.c.b16 %v582, %v578
  %v999 = vunpack.c.l.b16 %v87
  %v1000 = vunpack.c.h.b16 %v87
  %v1001 = vunpack.c.l.b16 %v88
  %v1002 = vunpack.c.h.b16 %v88
  %v1003 = vunpack.c.l.b16 %v89
  %v1004 = vunpack.c.h.b16 %v89
  %v1005 = vunpack.c.l.b16 %v90
  %v1006 = vunpack.c.h.b16 %v90
  %v1007 = vunpack.c.l.b16 %v91
  %v1008 = vunpack.c.h.b16 %v91
  %v1009 = vunpack.c.l.b16 %v92
  %v1010 = vunpack.c.h.b16 %v92
  %v1011 = vunpack.c.l.b16 %v93
  %v1012 = vunpack.c.h.b16 %v93
  %v1013 = vunpack.c.l.b16 %v94
  %v1014 = vunpack.c.h.b16 %v94
  %v1015 = vunpack.c.l.b16 %v95
  %v1016 = vunpack.c.h.b16 %v95
  %v1017 = vunpack.c.l.b16 %v96
  %v1018 = vunpack.c.h.b16 %v96
  %v1019 = vunpack.c.l.b16 %v97
  %v1020 = vunpack.c.h.b16 %v97
  %v1021 = vunpack.c.l.b16 %v98
  %v1022 = vunpack.c.h.b16 %v98
  %v1023 = vunpack.c.l.b16 %v99
  %v1024 = vunpack.c.h.b16 %v99
  %v1025 = vunpack.c.l.b16 %v100
  %v1026 = vunpack.c.h.b16 %v100
  %v1027 = vunpack.c.l.b16 %v101
  %v1028 = vunpack.c.h.b16 %v101
  %v1029 = vunpack.c.l.b16 %v102
  %v1030 = vunpack.c.h.b16 %v102
  %v1031 = vunpack.c.l.b16 %v103
  %v1032 = vunpack.c.h.b16 %v103
  %v1033 = vunpack.c.l.b16 %v104
  %v1034 = vunpack.c.h.b16 %v104
  %v1035 = vunpack.c.l.b16 %v105
  %v1036 = vunpack.c.h.b16 %v105
  %v1037 = vunpack.c.l.b16 %v106
  %v1038 = vunpack.c.h.b16 %v106
  %v1039 = vunpack.c.l.b16 %v107
  %v1040 = vunpack.c.h.b16 %v107
  %v1041 = vunpack.c.l.b16 %v108
  %v1042 = vunpack.c.h.b16 %v108
  %v1043 = vunpack.c.l.b16 %v109
  %v1044 = vunpack.c.h.b16 %v109
  %v1045 = vunpack.c.l.b16 %v110
  %v1046 = vunpack.c.h.b16 %v110
  %v1047 = vunpack.c.l.b16 %v111
  %v1048 = vunpack.c.h.b16 %v111
  %v1049 = vunpack.c.l.b16 %v112
  %v1050 = vunpack.c.h.b16 %v112
  %v1051 = vunpack.c.l.b16 %v113
  %v1052 = vunpack.c.h.b16 %v113
  %v1053 = vunpack.c.l.b16 %v114
  %v1054 = vunpack.c.h.b16 %v114
  %v1055 = vunpack.c.l.b16 %v115
  %v1056 = vunpack.c.h.b16 %v115
  %v1057 = vunpack.c.l.b16 %v116
  %v1058 = vunpack.c.h.b16 %v116
  %v1059 = vunpack.c.l.b16 %v117
  %v1060 = vunpack.c.h.b16 %v117
  %v1061 = vunpack.c.l.b16 %v118
  %v1062 = vunpack.c.h.b16 %v118
  %v1063 = vunpack.c.l.b16 %v119
  %v1064 = vunpack.c.h.b16 %v119
  %v1065 = vunpack.c.l.b16 %v120
  %v1066 = vunpack.c.h.b16 %v120
  %v1067 = vunpack.c.l.b16 %v121
  %v1068 = vunpack.c.h.b16 %v121
  %v1069 = vunpack.c.l.b16 %v122
  %v1070 = vunpack.c.h.b16 %v122
  %v1071 = vunpack.c.l.b16 %v123
  %v1072 = vunpack.c.h.b16 %v123
  %v1073 = vunpack.c.l.b16 %v124
  %v1074 = vunpack.c.h.b16 %v124
  %v1075 = vunpack.c.l.b16 %v125
  %v1076 = vunpack.c.h.b16 %v125
  %v1077 = vunpack.c.l.b16 %v126
  %v1078 = vunpack.c.h.b16 %v126
  %v1079 = vunpack.c.l.b16 %v127
  %v1080 = vunpack.c.h.b16 %v127
  %v1081 = vunpack.c.l.b16 %v128
  %v1082 = vunpack.c.h.b16 %v128
  %v1083 = vunpack.c.l.b16 %v129
  %v1084 = vunpack.c.h.b16 %v129
  %v1085 = vunpack.c.l.b16 %v130
  %v1086 = vunpack.c.h.b16 %v130
  %v1087 = vunpack.c.l.b16 %v131
  %v1088 = vunpack.c.h.b16 %v131
  %v1089 = vunpack.c.l.b16 %v132
  %v1090 = vunpack.c.h.b16 %v132
  %v1091 = vunpack.c.l.b16 %v133
  %v1092 = vunpack.c.h.b16 %v133
  %v1093 = vunpack.c.l.b16 %v134
  %v1094 = vunpack.c.h.b16 %v134
  %v1095 = vunpack.c.l.b16 %v135
  %v1096 = vunpack.c.h.b16 %v135
  %v1097 = vunpack.c.l.b16 %v136
  %v1098 = vunpack.c.h.b16 %v136
  %v1099 = vunpack.c.l.b16 %v137
  %v1100 = vunpack.c.h.b16 %v137
  %v1101 = vunpack.c.l.b16 %v138
  %v1102 = vunpack.c.h.b16 %v138
  %v1103 = vunpack.c.l.b16 %v139
  %v1104 = vunpack.c.h.b16 %v139
  %v1105 = vunpack.c.l.b16 %v140
  %v1106 = vunpack.c.h.b16 %v140
  %v1107 = vunpack.c.l.b16 %v141
  %v1108 = vunpack.c.h.b16 %v141
  %v1109 = vunpack.c.l.b16 %v142
  %v1110 = vunpack.c.h.b16 %v142
  %v1111 = vunpack.c.l.b16 %v143
  %v1112 = vunpack.c.h.b16 %v143
  %v1113 = vunpack.c.l.b16 %v144
  %v1114 = vunpack.c.h.b16 %v144
  %v1115 = vunpack.c.l.b16 %v145
  %v1116 = vunpack.c.h.b16 %v145
  %v1117 = vunpack.c.l.b16 %v146
  %v1118 = vunpack.c.h.b16 %v146
  %v1119 = vunpack.c.l.b16 %v147
  %v1120 = vunpack.c.h.b16 %v147
  %v1121 = vunpack.c.l.b16 %v148
  %v1122 = vunpack.c.h.b16 %v148
  %v1123 = vunpack.c.l.b16 %v149
  %v1124 = vunpack.c.h.b16 %v149
  %v1125 = vunpack.c.l.b16 %v150
  %v1126 = vunpack.c.h.b16 %v150
  %v1127 = vunpack.c.l.b16 %v151
  %v1128 = vunpack.c.h.b16 %v151
  %v1129 = vunpack.c.l.b16 %v152
  %v1130 = vunpack.c.h.b16 %v152
  %v1131 = vunpack.c.l.b16 %v153
  %v1132 = vunpack.c.h.b16 %v153
  %v1133 = vunpack.c.l.b16 %v154
  %v1134 = vunpack.c.h.b16 %v154
  %v1135 = vunpack.c.l.b16 %v155
  %v1136 = vunpack.c.h.b16 %v155
  %v1137 = vunpack.c.l.b16 %v156
  %v1138 = vunpack.c.h.b16 %v156
  %v1139 = vunpack.c.l.b16 %v157
  %v1140 = vunpack.c.h.b16 %v157
  %v1141 = vunpack.c.l.b16 %v158
  %v1142 = vunpack.c.h.b16 %v158
  %v1143 = vunpack.c.l.b16 %v159
  %v1144 = vunpack.c.h.b16 %v159
  %v1145 = vunpack.c.l.b16 %v160
  %v1146 = vunpack.c.h.b16 %v160
  %v1147 = vunpack.c.l.b16 %v161
  %v1148 = vunpack.c.h.b16 %v161
  %v1149 = vunpack.c.l.b16 %v162
  %v1150 = vunpack.c.h.b16 %v162
  %v1151 = vunpack.c.l.b16 %v163
  %v1152 = vunpack.c.h.b16 %v163
  %v1153 = vunpack.c.l.b16 %v164
  %v1154 = vunpack.c.h.b16 %v164
  %v1155 = vunpack.c.l.b16 %v165
  %v1156 = vunpack.c.h.b16 %v165
  %v1157 = vunpack.c.l.b16 %v166
  %v1158 = vunpack.c.h.b16 %v166
  %v1159 = vunpack.c.l.b16 %v167
  %v1160 = vunpack.c.h.b16 %v167
  %v1161 = vunpack.c.l.b16 %v168
  %v1162 = vunpack.c.h.b16 %v168
  %v1163 = vunpack.c.l.b16 %v169
  %v1164 = vunpack.c.h.b16 %v169
  %v1165 = vunpack.c.l.b16 %v170
  %v1166 = vunpack.c.h.b16 %v170
  %v1167 = vunpack.c.l.b16 %v171
  %v1168 = vunpack.c.h.b16 %v171
  %v1169 = vunpack.c.l.b16 %v172
  %v1170 = vunpack.c.h.b16 %v172
  %v1171 = vunpack.c.l.b16 %v173
  %v1172 = vunpack.c.h.b16 %v173
  %v1173 = vunpack.c.l.b16 %v174
  %v1174 = vunpack.c.h.b16 %v174
  %v1175 = vunpack.c.l.b16 %v175
  %v1176 = vunpack.c.h.b16 %v175
  %v1177 = vunpack.c.l.b16 %v176
  %v1178 = vunpack.c.h.b16 %v176
  %v1179 = vunpack.c.l.b16 %v177
  %v1180 = vunpack.c.h.b16 %v177
  %v1181 = vunpack.c.l.b16 %v178
  %v1182 = vunpack.c.h.b16 %v178
  %v1183 = vunpack.c.l.b16 %v179
  %v1184 = vunpack.c.h.b16 %v179
  %v1185 = vunpack.c.l.b16 %v180
  %v1186 = vunpack.c.h.b16 %v180
  %v1187 = vunpack.c.l.b16 %v181
  %v1188 = vunpack.c.h.b16 %v181
  %v1189 = vunpack.c.l.b16 %v182
  %v1190 = vunpack.c.h.b16 %v182
  %v1191 = vunpack.c.l.b16 %v183
  %v1192 = vunpack.c.h.b16 %v183
  %v1193 = vunpack.c.l.b16 %v184
  %v1194 = vunpack.c.h.b16 %v184
  %v1195 = vunpack.c.l.b16 %v185
  %v1196 = vunpack.c.h.b16 %v185
  %v1197 = vunpack.c.l.b16 %v186
  %v1198 = vunpack.c.h.b16 %v186
  %v1199 = vunpack.c.l.b16 %v187
  %v1200 = vunpack.c.h.b16 %v187
  %v1201 = vunpack.c.l.b16 %v188
  %v1202 = vunpack.c.h.b16 %v188
  %v1203 = vunpack.c.l.b16 %v189
  %v1204 = vunpack.c.h.b16 %v189
  %v1205 = vunpack.c.l.b16 %v190
  %v1206 = vunpack.c.h.b16 %v190
  %v1207 = vunpack.c.l.b16 %v191
  %v1208 = vunpack.c.h.b16 %v191
  %v1209 = vunpack.c.l.b16 %v192
  %v1210 = vunpack.c.h.b16 %v192
  %v1211 = vunpack.c.l.b16 %v193
  %v1212 = vunpack.c.h.b16 %v193
  %v1213 = vunpack.c.l.b16 %v194
  %v1214 = vunpack.c.h.b16 %v194
  %v1215 = vunpack.c.l.b16 %v195
  %v1216 = vunpack.c.h.b16 %v195
  %v1217 = vunpack.c.l.b16 %v196
  %v1218 = vunpack.c.h.b16 %v196
  %v1219 = vunpack.c.l.b16 %v197
  %v1220 = vunpack.c.h.b16 %v197
  %v1221 = vunpack.c.l.b16 %v198
  %v1222 = vunpack.c.h.b16 %v198
  %v1223 = vunpack.c.l.b16 %v199
  %v1224 = vunpack.c.h.b16 %v199
  %v1225 = vunpack.c.l.b16 %v200
  %v1226 = vunpack.c.h.b16 %v200
  %v1227 = vunpack.c.l.b16 %v201
  %v1228 = vunpack.c.h.b16 %v201
  %v1229 = vunpack.c.l.b16 %v202
  %v1230 = vunpack.c.h.b16 %v202
  %v1231 = vunpack.c.l.b16 %v203
  %v1232 = vunpack.c.h.b16 %v203
  %v1233 = vunpack.c.l.b16 %v204
  %v1234 = vunpack.c.h.b16 %v204
  %v1235 = vunpack.c.l.b16 %v205
  %v1236 = vunpack.c.h.b16 %v205
  %v1237 = vunpack.c.l.b16 %v206
  %v1238 = vunpack.c.h.b16 %v206
  %v1239 = vunpack.c.l.b16 %v207
  %v1240 = vunpack.c.h.b16 %v207
  %v1241 = vunpack.c.l.b16 %v208
  %v1242 = vunpack.c.h.b16 %v208
  %v1243 = vunpack.c.l.b16 %v209
  %v1244 = vunpack.c.h.b16 %v209
  %v1245 = vunpack.c.l.b16 %v210
  %v1246 = vunpack.c.h.b16 %v210
  %v1247 = vunpack.c.l.b16 %v211
  %v1248 = vunpack.c.h.b16 %v211
  %v1249 = vunpack.c.l.b16 %v212
  %v1250 = vunpack.c.h.b16 %v212
  %v1251 = vunpack.c.l.b16 %v213
  %v1252 = vunpack.c.h.b16 %v213
  %v1253 = vunpack.c.l.b16 %v214
  %v1254 = vunpack.c.h.b16 %v214
  %v1255 = vunpack.c.l.b16 %v215
  %v1256 = vunpack.c.h.b16 %v215
  %v1257 = vunpack.c.l.b16 %v216
  %v1258 = vunpack.c.h.b16 %v216
  %v1259 = vunpack.c.l.b16 %v217
  %v1260 = vunpack.c.h.b16 %v217
  %v1261 = vunpack.c.l.b16 %v218
  %v1262 = vunpack.c.h.b16 %v218
  %v1263 = vunpack.c.l.b16 %v219
  %v1264 = vunpack.c.h.b16 %v219
  %v1265 = vunpack.c.l.b16 %v220
  %v1266 = vunpack.c.h.b16 %v220
  %v1267 = vunpack.c.l.b16 %v221
  %v1268 = vunpack.c.h.b16 %v221
  %v1269 = vunpack.c.l.b16 %v222
  %v1270 = vunpack.c.h.b16 %v222
  %v1271 = vunpack.c.l.b16 %v223
  %v1272 = vunpack.c.h.b16 %v223
  %v1273 = vunpack.c.l.b16 %v224
  %v1274 = vunpack.c.h.b16 %v224
  %v1275 = vunpack.c.l.b16 %v225
  %v1276 = vunpack.c.h.b16 %v225
  %v1277 = vunpack.c.l.b16 %v226
  %v1278 = vunpack.c.h.b16 %v226
  %v1279 = vunpack.c.l.b16 %v227
  %v1280 = vunpack.c.h.b16 %v227
  %v1281 = vunpack.c.l.b16 %v228
  %v1282 = vunpack.c.h.b16 %v228
  %v1283 = vunpack.c.l.b16 %v229
  %v1284 = vunpack.c.h.b16 %v229
  %v1285 = vunpack.c.l.b16 %v230
  %v1286 = vunpack.c.h.b16 %v230
  %v1287 = vunpack.c.l.b16 %v231
  %v1288 = vunpack.c.h.b16 %v231
  %v1289 = vunpack.c.l.b16 %v232
  %v1290 = vunpack.c.h.b16 %v232
  %v1291 = vunpack.c.l.b16 %v233
  %v1292 = vunpack.c.h.b16 %v233
  %v1293 = vunpack.c.l.b16 %v234
  %v1294 = vunpack.c.h.b16 %v234
  %v1295 = vunpack.c.l.b16 %v235
  %v1296 = vunpack.c.h.b16 %v235
  %v1297 = vunpack.c.l.b16 %v236
  %v1298 = vunpack.c.h.b16 %v236
  %v1299 = vunpack.c.l.b16 %v237
  %v1300 = vunpack.c.h.b16 %v237
  %v1301 = vunpack.c.l.b16 %v238
  %v1302 = vunpack.c.h.b16 %v238
  %v1303 = vunpack.c.l.b16 %v239
  %v1304 = vunpack.c.h.b16 %v239
  %v1305 = vunpack.c.l.b16 %v240
  %v1306 = vunpack.c.h.b16 %v240
  %v1307 = vunpack.c.l.b16 %v241
  %v1308 = vunpack.c.h.b16 %v241
  %v1309 = vunpack.c.l.b16 %v242
  %v1310 = vunpack.c.h.b16 %v242
  %v1311 = vunpack.c.l.b16 %v243
  %v1312 = vunpack.c.h.b16 %v243
  %v1313 = vunpack.c.l.b16 %v244
  %v1314 = vunpack.c.h.b16 %v244
  %v1315 = vunpack.c.l.b16 %v245
  %v1316 = vunpack.c.h.b16 %v245
  %v1317 = vunpack.c.l.b16 %v246
  %v1318 = vunpack.c.h.b16 %v246
  %v1319 = vunpack.c.l.b16 %v247
  %v1320 = vunpack.c.h.b16 %v247
  %v1321 = vunpack.c.l.b16 %v248
  %v1322 = vunpack.c.h.b16 %v248
  %v1323 = vunpack.c.l.b16 %v249
  %v1324 = vunpack.c.h.b16 %v249
  %v1325 = vunpack.c.l.b16 %v250
  %v1326 = vunpack.c.h.b16 %v250
  %v1327 = vunpack.c.l.b16 %v251
  %v1328 = vunpack.c.h.b16 %v251
  %v1329 = vunpack.c.l.b16 %v252
  %v1330 = vunpack.c.h.b16 %v252
  %v1331 = vunpack.c.l.b16 %v253
  %v1332 = vunpack.c.h.b16 %v253
  %v1333 = vunpack.c.l.b16 %v254
  %v1334 = vunpack.c.h.b16 %v254
  %v1335 = vunpack.c.l.b16 %v255
  %v1336 = vunpack.c.h.b16 %v255
  %v1337 = vunpack.c.l.b16 %v256
  %v1338 = vunpack.c.h.b16 %v256
  %v1339 = vunpack.c.l.b16 %v257
  %v1340 = vunpack.c.h.b16 %v257
  %v1341 = vunpack.c.l.b16 %v258
  %v1342 = vunpack.c.h.b16 %v258
  %v1343 = vunpack.c.l.b16 %v259
  %v1344 = vunpack.c.h.b16 %v259
  %v1345 = vunpack.c.l.b16 %v260
  %v1346 = vunpack.c.h.b16 %v260
  %v1347 = vunpack.c.l.b16 %v261
  %v1348 = vunpack.c.h.b16 %v261
  %v1349 = vunpack.c.l.b16 %v262
  %v1350 = vunpack.c.h.b16 %v262
  %v1351 = vunpack.c.l.b16 %v263
  %v1352 = vunpack.c.h.b16 %v263
  %v1353 = vunpack.c.l.b16 %v264
  %v1354 = vunpack.c.h.b16 %v264
  %v1355 = vunpack.c.l.b16 %v265
  %v1356 = vunpack.c.h.b16 %v265
  %v1357 = vunpack.c.l.b16 %v266
  %v1358 = vunpack.c.h.b16 %v266
  %v1359 = vunpack.c.l.b16 %v267
  %v1360 = vunpack.c.h.b16 %v267
  %v1361 = vunpack.c.l.b16 %v268
  %v1362 = vunpack.c.h.b16 %v268
  %v1363 = vunpack.c.l.b16 %v269
  %v1364 = vunpack.c.h.b16 %v269
  %v1365 = vunpack.c.l.b16 %v270
  %v1366 = vunpack.c.h.b16 %v270
  %v1367 = vunpack.c.l.b16 %v271
  %v1368 = vunpack.c.h.b16 %v271
  %v1369 = vunpack.c.l.b16 %v272
  %v1370 = vunpack.c.h.b16 %v272
  %v1371 = vunpack.c.l.b16 %v273
  %v1372 = vunpack.c.h.b16 %v273
  %v1373 = vunpack.c.l.b16 %v274
  %v1374 = vunpack.c.h.b16 %v274
  %v1375 = vunpack.c.l.b16 %v275
  %v1376 = vunpack.c.h.b16 %v275
  %v1377 = vunpack.c.l.b16 %v276
  %v1378 = vunpack.c.h.b16 %v276
  %v1379 = vunpack.c.l.b16 %v277
  %v1380 = vunpack.c.h.b16 %v277
  %v1381 = vunpack.c.l.b16 %v278
  %v1382 = vunpack.c.h.b16 %v278
  %v1383 = vunpack.c.l.b16 %v279
  %v1384 = vunpack.c.h.b16 %v279
  %v1385 = vunpack.c.l.b16 %v280
  %v1386 = vunpack.c.h.b16 %v280
  %v1387 = vunpack.c.l.b16 %v281
  %v1388 = vunpack.c.h.b16 %v281
  %v1389 = vunpack.c.l.b16 %v282
  %v1390 = vunpack.c.h.b16 %v282
  %v1391 = vunpack.c.l.b16 %v283
  %v1392 = vunpack.c.h.b16 %v283
  %v1393 = vunpack.c.l.b16 %v284
  %v1394 = vunpack.c.h.b16 %v284
  %v1395 = vunpack.c.l.b16 %v285
  %v1396 = vunpack.c.h.b16 %v285
  %v1397 = vunpack.c.l.b16 %v286
  %v1398 = vunpack.c.h.b16 %v286
  %v1399 = vunpack.c.l.b16 %v287
  %v1400 = vunpack.c.h.b16 %v287
  %v1401 = vunpack.c.l.b16 %v288
  %v1402 = vunpack.c.h.b16 %v288
  %v1403 = vunpack.c.l.b16 %v289
  %v1404 = vunpack.c.h.b16 %v289
  %v1405 = vunpack.c.l.b16 %v290
  %v1406 = vunpack.c.h.b16 %v290
  %v1407 = vunpack.c.l.b16 %v291
  %v1408 = vunpack.c.h.b16 %v291
  %v1409 = vunpack.c.l.b16 %v292
  %v1410 = vunpack.c.h.b16 %v292
  %v1411 = vunpack.c.l.b16 %v293
  %v1412 = vunpack.c.h.b16 %v293
  %v1413 = vunpack.c.l.b16 %v294
  %v1414 = vunpack.c.h.b16 %v294
  %v1415 = vunpack.c.l.b16 %v295
  %v1416 = vunpack.c.h.b16 %v295
  %v1417 = vunpack.c.l.b16 %v296
  %v1418 = vunpack.c.h.b16 %v296
  %v1419 = vunpack.c.l.b16 %v297
  %v1420 = vunpack.c.h.b16 %v297
  %v1421 = vunpack.c.l.b16 %v298
  %v1422 = vunpack.c.h.b16 %v298
  %v1423 = vunpack.c.l.b16 %v299
  %v1424 = vunpack.c.h.b16 %v299
  %v1425 = vunpack.c.l.b16 %v300
  %v1426 = vunpack.c.h.b16 %v300
  %v1427 = vunpack.c.l.b16 %v301
  %v1428 = vunpack.c.h.b16 %v301
  %v1429 = vunpack.c.l.b16 %v302
  %v1430 = vunpack.c.h.b16 %v302
  %v1431 = vunpack.c.l.b16 %v303
  %v1432 = vunpack.c.h.b16 %v303
  %v1433 = vunpack.c.l.b16 %v304
  %v1434 = vunpack.c.h.b16 %v304
  %v1435 = vunpack.c.l.b16 %v305
  %v1436 = vunpack.c.h.b16 %v305
  %v1437 = vunpack.c.l.b16 %v306
  %v1438 = vunpack.c.h.b16 %v306
  %v1439 = vunpack.c.l.b16 %v307
  %v1440 = vunpack.c.h.b16 %v307
  %v1441 = vunpack.c.l.b16 %v308
  %v1442 = vunpack.c.h.b16 %v308
  %v1443 = vunpack.c.l.b16 %v309
  %v1444 = vunpack.c.h.b16 %v309
  %v1445 = vunpack.c.l.b16 %v310
  %v1446 = vunpack.c.h.b16 %v310
  %v1447 = vunpack.c.l.b16 %v311
  %v1448 = vunpack.c.h.b16 %v311
  %v1449 = vunpack.c.l.b16 %v312
  %v1450 = vunpack.c.h.b16 %v312
  %v1451 = vunpack.c.l.b16 %v313
  %v1452 = vunpack.c.h.b16 %v313
  %v1453 = vunpack.c.l.b16 %v314
  %v1454 = vunpack.c.h.b16 %v314
  %v1455 = vunpack.c.l.b16 %v315
  %v1456 = vunpack.c.h.b16 %v315
  %v1457 = vunpack.c.l.b16 %v316
  %v1458 = vunpack.c.h.b16 %v316
  %v1459 = vunpack.c.l.b16 %v317
  %v1460 = vunpack.c.h.b16 %v317
  %v1461 = vunpack.c.l.b16 %v318
  %v1462 = vunpack.c.h.b16 %v318
  %v1463 = vunpack.c.l.b16 %v319
  %v1464 = vunpack.c.h.b16 %v319
  %v1465 = vunpack.c.l.b16 %v320
  %v1466 = vunpack.c.h.b16 %v320
  %v1467 = vunpack.c.l.b16 %v321
  %v1468 = vunpack.c.h.b16 %v321
  %v1469 = vunpack.c.l.b16 %v322
  %v1470 = vunpack.c.h.b16 %v322
  %v1471 = vunpack.c.l.b16 %v323
  %v1472 = vunpack.c.h.b16 %v323
  %v1473 = vunpack.c.l.b16 %v324
  %v1474 = vunpack.c.h.b16 %v324
  %v1475 = vunpack.c.l.b16 %v325
  %v1476 = vunpack.c.h.b16 %v325
  %v1477 = vunpack.c.l.b16 %v326
  %v1478 = vunpack.c.h.b16 %v326
  %v1479 = vunpack.c.l.b16 %v327
  %v1480 = vunpack.c.h.b16 %v327
  %v1481 = vunpack.c.l.b16 %v328
  %v1482 = vunpack.c.h.b16 %v328
  %v1483 = vunpack.c.l.b16 %v329
  %v1484 = vunpack.c.h.b16 %v329
  %v1485 = vunpack.c.l.b16 %v330
  %v1486 = vunpack.c.h.b16 %v330
  %v1487 = vunpack.c.l.b16 %v331
  %v1488 = vunpack.c.h.b16 %v331
  %v1489 = vunpack.c.l.b16 %v332
  %v1490 = vunpack.c.h.b16 %v332
  %v1491 = vunpack.c.l.b16 %v333
  %v1492 = vunpack.c.h.b16 %v333
  %v1493 = vunpack.c.l.b16 %v334
  %v1494 = vunpack.c.h.b16 %v334
  %v1495 = vunpack.c.l.b16 %v335
  %v1496 = vunpack.c.h.b16 %v335
  %v1497 = vunpack.c.l.b16 %v336
  %v1498 = vunpack.c.h.b16 %v336
  %v1499 = vunpack.c.l.b16 %v337
  %v1500 = vunpack.c.h.b16 %v337
  %v1501 = vunpack.c.l.b16 %v338
  %v1502 = vunpack.c.h.b16 %v338
  %v1503 = vunpack.c.l.b16 %v339
  %v1504 = vunpack.c.h.b16 %v339
  %v1505 = vunpack.c.l.b16 %v340
  %v1506 = vunpack.c.h.b16 %v340
  %v1507 = vunpack.c.l.b16 %v341
  %v1508 = vunpack.c.h.b16 %v341
  %v1509 = vunpack.c.l.b16 %v342
  %v1510 = vunpack.c.h.b16 %v342
  %v1511 = vunpack.c.l.b16 %v343
  %v1512 = vunpack.c.h.b16 %v343
  %v1513 = vunpack.c.l.b16 %v344
  %v1514 = vunpack.c.h.b16 %v344
  %v1515 = vunpack.c.l.b16 %v345
  %v1516 = vunpack.c.h.b16 %v345
  %v1517 = vunpack.c.l.b16 %v346
  %v1518 = vunpack.c.h.b16 %v346
  %v1519 = vunpack.c.l.b16 %v347
  %v1520 = vunpack.c.h.b16 %v347
  %v1521 = vunpack.c.l.b16 %v348
  %v1522 = vunpack.c.h.b16 %v348
  %v1523 = vunpack.c.l.b16 %v349
  %v1524 = vunpack.c.h.b16 %v349
  %v1525 = vunpack.c.l.b16 %v350
  %v1526 = vunpack.c.h.b16 %v350
  %v1527 = vunpack.c.l.b16 %v351
  %v1528 = vunpack.c.h.b16 %v351
  %v1529 = vunpack.c.l.b16 %v352
  %v1530 = vunpack.c.h.b16 %v352
  %v1531 = vunpack.c.l.b16 %v353
  %v1532 = vunpack.c.h.b16 %v353
  %v1533 = vunpack.c.l.b16 %v354
  %v1534 = vunpack.c.h.b16 %v354
  %v1535 = vunpack.c.l.b16 %v355
  %v1536 = vunpack.c.h.b16 %v355
  %v1537 = vunpack.c.l.b16 %v356
  %v1538 = vunpack.c.h.b16 %v356
  %v1539 = vunpack.c.l.b16 %v357
  %v1540 = vunpack.c.h.b16 %v357
  %v1541 = vunpack.c.l.b16 %v358
  %v1542 = vunpack.c.h.b16 %v358
  %v1543 = vunpack.c.l.b16 %v359
  %v1544 = vunpack.c.h.b16 %v359
  %v1545 = vunpack.c.l.b16 %v360
  %v1546 = vunpack.c.h.b16 %v360
  %v1547 = vunpack.c.l.b16 %v361
  %v1548 = vunpack.c.h.b16 %v361
  %v1549 = vunpack.c.l.b16 %v362
  %v1550 = vunpack.c.h.b16 %v362
  %v1551 = vunpack.c.l.b16 %v363
  %v1552 = vunpack.c.h.b16 %v363
  %v1553 = vunpack.c.l.b16 %v364
  %v1554 = vunpack.c.h.b16 %v364
  %v1555 = vunpack.c.l.b16 %v365
  %v1556 = vunpack.c.h.b16 %v365
  %v1557 = vunpack.c.l.b16 %v366
  %v1558 = vunpack.c.h.b16 %v366
  %v1559 = vunpack.c.l.b16 %v367
  %v1560 = vunpack.c.h.b16 %v367
  %v1561 = vunpack.c.l.b16 %v368
  %v1562 = vunpack.c.h.b16 %v368
  %v1563 = vunpack.c.l.b16 %v369
  %v1564 = vunpack.c.h.b16 %v369
  %v1565 = vunpack.c.l.b16 %v370
  %v1566 = vunpack.c.h.b16 %v370
  %v1567 = vunpack.c.l.b16 %v371
  %v1568 = vunpack.c.h.b16 %v371
  %v1569 = vunpack.c.l.b16 %v372
  %v1570 = vunpack.c.h.b16 %v372
  %v1571 = vunpack.c.l.b16 %v373
  %v1572 = vunpack.c.h.b16 %v373
  %v1573 = vunpack.c.l.b16 %v374
  %v1574 = vunpack.c.h.b16 %v374
  %v1575 = vunpack.c.l.b16 %v375
  %v1576 = vunpack.c.h.b16 %v375
  %v1577 = vunpack.c.l.b16 %v376
  %v1578 = vunpack.c.h.b16 %v376
  %v1579 = vunpack.c.l.b16 %v377
  %v1580 = vunpack.c.h.b16 %v377
  %v1581 = vunpack.c.l.b16 %v378
  %v1582 = vunpack.c.h.b16 %v378
  %v1583 = vunpack.c.l.b16 %v379
  %v1584 = vunpack.c.h.b16 %v379
  %v1585 = vunpack.c.l.b16 %v380
  %v1586 = vunpack.c.h.b16 %v380
  %v1587 = vunpack.c.l.b16 %v381
  %v1588 = vunpack.c.h.b16 %v381
  %v1589 = vunpack.c.l.b16 %v382
  %v1590 = vunpack.c.h.b16 %v382
  %v1591 = vunpack.c.l.b16 %v383
  %v1592 = vunpack.c.h.b16 %v383
  %v1593 = vunpack.c.l.b16 %v384
  %v1594 = vunpack.c.h.b16 %v384
  %v1595 = vunpack.c.l.b16 %v385
  %v1596 = vunpack.c.h.b16 %v385
  %v1597 = vunpack.c.l.b16 %v386
  %v1598 = vunpack.c.h.b16 %v386
  %v1599 = vunpack.c.l.b16 %v387
  %v1600 = vunpack.c.h.b16 %v387
  %v1601 = vunpack.c.l.b16 %v388
  %v1602 = vunpack.c.h.b16 %v388
  %v1603 = vunpack.c.l.b16 %v389
  %v1604 = vunpack.c.h.b16 %v389
  %v1605 = vunpack.c.l.b16 %v390
  %v1606 = vunpack.c.h.b16 %v390
  %v1607 = vunpack.c.l.b16 %v391
  %v1608 = vunpack.c.h.b16 %v391
  %v1609 = vunpack.c.l.b16 %v392
  %v1610 = vunpack.c.h.b16 %v392
  %v1611 = vunpack.c.l.b16 %v393
  %v1612 = vunpack.c.h.b16 %v393
  %v1613 = vunpack.c.l.b16 %v394
  %v1614 = vunpack.c.h.b16 %v394
  %v1615 = vunpack.c.l.b16 %v395
  %v1616 = vunpack.c.h.b16 %v395
  %v1617 = vunpack.c.l.b16 %v396
  %v1618 = vunpack.c.h.b16 %v396
  %v1619 = vunpack.c.l.b16 %v397
  %v1620 = vunpack.c.h.b16 %v397
  %v1621 = vunpack.c.l.b16 %v398
  %v1622 = vunpack.c.h.b16 %v398
  %v1623 = vunpack.c.l.b16 %v399
  %v1624 = vunpack.c.h.b16 %v399
  %v1625 = vunpack.c.l.b16 %v400
  %v1626 = vunpack.c.h.b16 %v400
  %v1627 = vunpack.c.l.b16 %v401
  %v1628 = vunpack.c.h.b16 %v401
  %v1629 = vunpack.c.l.b16 %v402
  %v1630 = vunpack.c.h.b16 %v402
  %v1631 = vunpack.c.l.b16 %v403
  %v1632 = vunpack.c.h.b16 %v403
  %v1633 = vunpack.c.l.b16 %v404
  %v1634 = vunpack.c.h.b16 %v404
  %v1635 = vunpack.c.l.b16 %v405
  %v1636 = vunpack.c.h.b16 %v405
  %v1637 = vunpack.c.l.b16 %v406
  %v1638 = vunpack.c.h.b16 %v406
  %v1639 = vunpack.c.l.b16 %v407
  %v1640 = vunpack.c.h.b16 %v407
  %v1641 = vunpack.c.l.b16 %v408
  %v1642 = vunpack.c.h.b16 %v408
  %v1643 = vunpack.c.l.b16 %v409
  %v1644 = vunpack.c.h.b16 %v409
  %v1645 = vunpack.c.l.b16 %v410
  %v1646 = vunpack.c.h.b16 %v410
  %v1647 = vunpack.c.l.b16 %v411
  %v1648 = vunpack.c.h.b16 %v411
  %v1649 = vunpack.c.l.b16 %v412
  %v1650 = vunpack.c.h.b16 %v412
  %v1651 = vunpack.c.l.b16 %v413
  %v1652 = vunpack.c.h.b16 %v413
  %v1653 = vunpack.c.l.b16 %v414
  %v1654 = vunpack.c.h.b16 %v414
  %v1655 = vunpack.c.l.b16 %v415
  %v1656 = vunpack.c.h.b16 %v415
  %v1657 = vunpack.c.l.b16 %v416
  %v1658 = vunpack.c.h.b16 %v416
  %v1659 = vunpack.c.l.b16 %v417
  %v1660 = vunpack.c.h.b16 %v417
  %v1661 = vunpack.c.l.b16 %v418
  %v1662 = vunpack.c.h.b16 %v418
  %v1663 = vunpack.c.l.b16 %v419
  %v1664 = vunpack.c.h.b16 %v419
  %v1665 = vunpack.c.l.b16 %v420
  %v1666 = vunpack.c.h.b16 %v420
  %v1667 = vunpack.c.l.b16 %v421
  %v1668 = vunpack.c.h.b16 %v421
  %v1669 = vunpack.c.l.b16 %v422
  %v1670 = vunpack.c.h.b16 %v422
  %v1671 = vunpack.c.l.b16 %v423
  %v1672 = vunpack.c.h.b16 %v423
  %v1673 = vunpack.c.l.b16 %v424
  %v1674 = vunpack.c.h.b16 %v424
  %v1675 = vunpack.c.l.b16 %v425
  %v1676 = vunpack.c.h.b16 %v425
  %v1677 = vunpack.c.l.b16 %v426
  %v1678 = vunpack.c.h.b16 %v426
  %v1679 = vunpack.c.l.b16 %v427
  %v1680 = vunpack.c.h.b16 %v427
  %v1681 = vunpack.c.l.b16 %v428
  %v1682 = vunpack.c.h.b16 %v428
  %v1683 = vunpack.c.l.b16 %v429
  %v1684 = vunpack.c.h.b16 %v429
  %v1685 = vunpack.c.l.b16 %v430
  %v1686 = vunpack.c.h.b16 %v430
  %v1687 = vunpack.c.l.b16 %v431
  %v1688 = vunpack.c.h.b16 %v431
  %v1689 = vunpack.c.l.b16 %v432
  %v1690 = vunpack.c.h.b16 %v432
  %v1691 = vunpack.c.l.b16 %v433
  %v1692 = vunpack.c.h.b16 %v433
  %v1693 = vunpack.c.l.b16 %v434
  %v1694 = vunpack.c.h.b16 %v434
  %v1695 = vunpack.c.l.b16 %v435
  %v1696 = vunpack.c.h.b16 %v435
  %v1697 = vunpack.c.l.b16 %v436
  %v1698 = vunpack.c.h.b16 %v436
  %v1699 = vunpack.c.l.b16 %v437
  %v1700 = vunpack.c.h.b16 %v437
  %v1701 = vunpack.c.l.b16 %v438
  %v1702 = vunpack.c.h.b16 %v438
  %v1703 = vunpack.c.l.b16 %v439
  %v1704 = vunpack.c.h.b16 %v439
  %v1705 = vunpack.c.l.b16 %v440
  %v1706 = vunpack.c.h.b16 %v440
  %v1707 = vunpack.c.l.b16 %v441
  %v1708 = vunpack.c.h.b16 %v441
  %v1709 = vunpack.c.l.b16 %v442
  %v1710 = vunpack.c.h.b16 %v442
  %v1711 = vunpack.c.l.b16 %v443
  %v1712 = vunpack.c.h.b16 %v443
  %v1713 = vunpack.c.l.b16 %v444
  %v1714 = vunpack.c.h.b16 %v444
  %v1715 = vunpack.c.l.b16 %v445
  %v1716 = vunpack.c.h.b16 %v445
  %v1717 = vunpack.c.l.b16 %v446
  %v1718 = vunpack.c.h.b16 %v446
  %v1719 = vunpack.c.l.b16 %v447
  %v1720 = vunpack.c.h.b16 %v447
  %v1721 = vunpack.c.l.b16 %v448
  %v1722 = vunpack.c.h.b16 %v448
  %v1723 = vunpack.c.l.b16 %v449
  %v1724 = vunpack.c.h.b16 %v449
  %v1725 = vunpack.c.l.b16 %v450
  %v1726 = vunpack.c.h.b16 %v450
  %v1727 = vunpack.c.l.b16 %v451
  %v1728 = vunpack.c.h.b16 %v451
  %v1729 = vunpack.c.l.b16 %v452
  %v1730 = vunpack.c.h.b16 %v452
  %v1731 = vunpack.c.l.b16 %v453
  %v1732 = vunpack.c.h.b16 %v453
  %v1733 = vunpack.c.l.b16 %v454
  %v1734 = vunpack.c.h.b16 %v454
  %v1735 = vunpack.c.l.b16 %v455
  %v1736 = vunpack.c.h.b16 %v455
  %v1737 = vunpack.c.l.b16 %v456
  %v1738 = vunpack.c.h.b16 %v456
  %v1739 = vunpack.c.l.b16 %v457
  %v1740 = vunpack.c.h.b16 %v457
  %v1741 = vunpack.c.l.b16 %v458
  %v1742 = vunpack.c.h.b16 %v458
  %v1743 = vunpack.c.l.b16 %v459
  %v1744 = vunpack.c.h.b16 %v459
  %v1745 = vunpack.c.l.b16 %v460
  %v1746 = vunpack.c.h.b16 %v460
  %v1747 = vunpack.c.l.b16 %v461
  %v1748 = vunpack.c.h.b16 %v461
  %v1749 = vunpack.c.l.b16 %v462
  %v1750 = vunpack.c.h.b16 %v462
  %v1751 = vunpack.c.l.b16 %v463
  %v1752 = vunpack.c.h.b16 %v463
  %v1753 = vunpack.c.l.b16 %v464
  %v1754 = vunpack.c.h.b16 %v464
  %v1755 = vunpack.c.l.b16 %v465
  %v1756 = vunpack.c.h.b16 %v465
  %v1757 = vunpack.c.l.b16 %v466
  %v1758 = vunpack.c.h.b16 %v466
  %v1759 = vunpack.c.l.b16 %v467
  %v1760 = vunpack.c.h.b16 %v467
  %v1761 = vunpack.c.l.b16 %v468
  %v1762 = vunpack.c.h.b16 %v468
  %v1763 = vunpack.c.l.b16 %v469
  %v1764 = vunpack.c.h.b16 %v469
  %v1765 = vunpack.c.l.b16 %v470
  %v1766 = vunpack.c.h.b16 %v470
  %v1767 = vpack.c.b16 %v1011, %v999
  %v1768 = vpack.c.b16 %v1012, %v1000
  %v1769 = vpack.c.b16 %v1013, %v1001
  %v1770 = vpack.c.b16 %v1014, %v1002
  %v1771 = vpack.c.b16 %v1015, %v1003
  %v1772 = vpack.c.b16 %v1016, %v1004
  %v1773 = vpack.c.b16 %v1017, %v1005
  %v1774 = vpack.c.b16 %v1018, %v1006
  %v1775 = vpack.c.b16 %v1019, %v1007
  %v1776 = vpack.c.b16 %v1020, %v1008
  %v1777 = vpack.c.b16 %v1021, %v1009
  %v1778 = vpack.c.b16 %v1022, %v1010
  %v1779 = vpack.c.b16 %v1035, %v1023
  %v1780 = vpack.c.b16 %v1036, %v1024
  %v1781 = vpack.c.b16 %v1037, %v1025
  %v1782 = vpack.c.b16 %v1038, %v1026
  %v1783 = vpack.c.b16 %v1039, %v1027
  %v1784 = vpack.c.b16 %v1040, %v1028
  %v1785 = vpack.c.b16 %v1041, %v1029
  %v1786 = vpack.c.b16 %v1042, %v1030
  %v1787 = vpack.c.b16 %v1043, %v1031
  %v1788 = vpack.c.b16 %v1044, %v1032
  %v1789 = vpack.c.b16 %v1045, %v1033
  %v1790 = vpack.c.b16 %v1046, %v1034
  %v1791 = vpack.c.b16 %v1059, %v1047
  %v1792 = vpack.c.b16 %v1060, %v1048
  %v1793 = vpack.c.b16 %v1061, %v1049
  %v1794 = vpack.c.b16 %v1062, %v1050
  %v1795 = vpack.c.b16 %v1063, %v1051
  %v1796 = vpack.c.b16 %v1064, %v1052
  %v1797 = vpack.c.b16 %v1065, %v1053
  %v1798 = vpack.c.b16 %v1066, %v1054
  %v1799 = vpack.c.b16 %v1067, %v1055
  %v1800 = vpack.c.b16 %v1068, %v1056
  %v1801 = vpack.c.b16 %v1069, %v1057
  %v1802 = vpack.c.b16 %v1070, %v1058
  %v1803 = vpack.c.b16 %v1083, %v1071
  %v1804 = vpack.c.b16 %v1084, %v1072
  %v1805 = vpack.c.b16 %v1085, %v1073
  %v1806 = vpack.c.b16 %v1086, %v1074
  %v1807 = vpack.c.b16 %v1087, %v1075
  %v1808 = vpack.c.b16 %v1088, %v1076
  %v1809 = vpack.c.b16 %v1089, %v1077
  %v1810 = vpack.c.b16 %v1090, %v1078
  %v1811 = vpack.c.b16 %v1091, %v1079
  %v1812 = vpack.c.b16 %v1092, %v1080
  %v1813 = vpack.c.b16 %v1093, %v1081
  %v1814 = vpack.c.b16 %v1094, %v1082
  %v1815 = vpack.c.b16 %v1107, %v1095
  %v1816 = vpack.c.b16 %v1108, %v1096
  %v1817 = vpack.c.b16 %v1109, %v1097
  %v1818 = vpack.c.b16 %v1110, %v1098
  %v1819 = vpack.c.b16 %v1111, %v1099
  %v1820 = vpack.c.b16 %v1112, %v1100
  %v1821 = vpack.c.b16 %v1113, %v1101
  %v1822 = vpack.c.b16 %v1114, %v1102
  %v1823 = vpack.c.b16 %v1115, %v1103
  %v1824 = vpack.c.b16 %v1116, %v1104
  %v1825 = vpack.c.b16 %v1117, %v1105
  %v1826 = vpack.c.b16 %v1118, %v1106
  %v1827 = vpack.c.b16 %v1131, %v1119
  %v1828 = vpack.c.b16 %v1132, %v1120
  %v1829 = vpack.c.b16 %v1133, %v1121
  %v1830 = vpack.c.b16 %v1134, %v1122
  %v1831 = vpack.c.b16 %v1135, %v1123
  %v1832 = vpack.c.b16 %v1136, %v1124
  %v1833 = vpack.c.b16 %v1137, %v1125
  %v1834 = vpack.c.b16 %v1138, %v1126
  %v1835 = vpack.c.b16 %v1139, %v1127
  %v1836 = vpack.c.b16 %v1140, %v1128
  %v1837 = vpack.c.b16 %v1141, %v1129
  %v1838 = vpack.c.b16 %v1142, %v1130
  %v1839 = vpack.c.b16 %v1155, %v1143
  %v1840 = vpack.c.b16 %v1156, %v1144
  %v1841 = vpack.c.b16 %v1157, %v1145
  %v1842 = vpack.c.b16 %v1158, %v1146
  %v1843 = vpack.c.b16 %v1159, %v1147
  %v1844 = vpack.c.b16 %v1160, %v1148
  %v1845 = vpack.c.b16 %v1161, %v1149
  %v1846 = vpack.c.b16 %v1162, %v1150
  %v1847 = vpack.c.b16 %v1163, %v1151
  %v1848 = vpack.c.b16 %v1164, %v1152
  %v1849 = vpack.c.b16 %v1165, %v1153
  %v1850 = vpack.c.b16 %v1166, %v1154
  %v1851 = vpack.c.b16 %v1179, %v1167
  %v1852 = vpack.c.b16 %v1180, %v1168
  %v1853 = vpack.c.b16 %v1181, %v1169
  %v1854 = vpack.c.b16 %v1182, %v1170
  %v1855 = vpack.c.b16 %v1183, %v1171
  %v1856 = vpack.c.b16 %v1184, %v1172
  %v1857 = vpack.c.b16 %v1185, %v1173
  %v1858 = vpack.c.b16 %v1186, %v1174
  %v1859 = vpack.c.b16 %v1187, %v1175
  %v1860 = vpack.c.b16 %v1188, %v1176
  %v1861 = vpack.c.b16 %v1189, %v1177
  %v1862 = vpack.c.b16 %v1190, %v1178
  %v1863 = vpack.c.b16 %v1203, %v1191
  %v1864 = vpack.c.b16 %v1204, %v1192
  %v1865 = vpack.c.b16 %v1205, %v1193
  %v1866 = vpack.c.b16 %v1206, %v1194
  %v1867 = vpack.c.b16 %v1207, %v1195
  %v1868 = vpack.c.b16 %v1208, %v1196
  %v1869 = vpack.c.b16 %v1209, %v1197
  %v1870 = vpack.c.b16 %v1210, %v1198
  %v1871 = vpack.c.b16 %v1211, %v1199
  %v1872 = vpack.c.b16 %v1212, %v1200
  %v1873 = vpack.c.b16 %v1213, %v1201
  %v1874 = vpack.c.b16 %v1214, %v1202
  %v1875 = vpack.c.b16 %v1227, %v1215
  %v1876 = vpack.c.b16 %v1228, %v1216
  %v1877 = vpack.c.b16 %v1229, %v1217
  %v1878 = vpack.c.b16 %v1230, %v1218
  %v1879 = vpack.c.b16 %v1231, %v1219
  %v1880 = vpack.c.b16 %v1232, %v1220
  %v1881 = vpack.c.b16 %v1233, %v1221
  %v1882 = vpack.c.b16 %v1234, %v1222
  %v1883 = vpack.c.b16 %v1235, %v1223
  %v1884 = vpack.c.b16 %v1236, %v1224
  %v1885 = vpack.c.b16 %v1237, %v1225
  %v1886 = vpack.c.b16 %v1238, %v1226
  %v1887 = vpack.c.b16 %v1251, %v1239
  %v1888 = vpack.c.b16 %v1252, %v1240
  %v1889 = vpack.c.b16 %v1253, %v1241
  %v1890 = vpack.c.b16 %v1254, %v1242
  %v1891 = vpack.c.b16 %v1255, %v1243
  %v1892 = vpack.c.b16 %v1256, %v1244
  %v1893 = vpack.c.b16 %v1257, %v1245
  %v1894 = vpack.c.b16 %v1258, %v1246
  %v1895 = vpack.c.b16 %v1259, %v1247
  %v1896 = vpack.c.b16 %v1260, %v1248
  %v1897 = vpack.c.b16 %v1261, %v1249
  %v1898 = vpack.c.b16 %v1262, %v1250
  %v1899 = vpack.c.b16 %v1275, %v1263
  %v1900 = vpack.c.b16 %v1276, %v1264
  %v1901 = vpack.c.b16 %v1277, %v1265
  %v1902 = vpack.c.b16 %v1278, %v1266
  %v1903 = vpack.c.b16 %v1279, %v1267
  %v1904 = vpack.c.b16 %v1280, %v1268
  %v1905 = vpack.c.b16 %v1281, %v1269
  %v1906 = vpack.c.b16 %v1282, %v1270
  %v1907 = vpack.c.b16 %v1283, %v1271
  %v1908 = vpack.c.b16 %v1284, %v1272
  %v1909 = vpack.c.b16 %v1285, %v1273
  %v1910 = vpack.c.b16 %v1286, %v1274
  %v1911 = vpack.c.b16 %v1299, %v1287
  %v1912 = vpack.c.b16 %v1300, %v1288
  %v1913 = vpack.c.b16 %v1301, %v1289
  %v1914 = vpack.c.b16 %v1302, %v1290
  %v1915 = vpack.c.b16 %v1303, %v1291
  %v1916 = vpack.c.b16 %v1304, %v1292
  %v1917 = vpack.c.b16 %v1305, %v1293
  %v1918 = vpack.c.b16 %v1306, %v1294
  %v1919 = vpack.c.b16 %v1307, %v1295
  %v1920 = vpack.c.b16 %v1308, %v1296
  %v1921 = vpack.c.b16 %v1309, %v1297
  %v1922 = vpack.c.b16 %v1310, %v1298
  %v1923 = vpack.c.b16 %v1323, %v1311
  %v1924 = vpack.c.b16 %v1324, %v1312
  %v1925 = vpack.c.b16 %v1325, %v1313
  %v1926 = vpack.c.b16 %v1326, %v1314
  %v1927 = vpack.c.b16 %v1327, %v1315
  %v1928 = vpack.c.b16 %v1328, %v1316
  %v1929 = vpack.c.b16 %v1329, %v1317
  %v1930 = vpack.c.b16 %v1330, %v1318
  %v1931 = vpack.c.b16 %v1331, %v1319
  %v1932 = vpack.c.b16 %v1332, %v1320
  %v1933 = vpack.c.b16 %v1333, %v1321
  %v1934 = vpack.c.b16 %v1334, %v1322
  %v1935 = vpack.c.b16 %v1347, %v1335
  %v1936 = vpack.c.b16 %v1348, %v1336
  %v1937 = vpack.c.b16 %v1349, %v1337
  %v1938 = vpack.c.b16 %v1350, %v1338
  %v1939 = vpack.c.b16 %v1351, %v1339
  %v1940 = vpack.c.b16 %v1352, %v1340
  %v1941 = vpack.c.b16 %v1353, %v1341
  %v1942 = vpack.c.b16 %v1354, %v1342
  %v1943 = vpack.c.b16 %v1355, %v1343
  %v1944 = vpack.c.b16 %v1356, %v1344
  %v1945 = vpack.c.b16 %v1357, %v1345
  %v1946 = vpack.c.b16 %v1358, %v1346
  %v1947 = vpack.c.b16 %v1371, %v1359
  %v1948 = vpack.c.b16 %v1372, %v1360
  %v1949 = vpack.c.b16 %v1373, %v1361
  %v1950 = vpack.c.b16 %v1374, %v1362
  %v1951 = vpack.c.b16 %v1375, %v1363
  %v1952 = vpack.c.b16 %v1376, %v1364
  %v1953 = vpack.c.b16 %v1377, %v1365
  %v1954 = vpack.c.b16 %v1378, %v1366
  %v1955 = vpack.c.b16 %v1379, %v1367
  %v1956 = vpack.c.b16 %v1380, %v1368
  %v1957 = vpack.c.b16 %v1381, %v1369
  %v1958 = vpack.c.b16 %v1382, %v1370
  %v1959 = vpack.c.b16 %v1395, %v1383
  %v1960 = vpack.c.b16 %v1396, %v1384
  %v1961 = vpack.c.b16 %v1397, %v1385
  %v1962 = vpack.c.b16 %v1398, %v1386
  %v1963 = vpack.c.b16 %v1399, %v1387
  %v1964 = vpack.c.b16 %v1400, %v1388
  %v1965 = vpack.c.b16 %v1401, %v1389
  %v1966 = vpack.c.b16 %v1402, %v1390
  %v1967 = vpack.c.b16 %v1403, %v1391
  %v1968 = vpack.c.b16 %v1404, %v1392
  %v1969 = vpack.c.b16 %v1405, %v1393
  %v1970 = vpack.c.b16 %v1406, %v1394
  %v1971 = vpack.c.b16 %v1419, %v1407
  %v1972 = vpack.c.b16 %v1420, %v1408
  %v1973 = vpack.c.b16 %v1421, %v1409
  %v1974 = vpack.c.b16 %v1422, %v1410
  %v1975 = vpack.c.b16 %v1423, %v1411
  %v1976 = vpack.c.b16 %v1424, %v1412
  %v1977 = vpack.c.b16 %v1425, %v1413
  %v1978 = vpack.c.b16 %v1426, %v1414
  %v1979 = vpack.c.b16 %v1427, %v1415
  %v1980 = vpack.c.b16 %v1428, %v1416
  %v1981 = vpack.c.b16 %v1429, %v1417
  %v1982 = vpack.c.b16 %v1430, %v1418
  %v1983 = vpack.c.b16 %v1443, %v1431
  %v1984 = vpack.c.b16 %v1444, %v1432
  %v1985 = vpack.c.b16 %v1445, %v1433
  %v1986 = vpack.c.b16 %v1446, %v1434
  %v1987 = vpack.c.b16 %v1447, %v1435
  %v1988 = vpack.c.b16 %v1448, %v1436
  %v1989 = vpack.c.b16 %v1449, %v1437
  %v1990 = vpack.c.b16 %v1450, %v1438
  %v1991 = vpack.c.b16 %v1451, %v1439
  %v1992 = vpack.c.b16 %v1452, %v1440
  %v1993 = vpack.c.b16 %v1453, %v1441
  %v1994 = vpack.c.b16 %v1454, %v1442
  %v1995 = vpack.c.b16 %v1467, %v1455
  %v1996 = vpack.c.b16 %v1468, %v1456
  %v1997 = vpack.c.b16 %v1469, %v1457
  %v1998 = vpack.c.b16 %v1470, %v1458
  %v1999 = vpack.c.b16 %v1471, %v1459
  %v2000 = vpack.c.b16 %v1472, %v1460
  %v2001 = vpack.c.b16 %v1473, %v1461
  %v2002 = vpack.c.b16 %v1474, %v1462
  %v2003 = vpack.c.b16 %v1475, %v1463
  %v2004 = vpack.c.b16 %v1476, %v1464
  %v2005 = vpack.c.b16 %v1477, %v1465
  %v2006 = vpack.c.b16 %v1478, %v1466
  %v2007 = vpack.c.b16 %v1491, %v1479
  %v2008 = vpack.c.b16 %v1492, %v1480
  %v2009 = vpack.c.b16 %v1493, %v1481
  %v2010 = vpack.c.b16 %v1494, %v1482
  %v2011 = vpack.c.b16 %v1495, %v1483
  %v2012 = vpack.c.b16 %v1496, %v1484
  %v2013 = vpack.c.b16 %v1497, %v1485
  %v2014 = vpack.c.b16 %v1498, %v1486
  %v2015 = vpack.c.b16 %v1499, %v1487
  %v2016 = vpack.c.b16 %v1500, %v1488
  %v2017 = vpack.c.b16 %v1501, %v1489
  %v2018 = vpack.c.b16 %v1502, %v1490
  %v2019 = vpack.c.b16 %v1515, %v1503
  %v2020 = vpack.c.b16 %v1516, %v1504
  %v2021 = vpack.c.b16 %v1517, %v1505
  %v2022 = vpack.c.b16 %v1518, %v1506
  %v2023 = vpack.c.b16 %v1519, %v1507
  %v2024 = vpack.c.b16 %v1520, %v1508
  %v2025 = vpack.c.b16 %v1521, %v1509
  %v2026 = vpack.c.b16 %v1522, %v1510
  %v2027 = vpack.c.b16 %v1523, %v1511
  %v2028 = vpack.c.b16 %v1524, %v1512
  %v2029 = vpack.c.b16 %v1525, %v1513
  %v2030 = vpack.c.b16 %v1526, %v1514
  %v2031 = vpack.c.b16 %v1539, %v1527
  %v2032 = vpack.c.b16 %v1540, %v1528
  %v2033 = vpack.c.b16 %v1541, %v1529
  %v2034 = vpack.c.b16 %v1542, %v1530
  %v2035 = vpack.c.b16 %v1543, %v1531
  %v2036 = vpack.c.b16 %v1544, %v1532
  %v2037 = vpack.c.b16 %v1545, %v1533
  %v2038 = vpack.c.b16 %v1546, %v1534
  %v2039 = vpack.c.b16 %v1547, %v1535
  %v2040 = vpack.c.b16 %v1548, %v1536
  %v2041 = vpack.c.b16 %v1549, %v1537
  %v2042 = vpack.c.b16 %v1550, %v1538
  %v2043 = vpack.c.b16 %v1563, %v1551
  %v2044 = vpack.c.b16 %v1564, %v1552
  %v2045 = vpack.c.b16 %v1565, %v1553
  %v2046 = vpack.c.b16 %v1566, %v1554
  %v2047 = vpack.c.b16 %v1567, %v1555
  %v2048 = vpack.c.b16 %v1568, %v1556
  %v2049 = vpack.c.b16 %v1569, %v1557
  %v2050 = vpack.c.b16 %v1570, %v1558
  %v2051 = vpack.c.b16 %v1571, %v1559
  %v2052 = vpack.c.b16 %v1572, %v1560
  %v2053 = vpack.c.b16 %v1573, %v1561
  %v2054 = vpack.c.b16 %v1574, %v1562
  %v2055 = vpack.c.b16 %v1587, %v1575
  %v2056 = vpack.c.b16 %v1588, %v1576
  %v2057 = vpack.c.b16 %v1589, %v1577
  %v2058 = vpack.c.b16 %v1590, %v1578
  %v2059 = vpack.c.b16 %v1591, %v1579
  %v2060 = vpack.c.b16 %v1592, %v1580
  %v2061 = vpack.c.b16 %v1593, %v1581
  %v2062 = vpack.c.b16 %v1594, %v1582
  %v2063 = vpack.c.b16 %v1595, %v1583
  %v2064 = vpack.c.b16 %v1596, %v1584
  %v2065 = vpack.c.b16 %v1597, %v1585
  %v2066 = vpack.c.b16 %v1598, %v1586
  %v2067 = vpack.c.b16 %v1611, %v1599
  %v2068 = vpack.c.b16 %v1612, %v1600
  %v2069 = vpack.c.b16 %v1613, %v1601
  %v2070 = vpack.c.b16 %v1614, %v1602
  %v2071 = vpack.c.b16 %v1615, %v1603
  %v2072 = vpack.c.b16 %v1616, %v1604
  %v2073 = vpack.c.b16 %v1617, %v1605
  %v2074 = vpack.c.b16 %v1618, %v1606
  %v2075 = vpack.c.b16 %v1619, %v1607
  %v2076 = vpack.c.b16 %v1620, %v1608
  %v2077 = vpack.c.b16 %v1621, %v1609
  %v2078 = vpack.c.b16 %v1622, %v1610
  %v2079 = vpack.c.b16 %v1635, %v1623
  %v2080 = vpack.c.b16 %v1636, %v1624
  %v2081 = vpack.c.b16 %v1637, %v1625
  %v2082 = vpack.c.b16 %v1638, %v1626
  %v2083 = vpack.c.b16 %v1639, %v1627
  %v2084 = vpack.c.b16 %v1640, %v1628
  %v2085 = vpack.c.b16 %v1641, %v1629
  %v2086 = vpack.c.b16 %v1642, %v1630
  %v2087 = vpack.c.b16 %v1643, %v1631
  %v2088 = vpack.c.b16 %v1644, %v1632
  %v2089 = vpack.c.b16 %v1645, %v1633
  %v2090 = vpack.c.b16 %v1646, %v1634
  %v2091 = vpack.c.b16 %v1659, %v1647
  %v2092 = vpack.c.b16 %v1660, %v1648
  %v2093 = vpack.c.b16 %v1661, %v1649
  %v2094 = vpack.c.b16 %v1662, %v1650
  %v2095 = vpack.c.b16 %v1663, %v1651
  %v2096 = vpack.c.b16 %v1664, %v1652
  %v2097 = vpack.c.b16 %v1665, %v1653
  %v2098 = vpack.c.b16 %v1666, %v1654
  %v2099 = vpack.c.b16 %v1667, %v1655
  %v2100 = vpack.c.b16 %v1668, %v1656
  %v2101 = vpack.c.b16 %v1669, %v1657
  %v2102 = vpack.c.b16 %v1670, %v1658
  %v2103 = vpack.c.b16 %v1683, %v1671
  %v2104 = vpack.c.b16 %v1684, %v1672
  %v2105 = vpack.c.b16 %v1685, %v1673
  %v2106 = vpack.c.b16 %v1686, %v1674
  %v2107 = vpack.c.b16 %v1687, %v1675
  %v2108 = vpack.c.b16 %v1688, %v1676
  %v2109 = vpack.c.b16 %v1689, %v1677
  %v2110 = vpack.c.b16 %v1690, %v1678
  %v2111 = vpack.c.b16 %v1691, %v1679
  %v2112 = vpack.c.b16 %v1692, %v1680
  %v2113 = vpack.c.b16 %v1693, %v1681
  %v2114 = vpack.c.b16 %v1694, %v1682
  %v2115 = vpack.c.b16 %v1707, %v1695
  %v2116 = vpack.c.b16 %v1708, %v1696
  %v2117 = vpack.c.b16 %v1709, %v1697
  %v2118 = vpack.c.b16 %v1710, %v1698
  %v2119 = vpack.c.b16 %v1711, %v1699
  %v2120 = vpack.c.b16 %v1712, %v1700
  %v2121 = vpack.c.b16 %v1713, %v1701
  %v2122 = vpack.c.b16 %v1714, %v1702
  %v2123 = vpack.c.b16 %v1715, %v1703
  %v2124 = vpack.c.b16 %v1716, %v1704
  %v2125 = vpack.c.b16 %v1717, %v1705
  %v2126 = vpack.c.b16 %v1718, %v1706
  %v2127 = vpack.c.b16 %v1731, %v1719
  %v2128 = vpack.c.b16 %v1732, %v1720
  %v2129 = vpack.c.b16 %v1733, %v1721
  %v2130 = vpack.c.b16 %v1734, %v1722
  %v2131 = vpack.c.b16 %v1735, %v1723
  %v2132 = vpack.c.b16 %v1736, %v1724
  %v2133 = vpack.c.b16 %v1737, %v1725
  %v2134 = vpack.c.b16 %v1738, %v1726
  %v2135 = vpack.c.b16 %v1739, %v1727
  %v2136 = vpack.c.b16 %v1740, %v1728
  %v2137 = vpack.c.b16 %v1741, %v1729
  %v2138 = vpack.c.b16 %v1742, %v1730
  %v2139 = vpack.c.b16 %v1755, %v1743
  %v2140 = vpack.c.b16 %v1756, %v1744
  %v2141 = vpack.c.b16 %v1757, %v1745
  %v2142 = vpack.c.b16 %v1758, %v1746
  %v2143 = vpack.c.b16 %v1759, %v1747
  %v2144 = vpack.c.b16 %v1760, %v1748
  %v2145 = vpack.c.b16 %v1761, %v1749
  %v2146 = vpack.c.b16 %v1762, %v1750
  %v2147 = vpack.c.b16 %v1763, %v1751
  %v2148 = vpack.c.b16 %v1764, %v1752
  %v2149 = vpack.c.b16 %v1765, %v1753
  %v2150 = vpack.c.b16 %v1766, %v1754
  %2535 = vmatprep.subr.bf16.mxu0 %v1768
  %2536 = vmatpush1.bf16.msra.mxu0 %v1767
  %2537 = vmatprep.subr.bf16.mxu0 %v1780
  %2538 = vmatpush1.bf16.msra.mxu0 %v1779
  %2539 = vmatprep.subr.bf16.mxu0 %v1792
  %2540 = vmatpush1.bf16.msra.mxu0 %v1791
  %2541 = vmatprep.subr.bf16.mxu0 %v1804
  %2542 = vmatpush1.bf16.msra.mxu0 %v1803
  %2543 = vmatprep.subr.bf16.mxu0 %v1816
  %2544 = vmatpush1.bf16.msra.mxu0 %v1815
  %2545 = vmatprep.subr.bf16.mxu0 %v1828
  %2546 = vmatpush1.bf16.msra.mxu0 %v1827
  %2547 = vmatprep.subr.bf16.mxu0 %v1840
  %2548 = vmatpush1.bf16.msra.mxu0 %v1839
  %2549 = vmatprep.subr.bf16.mxu0 %v1852
  %2550 = vmatpush1.bf16.msra.mxu0 %v1851
  %2551 = vmatprep.subr.bf16.mxu0 %v1864
  %2552 = vmatpush1.bf16.msra.mxu0 %v1863
  %2553 = vmatprep.subr.bf16.mxu0 %v1876
  %2554 = vmatpush1.bf16.msra.mxu0 %v1875
  %2555 = vmatprep.subr.bf16.mxu0 %v1888
  %2556 = vmatpush1.bf16.msra.mxu0 %v1887
  %2557 = vmatprep.subr.bf16.mxu0 %v1900
  %2558 = vmatpush1.bf16.msra.mxu0 %v1899
  %2559 = vmatprep.subr.bf16.mxu0 %v1912
  %2560 = vmatpush1.bf16.msra.mxu0 %v1911
  %2561 = vmatprep.subr.bf16.mxu0 %v1924
  %2562 = vmatpush1.bf16.msra.mxu0 %v1923
  %2563 = vmatprep.subr.bf16.mxu0 %v1936
  %2564 = vmatpush1.bf16.msra.mxu0 %v1935
  %2565 = vmatprep.subr.bf16.mxu0 %v1948
  %2566 = vmatpush1.bf16.msra.mxu0 %v1947
  %2567 = vmatprep.mubr.bf16.mxu0 %v584
  %2568 = vmatmul.mubr.bf16.gmra.mrb[0].mxu0 %v583
  %v2569 = vpop.f32.mrb[0].mxu0
  %v2570 = vadd.f32 %v478, %v2569
  %v2571 = vpop.f32.mrb[0].mxu0
  %v2572 = vadd.f32 %v482, %v2571
  %v2573 = vpop.f32.mrb[0].mxu0
  %v2574 = vadd.f32 %v478, %v2573
  %v2575 = vpop.f32.mrb[0].mxu0
  %v2576 = vadd.f32 %v482, %v2575
  %2577 = vmatprep.mubr.bf16.mxu0 %v588
  %2578 = vmatmul.mubr.bf16.gmra.mrb[0].mxu0 %v587
  %v2579 = vpop.f32.mrb[0].mxu0
  %v2580 = vadd.f32 %v478, %v2579
  %v2581 = vpop.f32.mrb[0].mxu0
  %v2582 = vadd.f32 %v482, %v2581
  %v2583 = vpop.f32.mrb[0].mxu0
  %v2584 = vadd.f32 %v478, %v2583
  %v2585 = vpop.f32.mrb[0].mxu0
  %v2586 = vadd.f32 %v482, %v2585
  %2587 = vmatprep.mubr.bf16.mxu0 %v592
  %2588 = vmatmul.mubr.bf16.gmra.mrb[0].mxu0 %v591
  %v2589 = vpop.f32.mrb[0].mxu0
  %v2590 = vadd.f32 %v478, %v2589
  %v2591 = vpop.f32.mrb[0].mxu0
  %v2592 = vadd.f32 %v482, %v2591
  %v2593 = vpop.f32.mrb[0].mxu0
  %v2594 = vadd.f32 %v478, %v2593
  %v2595 = vpop.f32.mrb[0].mxu0
  %v2596 = vadd.f32 %v482, %v2595
  %2597 = vmatprep.mubr.bf16.mxu0 %v596
  %2598 = vmatmul.mubr.bf16.gmra.mrb[0].mxu0 %v595
  %v2599 = vpop.f32.mrb[0].mxu0
  %v2600 = vadd.f32 %v478, %v2599
  %v2601 = vpop.f32.mrb[0].mxu0
  %v2602 = vadd.f32 %v482, %v2601
  %v2603 = vpop.f32.mrb[0].mxu0
  %v2604 = vadd.f32 %v478, %v2603
  %v2605 = vpop.f32.mrb[0].mxu0
  %v2606 = vadd.f32 %v482, %v2605
  %2607 = vdwg.mxu0
  %2608 = vmatprep.subr.bf16.mxu0 %v1960
  %2609 = vmatpush1.bf16.msra.mxu0 %v1959
  %2610 = vmatprep.subr.bf16.mxu0 %v1972
  %2611 = vmatpush1.bf16.msra.mxu0 %v1971
  %2612 = vmatprep.subr.bf16.mxu0 %v1984
  %2613 = vmatpush1.bf16.msra.mxu0 %v1983
  %2614 = vmatprep.subr.bf16.mxu0 %v1996
  %2615 = vmatpush1.bf16.msra.mxu0 %v1995
  %2616 = vmatprep.subr.bf16.mxu0 %v2008
  %2617 = vmatpush1.bf16.msra.mxu0 %v2007
  %2618 = vmatprep.subr.bf16.mxu0 %v2020
  %2619 = vmatpush1.bf16.msra.mxu0 %v2019
  %2620 = vmatprep.subr.bf16.mxu0 %v2032
  %2621 = vmatpush1.bf16.msra.mxu0 %v2031
  %2622 = vmatprep.subr.bf16.mxu0 %v2044
  %2623 = vmatpush1.bf16.msra.mxu0 %v2043
  %2624 = vmatprep.subr.bf16.mxu0 %v2056
  %2625 = vmatpush1.bf16.msra.mxu0 %v2055
  %2626 = vmatprep.subr.bf16.mxu0 %v2068
  %2627 = vmatpush1.bf16.msra.mxu0 %v2067
  %2628 = vmatprep.subr.bf16.mxu0 %v2080
  %2629 = vmatpush1.bf16.msra.mxu0 %v2079
  %2630 = vmatprep.subr.bf16.mxu0 %v2092
  %2631 = vmatpush1.bf16.msra.mxu0 %v2091
  %2632 = vmatprep.subr.bf16.mxu0 %v2104
  %2633 = vmatpush1.bf16.msra.mxu0 %v2103
  %2634 = vmatprep.subr.bf16.mxu0 %v2116
  %2635 = vmatpush1.bf16.msra.mxu0 %v2115
  %2636 = vmatprep.subr.bf16.mxu0 %v2128
  %2637 = vmatpush1.bf16.msra.mxu0 %v2127
  %2638 = vmatprep.subr.bf16.mxu0 %v2140
  %2639 = vmatpush1.bf16.msra.mxu0 %v2139
  %2640 = vmatprep.mubr.bf16.mxu0 %v586
  %2641 = vmatmul.mubr.bf16.gmra.mrb[0].mxu0 %v585
  %v2642 = vpop.f32.mrb[0].mxu0
  %v2643 = vadd.f32 %v2570, %v2642
  %v2644 = vpop.f32.mrb[0].mxu0
  %v2645 = vadd.f32 %v2572, %v2644
  %v2646 = vpop.f32.mrb[0].mxu0
  %v2647 = vadd.f32 %v2574, %v2646
  %v2648 = vpop.f32.mrb[0].mxu0
  %v2649 = vadd.f32 %v2576, %v2648
  %2650 = vmatprep.mubr.bf16.mxu0 %v590
  %2651 = vmatmul.mubr.bf16.gmra.mrb[0].mxu0 %v589
  %v2652 = vpop.f32.mrb[0].mxu0
  %v2653 = vadd.f32 %v2580, %v2652
  %v2654 = vpop.f32.mrb[0].mxu0
  %v2655 = vadd.f32 %v2582, %v2654
  %v2656 = vpop.f32.mrb[0].mxu0
  %v2657 = vadd.f32 %v2584, %v2656
  %v2658 = vpop.f32.mrb[0].mxu0
  %v2659 = vadd.f32 %v2586, %v2658
  %2660 = vmatprep.mubr.bf16.mxu0 %v594
  %2661 = vmatmul.mubr.bf16.gmra.mrb[0].mxu0 %v593
  %v2662 = vpop.f32.mrb[0].mxu0
  %v2663 = vadd.f32 %v2590, %v2662
  %v2664 = vpop.f32.mrb[0].mxu0
  %v2665 = vadd.f32 %v2592, %v2664
  %v2666 = vpop.f32.mrb[0].mxu0
  %v2667 = vadd.f32 %v2594, %v2666
  %v2668 = vpop.f32.mrb[0].mxu0
  %v2669 = vadd.f32 %v2596, %v2668
  %2670 = vmatprep.mubr.bf16.mxu0 %v598
  %2671 = vmatmul.mubr.bf16.gmra.mrb[0].mxu0 %v597
  %v2672 = vpop.f32.mrb[0].mxu0
  %v2673 = vadd.f32 %v2600, %v2672
  %v2674 = vpop.f32.mrb[0].mxu0
  %v2675 = vadd.f32 %v2602, %v2674
  %v2676 = vpop.f32.mrb[0].mxu0
  %v2677 = vadd.f32 %v2604, %v2676
  %v2678 = vpop.f32.mrb[0].mxu0
  %v2679 = vadd.f32 %v2606, %v2678
  %2680 = vdwg.mxu0
  %2681 = vmatprep.subr.bf16.mxu0 %v1770
  %2682 = vmatpush1.bf16.msra.mxu0 %v1769
  %2683 = vmatprep.subr.bf16.mxu0 %v1782
  %2684 = vmatpush1.bf16.msra.mxu0 %v1781
  %2685 = vmatprep.subr.bf16.mxu0 %v1794
  %2686 = vmatpush1.bf16.msra.mxu0 %v1793
  %2687 = vmatprep.subr.bf16.mxu0 %v1806
  %2688 = vmatpush1.bf16.msra.mxu0 %v1805
  %2689 = vmatprep.subr.bf16.mxu0 %v1818
  %2690 = vmatpush1.bf16.msra.mxu0 %v1817
  %2691 = vmatprep.subr.bf16.mxu0 %v1830
  %2692 = vmatpush1.bf16.msra.mxu0 %v1829
  %2693 = vmatprep.subr.bf16.mxu0 %v1842
  %2694 = vmatpush1.bf16.msra.mxu0 %v1841
  %2695 = vmatprep.subr.bf16.mxu0 %v1854
  %2696 = vmatpush1.bf16.msra.mxu0 %v1853
  %2697 = vmatprep.subr.bf16.mxu0 %v1866
  %2698 = vmatpush1.bf16.msra.mxu0 %v1865
  %2699 = vmatprep.subr.bf16.mxu0 %v1878
  %2700 = vmatpush1.bf16.msra.mxu0 %v1877
  %2701 = vmatprep.subr.bf16.mxu0 %v1890
  %2702 = vmatpush1.bf16.msra.mxu0 %v1889
  %2703 = vmatprep.subr.bf16.mxu0 %v1902
  %2704 = vmatpush1.bf16.msra.mxu0 %v1901
  %2705 = vmatprep.subr.bf16.mxu0 %v1914
  %2706 = vmatpush1.bf16.msra.mxu0 %v1913
  %2707 = vmatprep.subr.bf16.mxu0 %v1926
  %2708 = vmatpush1.bf16.msra.mxu0 %v1925
  %2709 = vmatprep.subr.bf16.mxu0 %v1938
  %2710 = vmatpush1.bf16.msra.mxu0 %v1937
  %2711 = vmatprep.subr.bf16.mxu0 %v1950
  %2712 = vmatpush1.bf16.msra.mxu0 %v1949
  %2713 = vmatprep.mubr.bf16.mxu0 %v584
  %2714 = vmatmul.mubr.bf16.gmra.mrb[0].mxu0 %v583
  %v2715 = vpop.f32.mrb[0].mxu0
  %v2716 = vadd.f32 %v486, %v2715
  %v2717 = vpop.f32.mrb[0].mxu0
  %v2718 = vadd.f32 %v490, %v2717
  %v2719 = vpop.f32.mrb[0].mxu0
  %v2720 = vadd.f32 %v486, %v2719
  %v2721 = vpop.f32.mrb[0].mxu0
  %v2722 = vadd.f32 %v490, %v2721
  %2723 = vmatprep.mubr.bf16.mxu0 %v588
  %2724 = vmatmul.mubr.bf16.gmra.mrb[0].mxu0 %v587
  %v2725 = vpop.f32.mrb[0].mxu0
  %v2726 = vadd.f32 %v486, %v2725
  %v2727 = vpop.f32.mrb[0].mxu0
  %v2728 = vadd.f32 %v490, %v2727
  %v2729 = vpop.f32.mrb[0].mxu0
  %v2730 = vadd.f32 %v486, %v2729
  %v2731 = vpop.f32.mrb[0].mxu0
  %v2732 = vadd.f32 %v490, %v2731
  %2733 = vmatprep.mubr.bf16.mxu0 %v592
  %2734 = vmatmul.mubr.bf16.gmra.mrb[0].mxu0 %v591
  %v2735 = vpop.f32.mrb[0].mxu0
  %v2736 = vadd.f32 %v486, %v2735
  %v2737 = vpop.f32.mrb[0].mxu0
  %v2738 = vadd.f32 %v490, %v2737
  %v2739 = vpop.f32.mrb[0].mxu0
  %v2740 = vadd.f32 %v486, %v2739
  %v2741 = vpop.f32.mrb[0].mxu0
  %v2742 = vadd.f32 %v490, %v2741
  %2743 = vmatprep.mubr.bf16.mxu0 %v596
  %2744 = vmatmul.mubr.bf16.gmra.mrb[0].mxu0 %v595
  %v2745 = vpop.f32.mrb[0].mxu0
  %v2746 = vadd.f32 %v486, %v2745
  %v2747 = vpop.f32.mrb[0].mxu0
  %v2748 = vadd.f32 %v490, %v2747
  %v2749 = vpop.f32.mrb[0].mxu0
  %v2750 = vadd.f32 %v486, %v2749
  %v2751 = vpop.f32.mrb[0].mxu0
  %v2752 = vadd.f32 %v490, %v2751
  %2753 = vdwg.mxu0
  %2754 = vmatprep.subr.bf16.mxu0 %v1962
  %2755 = vmatpush1.bf16.msra.mxu0 %v1961
  %2756 = vmatprep.subr.bf16.mxu0 %v1974
  %2757 = vmatpush1.bf16.msra.mxu0 %v1973
  %2758 = vmatprep.subr.bf16.mxu0 %v1986
  %2759 = vmatpush1.bf16.msra.mxu0 %v1985
  %2760 = vmatprep.subr.bf16.mxu0 %v1998
  %2761 = vmatpush1.bf16.msra.mxu0 %v1997
  %2762 = vmatprep.subr.bf16.mxu0 %v2010
  %2763 = vmatpush1.bf16.msra.mxu0 %v2009
  %2764 = vmatprep.subr.bf16.mxu0 %v2022
  %2765 = vmatpush1.bf16.msra.mxu0 %v2021
  %2766 = vmatprep.subr.bf16.mxu0 %v2034
  %2767 = vmatpush1.bf16.msra.mxu0 %v2033
  %2768 = vmatprep.subr.bf16.mxu0 %v2046
  %2769 = vmatpush1.bf16.msra.mxu0 %v2045
  %2770 = vmatprep.subr.bf16.mxu0 %v2058
  %2771 = vmatpush1.bf16.msra.mxu0 %v2057
  %2772 = vmatprep.subr.bf16.mxu0 %v2070
  %2773 = vmatpush1.bf16.msra.mxu0 %v2069
  %2774 = vmatprep.subr.bf16.mxu0 %v2082
  %2775 = vmatpush1.bf16.msra.mxu0 %v2081
  %2776 = vmatprep.subr.bf16.mxu0 %v2094
  %2777 = vmatpush1.bf16.msra.mxu0 %v2093
  %2778 = vmatprep.subr.bf16.mxu0 %v2106
  %2779 = vmatpush1.bf16.msra.mxu0 %v2105
  %2780 = vmatprep.subr.bf16.mxu0 %v2118
  %2781 = vmatpush1.bf16.msra.mxu0 %v2117
  %2782 = vmatprep.subr.bf16.mxu0 %v2130
  %2783 = vmatpush1.bf16.msra.mxu0 %v2129
  %2784 = vmatprep.subr.bf16.mxu0 %v2142
  %2785 = vmatpush1.bf16.msra.mxu0 %v2141
  %2786 = vmatprep.mubr.bf16.mxu0 %v586
  %2787 = vmatmul.mubr.bf16.gmra.mrb[0].mxu0 %v585
  %v2788 = vpop.f32.mrb[0].mxu0
  %v2789 = vadd.f32 %v2716, %v2788
  %v2790 = vpop.f32.mrb[0].mxu0
  %v2791 = vadd.f32 %v2718, %v2790
  %v2792 = vpop.f32.mrb[0].mxu0
  %v2793 = vadd.f32 %v2720, %v2792
  %v2794 = vpop.f32.mrb[0].mxu0
  %v2795 = vadd.f32 %v2722, %v2794
  %2796 = vmatprep.mubr.bf16.mxu0 %v590
  %2797 = vmatmul.mubr.bf16.gmra.mrb[0].mxu0 %v589
  %v2798 = vpop.f32.mrb[0].mxu0
  %v2799 = vadd.f32 %v2726, %v2798
  %v2800 = vpop.f32.mrb[0].mxu0
  %v2801 = vadd.f32 %v2728, %v2800
  %v2802 = vpop.f32.mrb[0].mxu0
  %v2803 = vadd.f32 %v2730, %v2802
  %v2804 = vpop.f32.mrb[0].mxu0
  %v2805 = vadd.f32 %v2732, %v2804
  %2806 = vmatprep.mubr.bf16.mxu0 %v594
  %2807 = vmatmul.mubr.bf16.gmra.mrb[0].mxu0 %v593
  %v2808 = vpop.f32.mrb[0].mxu0
  %v2809 = vadd.f32 %v2736, %v2808
  %v2810 = vpop.f32.mrb[0].mxu0
  %v2811 = vadd.f32 %v2738, %v2810
  %v2812 = vpop.f32.mrb[0].mxu0
  %v2813 = vadd.f32 %v2740, %v2812
  %v2814 = vpop.f32.mrb[0].mxu0
  %v2815 = vadd.f32 %v2742, %v2814
  %2816 = vmatprep.mubr.bf16.mxu0 %v598
  %2817 = vmatmul.mubr.bf16.gmra.mrb[0].mxu0 %v597
  %v2818 = vpop.f32.mrb[0].mxu0
  %v2819 = vadd.f32 %v2746, %v2818
  %v2820 = vpop.f32.mrb[0].mxu0
  %v2821 = vadd.f32 %v2748, %v2820
  %v2822 = vpop.f32.mrb[0].mxu0
  %v2823 = vadd.f32 %v2750, %v2822
  %v2824 = vpop.f32.mrb[0].mxu0
  %v2825 = vadd.f32 %v2752, %v2824
  %2826 = vdwg.mxu0
  %2827 = vmatprep.subr.bf16.mxu0 %v1772
  %2828 = vmatpush1.bf16.msra.mxu0 %v1771
  %2829 = vmatprep.subr.bf16.mxu0 %v1784
  %2830 = vmatpush1.bf16.msra.mxu0 %v1783
  %2831 = vmatprep.subr.bf16.mxu0 %v1796
  %2832 = vmatpush1.bf16.msra.mxu0 %v1795
  %2833 = vmatprep.subr.bf16.mxu0 %v1808
  %2834 = vmatpush1.bf16.msra.mxu0 %v1807
  %2835 = vmatprep.subr.bf16.mxu0 %v1820
  %2836 = vmatpush1.bf16.msra.mxu0 %v1819
  %2837 = vmatprep.subr.bf16.mxu0 %v1832
  %2838 = vmatpush1.bf16.msra.mxu0 %v1831
  %2839 = vmatprep.subr.bf16.mxu0 %v1844
  %2840 = vmatpush1.bf16.msra.mxu0 %v1843
  %2841 = vmatprep.subr.bf16.mxu0 %v1856
  %2842 = vmatpush1.bf16.msra.mxu0 %v1855
  %2843 = vmatprep.subr.bf16.mxu0 %v1868
  %2844 = vmatpush1.bf16.msra.mxu0 %v1867
  %2845 = vmatprep.subr.bf16.mxu0 %v1880
  %2846 = vmatpush1.bf16.msra.mxu0 %v1879
  %2847 = vmatprep.subr.bf16.mxu0 %v1892
  %2848 = vmatpush1.bf16.msra.mxu0 %v1891
  %2849 = vmatprep.subr.bf16.mxu0 %v1904
  %2850 = vmatpush1.bf16.msra.mxu0 %v1903
  %2851 = vmatprep.subr.bf16.mxu0 %v1916
  %2852 = vmatpush1.bf16.msra.mxu0 %v1915
  %2853 = vmatprep.subr.bf16.mxu0 %v1928
  %2854 = vmatpush1.bf16.msra.mxu0 %v1927
  %2855 = vmatprep.subr.bf16.mxu0 %v1940
  %2856 = vmatpush1.bf16.msra.mxu0 %v1939
  %2857 = vmatprep.subr.bf16.mxu0 %v1952
  %2858 = vmatpush1.bf16.msra.mxu0 %v1951
  %2859 = vmatprep.mubr.bf16.mxu0 %v584
  %2860 = vmatmul.mubr.bf16.gmra.mrb[0].mxu0 %v583
  %v2861 = vpop.f32.mrb[0].mxu0
  %v2862 = vadd.f32 %v494, %v2861
  %v2863 = vpop.f32.mrb[0].mxu0
  %v2864 = vadd.f32 %v498, %v2863
  %v2865 = vpop.f32.mrb[0].mxu0
  %v2866 = vadd.f32 %v494, %v2865
  %v2867 = vpop.f32.mrb[0].mxu0
  %v2868 = vadd.f32 %v498, %v2867
  %2869 = vmatprep.mubr.bf16.mxu0 %v588
  %2870 = vmatmul.mubr.bf16.gmra.mrb[0].mxu0 %v587
  %v2871 = vpop.f32.mrb[0].mxu0
  %v2872 = vadd.f32 %v494, %v2871
  %v2873 = vpop.f32.mrb[0].mxu0
  %v2874 = vadd.f32 %v498, %v2873
  %v2875 = vpop.f32.mrb[0].mxu0
  %v2876 = vadd.f32 %v494, %v2875
  %v2877 = vpop.f32.mrb[0].mxu0
  %v2878 = vadd.f32 %v498, %v2877
  %2879 = vmatprep.mubr.bf16.mxu0 %v592
  %2880 = vmatmul.mubr.bf16.gmra.mrb[0].mxu0 %v591
  %v2881 = vpop.f32.mrb[0].mxu0
  %v2882 = vadd.f32 %v494, %v2881
  %v2883 = vpop.f32.mrb[0].mxu0
  %v2884 = vadd.f32 %v498, %v2883
  %v2885 = vpop.f32.mrb[0].mxu0
  %v2886 = vadd.f32 %v494, %v2885
  %v2887 = vpop.f32.mrb[0].mxu0
  %v2888 = vadd.f32 %v498, %v2887
  %2889 = vmatprep.mubr.bf16.mxu0 %v596
  %2890 = vmatmul.mubr.bf16.gmra.mrb[0].mxu0 %v595
  %v2891 = vpop.f32.mrb[0].mxu0
  %v2892 = vadd.f32 %v494, %v2891
  %v2893 = vpop.f32.mrb[0].mxu0
  %v2894 = vadd.f32 %v498, %v2893
  %v2895 = vpop.f32.mrb[0].mxu0
  %v2896 = vadd.f32 %v494, %v2895
  %v2897 = vpop.f32.mrb[0].mxu0
  %v2898 = vadd.f32 %v498, %v2897
  %2899 = vdwg.mxu0
  %2900 = vmatprep.subr.bf16.mxu0 %v1964
  %2901 = vmatpush1.bf16.msra.mxu0 %v1963
  %2902 = vmatprep.subr.bf16.mxu0 %v1976
  %2903 = vmatpush1.bf16.msra.mxu0 %v1975
  %2904 = vmatprep.subr.bf16.mxu0 %v1988
  %2905 = vmatpush1.bf16.msra.mxu0 %v1987
  %2906 = vmatprep.subr.bf16.mxu0 %v2000
  %2907 = vmatpush1.bf16.msra.mxu0 %v1999
  %2908 = vmatprep.subr.bf16.mxu0 %v2012
  %2909 = vmatpush1.bf16.msra.mxu0 %v2011
  %2910 = vmatprep.subr.bf16.mxu0 %v2024
  %2911 = vmatpush1.bf16.msra.mxu0 %v2023
  %2912 = vmatprep.subr.bf16.mxu0 %v2036
  %2913 = vmatpush1.bf16.msra.mxu0 %v2035
  %2914 = vmatprep.subr.bf16.mxu0 %v2048
  %2915 = vmatpush1.bf16.msra.mxu0 %v2047
  %2916 = vmatprep.subr.bf16.mxu0 %v2060
  %2917 = vmatpush1.bf16.msra.mxu0 %v2059
  %2918 = vmatprep.subr.bf16.mxu0 %v2072
  %2919 = vmatpush1.bf16.msra.mxu0 %v2071
  %2920 = vmatprep.subr.bf16.mxu0 %v2084
  %2921 = vmatpush1.bf16.msra.mxu0 %v2083
  %2922 = vmatprep.subr.bf16.mxu0 %v2096
  %2923 = vmatpush1.bf16.msra.mxu0 %v2095
  %2924 = vmatprep.subr.bf16.mxu0 %v2108
  %2925 = vmatpush1.bf16.msra.mxu0 %v2107
  %2926 = vmatprep.subr.bf16.mxu0 %v2120
  %2927 = vmatpush1.bf16.msra.mxu0 %v2119
  %2928 = vmatprep.subr.bf16.mxu0 %v2132
  %2929 = vmatpush1.bf16.msra.mxu0 %v2131
  %2930 = vmatprep.subr.bf16.mxu0 %v2144
  %2931 = vmatpush1.bf16.msra.mxu0 %v2143
  %2932 = vmatprep.mubr.bf16.mxu0 %v586
  %2933 = vmatmul.mubr.bf16.gmra.mrb[0].mxu0 %v585
  %v2934 = vpop.f32.mrb[0].mxu0
  %v2935 = vadd.f32 %v2862, %v2934
  %v2936 = vpop.f32.mrb[0].mxu0
  %v2937 = vadd.f32 %v2864, %v2936
  %v2938 = vpop.f32.mrb[0].mxu0
  %v2939 = vadd.f32 %v2866, %v2938
  %v2940 = vpop.f32.mrb[0].mxu0
  %v2941 = vadd.f32 %v2868, %v2940
  %2942 = vmatprep.mubr.bf16.mxu0 %v590
  %2943 = vmatmul.mubr.bf16.gmra.mrb[0].mxu0 %v589
  %v2944 = vpop.f32.mrb[0].mxu0
  %v2945 = vadd.f32 %v2872, %v2944
  %v2946 = vpop.f32.mrb[0].mxu0
  %v2947 = vadd.f32 %v2874, %v2946
  %v2948 = vpop.f32.mrb[0].mxu0
  %v2949 = vadd.f32 %v2876, %v2948
  %v2950 = vpop.f32.mrb[0].mxu0
  %v2951 = vadd.f32 %v2878, %v2950
  %2952 = vmatprep.mubr.bf16.mxu0 %v594
  %2953 = vmatmul.mubr.bf16.gmra.mrb[0].mxu0 %v593
  %v2954 = vpop.f32.mrb[0].mxu0
  %v2955 = vadd.f32 %v2882, %v2954
  %v2956 = vpop.f32.mrb[0].mxu0
  %v2957 = vadd.f32 %v2884, %v2956
  %v2958 = vpop.f32.mrb[0].mxu0
  %v2959 = vadd.f32 %v2886, %v2958
  %v2960 = vpop.f32.mrb[0].mxu0
  %v2961 = vadd.f32 %v2888, %v2960
  %2962 = vmatprep.mubr.bf16.mxu0 %v598
  %2963 = vmatmul.mubr.bf16.gmra.mrb[0].mxu0 %v597
  %v2964 = vpop.f32.mrb[0].mxu0
  %v2965 = vadd.f32 %v2892, %v2964
  %v2966 = vpop.f32.mrb[0].mxu0
  %v2967 = vadd.f32 %v2894, %v2966
  %v2968 = vpop.f32.mrb[0].mxu0
  %v2969 = vadd.f32 %v2896, %v2968
  %v2970 = vpop.f32.mrb[0].mxu0
  %v2971 = vadd.f32 %v2898, %v2970
  %2972 = vdwg.mxu0
  %2973 = vmatprep.subr.bf16.mxu0 %v1774
  %2974 = vmatpush1.bf16.msra.mxu0 %v1773
  %2975 = vmatprep.subr.bf16.mxu0 %v1786
  %2976 = vmatpush1.bf16.msra.mxu0 %v1785
  %2977 = vmatprep.subr.bf16.mxu0 %v1798
  %2978 = vmatpush1.bf16.msra.mxu0 %v1797
  %2979 = vmatprep.subr.bf16.mxu0 %v1810
  %2980 = vmatpush1.bf16.msra.mxu0 %v1809
  %2981 = vmatprep.subr.bf16.mxu0 %v1822
  %2982 = vmatpush1.bf16.msra.mxu0 %v1821
  %2983 = vmatprep.subr.bf16.mxu0 %v1834
  %2984 = vmatpush1.bf16.msra.mxu0 %v1833
  %2985 = vmatprep.subr.bf16.mxu0 %v1846
  %2986 = vmatpush1.bf16.msra.mxu0 %v1845
  %2987 = vmatprep.subr.bf16.mxu0 %v1858
  %2988 = vmatpush1.bf16.msra.mxu0 %v1857
  %2989 = vmatprep.subr.bf16.mxu0 %v1870
  %2990 = vmatpush1.bf16.msra.mxu0 %v1869
  %2991 = vmatprep.subr.bf16.mxu0 %v1882
  %2992 = vmatpush1.bf16.msra.mxu0 %v1881
  %2993 = vmatprep.subr.bf16.mxu0 %v1894
  %2994 = vmatpush1.bf16.msra.mxu0 %v1893
  %2995 = vmatprep.subr.bf16.mxu0 %v1906
  %2996 = vmatpush1.bf16.msra.mxu0 %v1905
  %2997 = vmatprep.subr.bf16.mxu0 %v1918
  %2998 = vmatpush1.bf16.msra.mxu0 %v1917
  %2999 = vmatprep.subr.bf16.mxu0 %v1930
  %3000 = vmatpush1.bf16.msra.mxu0 %v1929
  %3001 = vmatprep.subr.bf16.mxu0 %v1942
  %3002 = vmatpush1.bf16.msra.mxu0 %v1941
  %3003 = vmatprep.subr.bf16.mxu0 %v1954
  %3004 = vmatpush1.bf16.msra.mxu0 %v1953
  %3005 = vmatprep.mubr.bf16.mxu0 %v584
  %3006 = vmatmul.mubr.bf16.gmra.mrb[0].mxu0 %v583
  %v3007 = vpop.f32.mrb[0].mxu0
  %v3008 = vadd.f32 %v502, %v3007
  %v3009 = vpop.f32.mrb[0].mxu0
  %v3010 = vadd.f32 %v506, %v3009
  %v3011 = vpop.f32.mrb[0].mxu0
  %v3012 = vadd.f32 %v502, %v3011
  %v3013 = vpop.f32.mrb[0].mxu0
  %v3014 = vadd.f32 %v506, %v3013
  %3015 = vmatprep.mubr.bf16.mxu0 %v588
  %3016 = vmatmul.mubr.bf16.gmra.mrb[0].mxu0 %v587
  %v3017 = vpop.f32.mrb[0].mxu0
  %v3018 = vadd.f32 %v502, %v3017
  %v3019 = vpop.f32.mrb[0].mxu0
  %v3020 = vadd.f32 %v506, %v3019
  %v3021 = vpop.f32.mrb[0].mxu0
  %v3022 = vadd.f32 %v502, %v3021
  %v3023 = vpop.f32.mrb[0].mxu0
  %v3024 = vadd.f32 %v506, %v3023
  %3025 = vmatprep.mubr.bf16.mxu0 %v592
  %3026 = vmatmul.mubr.bf16.gmra.mrb[0].mxu0 %v591
  %v3027 = vpop.f32.mrb[0].mxu0
  %v3028 = vadd.f32 %v502, %v3027
  %v3029 = vpop.f32.mrb[0].mxu0
  %v3030 = vadd.f32 %v506, %v3029
  %v3031 = vpop.f32.mrb[0].mxu0
  %v3032 = vadd.f32 %v502, %v3031
  %v3033 = vpop.f32.mrb[0].mxu0
  %v3034 = vadd.f32 %v506, %v3033
  %3035 = vmatprep.mubr.bf16.mxu0 %v596
  %3036 = vmatmul.mubr.bf16.gmra.mrb[0].mxu0 %v595
  %v3037 = vpop.f32.mrb[0].mxu0
  %v3038 = vadd.f32 %v502, %v3037
  %v3039 = vpop.f32.mrb[0].mxu0
  %v3040 = vadd.f32 %v506, %v3039
  %v3041 = vpop.f32.mrb[0].mxu0
  %v3042 = vadd.f32 %v502, %v3041
  %v3043 = vpop.f32.mrb[0].mxu0
  %v3044 = vadd.f32 %v506, %v3043
  %3045 = vdwg.mxu0
  %3046 = vmatprep.subr.bf16.mxu0 %v1966
  %3047 = vmatpush1.bf16.msra.mxu0 %v1965
  %3048 = vmatprep.subr.bf16.mxu0 %v1978
  %3049 = vmatpush1.bf16.msra.mxu0 %v1977
  %3050 = vmatprep.subr.bf16.mxu0 %v1990
  %3051 = vmatpush1.bf16.msra.mxu0 %v1989
  %3052 = vmatprep.subr.bf16.mxu0 %v2002
  %3053 = vmatpush1.bf16.msra.mxu0 %v2001
  %3054 = vmatprep.subr.bf16.mxu0 %v2014
  %3055 = vmatpush1.bf16.msra.mxu0 %v2013
  %3056 = vmatprep.subr.bf16.mxu0 %v2026
  %3057 = vmatpush1.bf16.msra.mxu0 %v2025
  %3058 = vmatprep.subr.bf16.mxu0 %v2038
  %3059 = vmatpush1.bf16.msra.mxu0 %v2037
  %3060 = vmatprep.subr.bf16.mxu0 %v2050
  %3061 = vmatpush1.bf16.msra.mxu0 %v2049
  %3062 = vmatprep.subr.bf16.mxu0 %v2062
  %3063 = vmatpush1.bf16.msra.mxu0 %v2061
  %3064 = vmatprep.subr.bf16.mxu0 %v2074
  %3065 = vmatpush1.bf16.msra.mxu0 %v2073
  %3066 = vmatprep.subr.bf16.mxu0 %v2086
  %3067 = vmatpush1.bf16.msra.mxu0 %v2085
  %3068 = vmatprep.subr.bf16.mxu0 %v2098
  %3069 = vmatpush1.bf16.msra.mxu0 %v2097
  %3070 = vmatprep.subr.bf16.mxu0 %v2110
  %3071 = vmatpush1.bf16.msra.mxu0 %v2109
  %3072 = vmatprep.subr.bf16.mxu0 %v2122
  %3073 = vmatpush1.bf16.msra.mxu0 %v2121
  %3074 = vmatprep.subr.bf16.mxu0 %v2134
  %3075 = vmatpush1.bf16.msra.mxu0 %v2133
  %3076 = vmatprep.subr.bf16.mxu0 %v2146
  %3077 = vmatpush1.bf16.msra.mxu0 %v2145
  %3078 = vmatprep.mubr.bf16.mxu0 %v586
  %3079 = vmatmul.mubr.bf16.gmra.mrb[0].mxu0 %v585
  %v3080 = vpop.f32.mrb[0].mxu0
  %v3081 = vadd.f32 %v3008, %v3080
  %v3082 = vpop.f32.mrb[0].mxu0
  %v3083 = vadd.f32 %v3010, %v3082
  %v3084 = vpop.f32.mrb[0].mxu0
  %v3085 = vadd.f32 %v3012, %v3084
  %v3086 = vpop.f32.mrb[0].mxu0
  %v3087 = vadd.f32 %v3014, %v3086
  %3088 = vmatprep.mubr.bf16.mxu0 %v590
  %3089 = vmatmul.mubr.bf16.gmra.mrb[0].mxu0 %v589
  %v3090 = vpop.f32.mrb[0].mxu0
  %v3091 = vadd.f32 %v3018, %v3090
  %v3092 = vpop.f32.mrb[0].mxu0
  %v3093 = vadd.f32 %v3020, %v3092
  %v3094 = vpop.f32.mrb[0].mxu0
  %v3095 = vadd.f32 %v3022, %v3094
  %v3096 = vpop.f32.mrb[0].mxu0
  %v3097 = vadd.f32 %v3024, %v3096
  %3098 = vmatprep.mubr.bf16.mxu0 %v594
  %3099 = vmatmul.mubr.bf16.gmra.mrb[0].mxu0 %v593
  %v3100 = vpop.f32.mrb[0].mxu0
  %v3101 = vadd.f32 %v3028, %v3100
  %v3102 = vpop.f32.mrb[0].mxu0
  %v3103 = vadd.f32 %v3030, %v3102
  %v3104 = vpop.f32.mrb[0].mxu0
  %v3105 = vadd.f32 %v3032, %v3104
  %v3106 = vpop.f32.mrb[0].mxu0
  %v3107 = vadd.f32 %v3034, %v3106
  %3108 = vmatprep.mubr.bf16.mxu0 %v598
  %3109 = vmatmul.mubr.bf16.gmra.mrb[0].mxu0 %v597
  %v3110 = vpop.f32.mrb[0].mxu0
  %v3111 = vadd.f32 %v3038, %v3110
  %v3112 = vpop.f32.mrb[0].mxu0
  %v3113 = vadd.f32 %v3040, %v3112
  %v3114 = vpop.f32.mrb[0].mxu0
  %v3115 = vadd.f32 %v3042, %v3114
  %v3116 = vpop.f32.mrb[0].mxu0
  %v3117 = vadd.f32 %v3044, %v3116
  %3118 = vdwg.mxu0
  %3119 = vmatprep.subr.bf16.mxu0 %v1776
  %3120 = vmatpush1.bf16.msra.mxu0 %v1775
  %3121 = vmatprep.subr.bf16.mxu0 %v1788
  %3122 = vmatpush1.bf16.msra.mxu0 %v1787
  %3123 = vmatprep.subr.bf16.mxu0 %v1800
  %3124 = vmatpush1.bf16.msra.mxu0 %v1799
  %3125 = vmatprep.subr.bf16.mxu0 %v1812
  %3126 = vmatpush1.bf16.msra.mxu0 %v1811
  %3127 = vmatprep.subr.bf16.mxu0 %v1824
  %3128 = vmatpush1.bf16.msra.mxu0 %v1823
  %3129 = vmatprep.subr.bf16.mxu0 %v1836
  %3130 = vmatpush1.bf16.msra.mxu0 %v1835
  %3131 = vmatprep.subr.bf16.mxu0 %v1848
  %3132 = vmatpush1.bf16.msra.mxu0 %v1847
  %3133 = vmatprep.subr.bf16.mxu0 %v1860
  %3134 = vmatpush1.bf16.msra.mxu0 %v1859
  %3135 = vmatprep.subr.bf16.mxu0 %v1872
  %3136 = vmatpush1.bf16.msra.mxu0 %v1871
  %3137 = vmatprep.subr.bf16.mxu0 %v1884
  %3138 = vmatpush1.bf16.msra.mxu0 %v1883
  %3139 = vmatprep.subr.bf16.mxu0 %v1896
  %3140 = vmatpush1.bf16.msra.mxu0 %v1895
  %3141 = vmatprep.subr.bf16.mxu0 %v1908
  %3142 = vmatpush1.bf16.msra.mxu0 %v1907
  %3143 = vmatprep.subr.bf16.mxu0 %v1920
  %3144 = vmatpush1.bf16.msra.mxu0 %v1919
  %3145 = vmatprep.subr.bf16.mxu0 %v1932
  %3146 = vmatpush1.bf16.msra.mxu0 %v1931
  %3147 = vmatprep.subr.bf16.mxu0 %v1944
  %3148 = vmatpush1.bf16.msra.mxu0 %v1943
  %3149 = vmatprep.subr.bf16.mxu0 %v1956
  %3150 = vmatpush1.bf16.msra.mxu0 %v1955
  %3151 = vmatprep.mubr.bf16.mxu0 %v584
  %3152 = vmatmul.mubr.bf16.gmra.mrb[0].mxu0 %v583
  %v3153 = vpop.f32.mrb[0].mxu0
  %v3154 = vadd.f32 %v510, %v3153
  %v3155 = vpop.f32.mrb[0].mxu0
  %v3156 = vadd.f32 %v514, %v3155
  %v3157 = vpop.f32.mrb[0].mxu0
  %v3158 = vadd.f32 %v510, %v3157
  %v3159 = vpop.f32.mrb[0].mxu0
  %v3160 = vadd.f32 %v514, %v3159
  %3161 = vmatprep.mubr.bf16.mxu0 %v588
  %3162 = vmatmul.mubr.bf16.gmra.mrb[0].mxu0 %v587
  %v3163 = vpop.f32.mrb[0].mxu0
  %v3164 = vadd.f32 %v510, %v3163
  %v3165 = vpop.f32.mrb[0].mxu0
  %v3166 = vadd.f32 %v514, %v3165
  %v3167 = vpop.f32.mrb[0].mxu0
  %v3168 = vadd.f32 %v510, %v3167
  %v3169 = vpop.f32.mrb[0].mxu0
  %v3170 = vadd.f32 %v514, %v3169
  %3171 = vmatprep.mubr.bf16.mxu0 %v592
  %3172 = vmatmul.mubr.bf16.gmra.mrb[0].mxu0 %v591
  %v3173 = vpop.f32.mrb[0].mxu0
  %v3174 = vadd.f32 %v510, %v3173
  %v3175 = vpop.f32.mrb[0].mxu0
  %v3176 = vadd.f32 %v514, %v3175
  %v3177 = vpop.f32.mrb[0].mxu0
  %v3178 = vadd.f32 %v510, %v3177
  %v3179 = vpop.f32.mrb[0].mxu0
  %v3180 = vadd.f32 %v514, %v3179
  %3181 = vmatprep.mubr.bf16.mxu0 %v596
  %3182 = vmatmul.mubr.bf16.gmra.mrb[0].mxu0 %v595
  %v3183 = vpop.f32.mrb[0].mxu0
  %v3184 = vadd.f32 %v510, %v3183
  %v3185 = vpop.f32.mrb[0].mxu0
  %v3186 = vadd.f32 %v514, %v3185
  %v3187 = vpop.f32.mrb[0].mxu0
  %v3188 = vadd.f32 %v510, %v3187
  %v3189 = vpop.f32.mrb[0].mxu0
  %v3190 = vadd.f32 %v514, %v3189
  %3191 = vdwg.mxu0
  %3192 = vmatprep.subr.bf16.mxu0 %v1968
  %3193 = vmatpush1.bf16.msra.mxu0 %v1967
  %3194 = vmatprep.subr.bf16.mxu0 %v1980
  %3195 = vmatpush1.bf16.msra.mxu0 %v1979
  %3196 = vmatprep.subr.bf16.mxu0 %v1992
  %3197 = vmatpush1.bf16.msra.mxu0 %v1991
  %3198 = vmatprep.subr.bf16.mxu0 %v2004
  %3199 = vmatpush1.bf16.msra.mxu0 %v2003
  %3200 = vmatprep.subr.bf16.mxu0 %v2016
  %3201 = vmatpush1.bf16.msra.mxu0 %v2015
  %3202 = vmatprep.subr.bf16.mxu0 %v2028
  %3203 = vmatpush1.bf16.msra.mxu0 %v2027
  %3204 = vmatprep.subr.bf16.mxu0 %v2040
  %3205 = vmatpush1.bf16.msra.mxu0 %v2039
  %3206 = vmatprep.subr.bf16.mxu0 %v2052
  %3207 = vmatpush1.bf16.msra.mxu0 %v2051
  %3208 = vmatprep.subr.bf16.mxu0 %v2064
  %3209 = vmatpush1.bf16.msra.mxu0 %v2063
  %3210 = vmatprep.subr.bf16.mxu0 %v2076
  %3211 = vmatpush1.bf16.msra.mxu0 %v2075
  %3212 = vmatprep.subr.bf16.mxu0 %v2088
  %3213 = vmatpush1.bf16.msra.mxu0 %v2087
  %3214 = vmatprep.subr.bf16.mxu0 %v2100
  %3215 = vmatpush1.bf16.msra.mxu0 %v2099
  %3216 = vmatprep.subr.bf16.mxu0 %v2112
  %3217 = vmatpush1.bf16.msra.mxu0 %v2111
  %3218 = vmatprep.subr.bf16.mxu0 %v2124
  %3219 = vmatpush1.bf16.msra.mxu0 %v2123
  %3220 = vmatprep.subr.bf16.mxu0 %v2136
  %3221 = vmatpush1.bf16.msra.mxu0 %v2135
  %3222 = vmatprep.subr.bf16.mxu0 %v2148
  %3223 = vmatpush1.bf16.msra.mxu0 %v2147
  %3224 = vmatprep.mubr.bf16.mxu0 %v586
  %3225 = vmatmul.mubr.bf16.gmra.mrb[0].mxu0 %v585
  %v3226 = vpop.f32.mrb[0].mxu0
  %v3227 = vadd.f32 %v3154, %v3226
  %v3228 = vpop.f32.mrb[0].mxu0
  %v3229 = vadd.f32 %v3156, %v3228
  %v3230 = vpop.f32.mrb[0].mxu0
  %v3231 = vadd.f32 %v3158, %v3230
  %v3232 = vpop.f32.mrb[0].mxu0
  %v3233 = vadd.f32 %v3160, %v3232
  %3234 = vmatprep.mubr.bf16.mxu0 %v590
  %3235 = vmatmul.mubr.bf16.gmra.mrb[0].mxu0 %v589
  %v3236 = vpop.f32.mrb[0].mxu0
  %v3237 = vadd.f32 %v3164, %v3236
  %v3238 = vpop.f32.mrb[0].mxu0
  %v3239 = vadd.f32 %v3166, %v3238
  %v3240 = vpop.f32.mrb[0].mxu0
  %v3241 = vadd.f32 %v3168, %v3240
  %v3242 = vpop.f32.mrb[0].mxu0
  %v3243 = vadd.f32 %v3170, %v3242
  %3244 = vmatprep.mubr.bf16.mxu0 %v594
  %3245 = vmatmul.mubr.bf16.gmra.mrb[0].mxu0 %v593
  %v3246 = vpop.f32.mrb[0].mxu0
  %v3247 = vadd.f32 %v3174, %v3246
  %v3248 = vpop.f32.mrb[0].mxu0
  %v3249 = vadd.f32 %v3176, %v3248
  %v3250 = vpop.f32.mrb[0].mxu0
  %v3251 = vadd.f32 %v3178, %v3250
  %v3252 = vpop.f32.mrb[0].mxu0
  %v3253 = vadd.f32 %v3180, %v3252
  %3254 = vmatprep.mubr.bf16.mxu0 %v598
  %3255 = vmatmul.mubr.bf16.gmra.mrb[0].mxu0 %v597
  %v3256 = vpop.f32.mrb[0].mxu0
  %v3257 = vadd.f32 %v3184, %v3256
  %v3258 = vpop.f32.mrb[0].mxu0
  %v3259 = vadd.f32 %v3186, %v3258
  %v3260 = vpop.f32.mrb[0].mxu0
  %v3261 = vadd.f32 %v3188, %v3260
  %v3262 = vpop.f32.mrb[0].mxu0
  %v3263 = vadd.f32 %v3190, %v3262
  %3264 = vdwg.mxu0
  %3265 = vmatprep.subr.bf16.mxu0 %v1778
  %3266 = vmatpush1.bf16.msra.mxu0 %v1777
  %3267 = vmatprep.subr.bf16.mxu0 %v1790
  %3268 = vmatpush1.bf16.msra.mxu0 %v1789
  %3269 = vmatprep.subr.bf16.mxu0 %v1802
  %3270 = vmatpush1.bf16.msra.mxu0 %v1801
  %3271 = vmatprep.subr.bf16.mxu0 %v1814
  %3272 = vmatpush1.bf16.msra.mxu0 %v1813
  %3273 = vmatprep.subr.bf16.mxu0 %v1826
  %3274 = vmatpush1.bf16.msra.mxu0 %v1825
  %3275 = vmatprep.subr.bf16.mxu0 %v1838
  %3276 = vmatpush1.bf16.msra.mxu0 %v1837
  %3277 = vmatprep.subr.bf16.mxu0 %v1850
  %3278 = vmatpush1.bf16.msra.mxu0 %v1849
  %3279 = vmatprep.subr.bf16.mxu0 %v1862
  %3280 = vmatpush1.bf16.msra.mxu0 %v1861
  %3281 = vmatprep.subr.bf16.mxu0 %v1874
  %3282 = vmatpush1.bf16.msra.mxu0 %v1873
  %3283 = vmatprep.subr.bf16.mxu0 %v1886
  %3284 = vmatpush1.bf16.msra.mxu0 %v1885
  %3285 = vmatprep.subr.bf16.mxu0 %v1898
  %3286 = vmatpush1.bf16.msra.mxu0 %v1897
  %3287 = vmatprep.subr.bf16.mxu0 %v1910
  %3288 = vmatpush1.bf16.msra.mxu0 %v1909
  %3289 = vmatprep.subr.bf16.mxu0 %v1922
  %3290 = vmatpush1.bf16.msra.mxu0 %v1921
  %3291 = vmatprep.subr.bf16.mxu0 %v1934
  %3292 = vmatpush1.bf16.msra.mxu0 %v1933
  %3293 = vmatprep.subr.bf16.mxu0 %v1946
  %3294 = vmatpush1.bf16.msra.mxu0 %v1945
  %3295 = vmatprep.subr.bf16.mxu0 %v1958
  %3296 = vmatpush1.bf16.msra.mxu0 %v1957
  %3297 = vmatprep.mubr.bf16.mxu0 %v584
  %3298 = vmatmul.mubr.bf16.gmra.mrb[0].mxu0 %v583
  %v3299 = vpop.f32.mrb[0].mxu0
  %v3300 = vadd.f32 %v518, %v3299
  %v3301 = vpop.f32.mrb[0].mxu0
  %v3302 = vadd.f32 %v522, %v3301
  %v3303 = vpop.f32.mrb[0].mxu0
  %v3304 = vadd.f32 %v518, %v3303
  %v3305 = vpop.f32.mrb[0].mxu0
  %v3306 = vadd.f32 %v522, %v3305
  %3307 = vmatprep.mubr.bf16.mxu0 %v588
  %3308 = vmatmul.mubr.bf16.gmra.mrb[0].mxu0 %v587
  %v3309 = vpop.f32.mrb[0].mxu0
  %v3310 = vadd.f32 %v518, %v3309
  %v3311 = vpop.f32.mrb[0].mxu0
  %v3312 = vadd.f32 %v522, %v3311
  %v3313 = vpop.f32.mrb[0].mxu0
  %v3314 = vadd.f32 %v518, %v3313
  %v3315 = vpop.f32.mrb[0].mxu0
  %v3316 = vadd.f32 %v522, %v3315
  %3317 = vmatprep.mubr.bf16.mxu0 %v592
  %3318 = vmatmul.mubr.bf16.gmra.mrb[0].mxu0 %v591
  %v3319 = vpop.f32.mrb[0].mxu0
  %v3320 = vadd.f32 %v518, %v3319
  %v3321 = vpop.f32.mrb[0].mxu0
  %v3322 = vadd.f32 %v522, %v3321
  %v3323 = vpop.f32.mrb[0].mxu0
  %v3324 = vadd.f32 %v518, %v3323
  %v3325 = vpop.f32.mrb[0].mxu0
  %v3326 = vadd.f32 %v522, %v3325
  %3327 = vmatprep.mubr.bf16.mxu0 %v596
  %3328 = vmatmul.mubr.bf16.gmra.mrb[0].mxu0 %v595
  %v3329 = vpop.f32.mrb[0].mxu0
  %v3330 = vadd.f32 %v518, %v3329
  %v3331 = vpop.f32.mrb[0].mxu0
  %v3332 = vadd.f32 %v522, %v3331
  %v3333 = vpop.f32.mrb[0].mxu0
  %v3334 = vadd.f32 %v518, %v3333
  %v3335 = vpop.f32.mrb[0].mxu0
  %v3336 = vadd.f32 %v522, %v3335
  %3337 = vdwg.mxu0
  %3338 = vmatprep.subr.bf16.mxu0 %v1970
  %3339 = vmatpush1.bf16.msra.mxu0 %v1969
  %3340 = vmatprep.subr.bf16.mxu0 %v1982
  %3341 = vmatpush1.bf16.msra.mxu0 %v1981
  %3342 = vmatprep.subr.bf16.mxu0 %v1994
  %3343 = vmatpush1.bf16.msra.mxu0 %v1993
  %3344 = vmatprep.subr.bf16.mxu0 %v2006
  %3345 = vmatpush1.bf16.msra.mxu0 %v2005
  %3346 = vmatprep.subr.bf16.mxu0 %v2018
  %3347 = vmatpush1.bf16.msra.mxu0 %v2017
  %3348 = vmatprep.subr.bf16.mxu0 %v2030
  %3349 = vmatpush1.bf16.msra.mxu0 %v2029
  %3350 = vmatprep.subr.bf16.mxu0 %v2042
  %3351 = vmatpush1.bf16.msra.mxu0 %v2041
  %3352 = vmatprep.subr.bf16.mxu0 %v2054
  %3353 = vmatpush1.bf16.msra.mxu0 %v2053
  %3354 = vmatprep.subr.bf16.mxu0 %v2066
  %3355 = vmatpush1.bf16.msra.mxu0 %v2065
  %3356 = vmatprep.subr.bf16.mxu0 %v2078
  %3357 = vmatpush1.bf16.msra.mxu0 %v2077
  %3358 = vmatprep.subr.bf16.mxu0 %v2090
  %3359 = vmatpush1.bf16.msra.mxu0 %v2089
  %3360 = vmatprep.subr.bf16.mxu0 %v2102
  %3361 = vmatpush1.bf16.msra.mxu0 %v2101
  %3362 = vmatprep.subr.bf16.mxu0 %v2114
  %3363 = vmatpush1.bf16.msra.mxu0 %v2113
  %3364 = vmatprep.subr.bf16.mxu0 %v2126
  %3365 = vmatpush1.bf16.msra.mxu0 %v2125
  %3366 = vmatprep.subr.bf16.mxu0 %v2138
  %3367 = vmatpush1.bf16.msra.mxu0 %v2137
  %3368 = vmatprep.subr.bf16.mxu0 %v2150
  %3369 = vmatpush1.bf16.msra.mxu0 %v2149
  %3370 = vmatprep.mubr.bf16.mxu0 %v586
  %3371 = vmatmul.mubr.bf16.gmra.mrb[0].mxu0 %v585
  %v3372 = vpop.f32.mrb[0].mxu0
  %v3373 = vadd.f32 %v3300, %v3372
  %v3374 = vpop.f32.mrb[0].mxu0
  %v3375 = vadd.f32 %v3302, %v3374
  %v3376 = vpop.f32.mrb[0].mxu0
  %v3377 = vadd.f32 %v3304, %v3376
  %v3378 = vpop.f32.mrb[0].mxu0
  %v3379 = vadd.f32 %v3306, %v3378
  %3380 = vmatprep.mubr.bf16.mxu0 %v590
  %3381 = vmatmul.mubr.bf16.gmra.mrb[0].mxu0 %v589
  %v3382 = vpop.f32.mrb[0].mxu0
  %v3383 = vadd.f32 %v3310, %v3382
  %v3384 = vpop.f32.mrb[0].mxu0
  %v3385 = vadd.f32 %v3312, %v3384
  %v3386 = vpop.f32.mrb[0].mxu0
  %v3387 = vadd.f32 %v3314, %v3386
  %v3388 = vpop.f32.mrb[0].mxu0
  %v3389 = vadd.f32 %v3316, %v3388
  %3390 = vmatprep.mubr.bf16.mxu0 %v594
  %3391 = vmatmul.mubr.bf16.gmra.mrb[0].mxu0 %v593
  %v3392 = vpop.f32.mrb[0].mxu0
  %v3393 = vadd.f32 %v3320, %v3392
  %v3394 = vpop.f32.mrb[0].mxu0
  %v3395 = vadd.f32 %v3322, %v3394
  %v3396 = vpop.f32.mrb[0].mxu0
  %v3397 = vadd.f32 %v3324, %v3396
  %v3398 = vpop.f32.mrb[0].mxu0
  %v3399 = vadd.f32 %v3326, %v3398
  %3400 = vmatprep.mubr.bf16.mxu0 %v598
  %3401 = vmatmul.mubr.bf16.gmra.mrb[0].mxu0 %v597
  %v3402 = vpop.f32.mrb[0].mxu0
  %v3403 = vadd.f32 %v3330, %v3402
  %v3404 = vpop.f32.mrb[0].mxu0
  %v3405 = vadd.f32 %v3332, %v3404
  %v3406 = vpop.f32.mrb[0].mxu0
  %v3407 = vadd.f32 %v3334, %v3406
  %v3408 = vpop.f32.mrb[0].mxu0
  %v3409 = vadd.f32 %v3336, %v3408
  %3410 = vdwg.mxu0
  %3411 = vst [vmem:[#allocation2] sm:$0xff] %v2643
  %3412 = vst [vmem:[#allocation2 + $0x8] sm:$0xff] %v2645
  %3413 = vst [vmem:[#allocation2 + $0x10] sm:$0xff] %v2789
  %3414 = vst [vmem:[#allocation2 + $0x18] sm:$0xff] %v2791
  %3415 = vst [vmem:[#allocation2 + $0x20] sm:$0xff] %v2935
  %3416 = vst [vmem:[#allocation2 + $0x28] sm:$0xff] %v2937
  %3417 = vst [vmem:[#allocation2 + $0x30] sm:$0xff] %v3081
  %3418 = vst [vmem:[#allocation2 + $0x38] sm:$0xff] %v3083
  %3419 = vst [vmem:[#allocation2 + $0x40] sm:$0xff] %v3227
  %3420 = vst [vmem:[#allocation2 + $0x48] sm:$0xff] %v3229
  %3421 = vst [vmem:[#allocation2 + $0x50] sm:$0xff] %v3373
  %3422 = vst [vmem:[#allocation2 + $0x58] sm:$0xff] %v3375
  %3423 = vst [vmem:[#allocation2 + $0x60] sm:$0xff] %v2647
  %3424 = vst [vmem:[#allocation2 + $0x68] sm:$0xff] %v2649
  %3425 = vst [vmem:[#allocation2 + $0x70] sm:$0xff] %v2793
  %3426 = vst [vmem:[#allocation2 + $0x78] sm:$0xff] %v2795
  %3427 = vst [vmem:[#allocation2 + $0x80] sm:$0xff] %v2939
  %3428 = vst [vmem:[#allocation2 + $0x88] sm:$0xff] %v2941
  %3429 = vst [vmem:[#allocation2 + $0x90] sm:$0xff] %v3085
  %3430 = vst [vmem:[#allocation2 + $0x98] sm:$0xff] %v3087
  %3431 = vst [vmem:[#allocation2 + $0xa0] sm:$0xff] %v3231
  %3432 = vst [vmem:[#allocation2 + $0xa8] sm:$0xff] %v3233
  %3433 = vst [vmem:[#allocation2 + $0xb0] sm:$0xff] %v3377
  %3434 = vst [vmem:[#allocation2 + $0xb8] sm:$0xff] %v3379
  %3435 = vst [vmem:[#allocation2 + $0xc0] sm:$0xff] %v2653
  %3436 = vst [vmem:[#allocation2 + $0xc8] sm:$0xff] %v2655
  %3437 = vst [vmem:[#allocation2 + $0xd0] sm:$0xff] %v2799
  %3438 = vst [vmem:[#allocation2 + $0xd8] sm:$0xff] %v2801
  %3439 = vst [vmem:[#allocation2 + $0xe0] sm:$0xff] %v2945
  %3440 = vst [vmem:[#allocation2 + $0xe8] sm:$0xff] %v2947
  %3441 = vst [vmem:[#allocation2 + $0xf0] sm:$0xff] %v3091
  %3442 = vst [vmem:[#allocation2 + $0xf8] sm:$0xff] %v3093
  %3443 = vst [vmem:[#allocation2 + $0x100] sm:$0xff] %v3237
  %3444 = vst [vmem:[#allocation2 + $0x108] sm:$0xff] %v3239
  %3445 = vst [vmem:[#allocation2 + $0x110] sm:$0xff] %v3383
  %3446 = vst [vmem:[#allocation2 + $0x118] sm:$0xff] %v3385
  %3447 = vst [vmem:[#allocation2 + $0x120] sm:$0xff] %v2657
  %3448 = vst [vmem:[#allocation2 + $0x128] sm:$0xff] %v2659
  %3449 = vst [vmem:[#allocation2 + $0x130] sm:$0xff] %v2803
  %3450 = vst [vmem:[#allocation2 + $0x138] sm:$0xff] %v2805
  %3451 = vst [vmem:[#allocation2 + $0x140] sm:$0xff] %v2949
  %3452 = vst [vmem:[#allocation2 + $0x148] sm:$0xff] %v2951
  %3453 = vst [vmem:[#allocation2 + $0x150] sm:$0xff] %v3095
  %3454 = vst [vmem:[#allocation2 + $0x158] sm:$0xff] %v3097
  %3455 = vst [vmem:[#allocation2 + $0x160] sm:$0xff] %v3241
  %3456 = vst [vmem:[#allocation2 + $0x168] sm:$0xff] %v3243
  %3457 = vst [vmem:[#allocation2 + $0x170] sm:$0xff] %v3387
  %3458 = vst [vmem:[#allocation2 + $0x178] sm:$0xff] %v3389
  %3459 = vst [vmem:[#allocation2 + $0x180] sm:$0xff] %v2663
  %3460 = vst [vmem:[#allocation2 + $0x188] sm:$0xff] %v2665
  %3461 = vst [vmem:[#allocation2 + $0x190] sm:$0xff] %v2809
  %3462 = vst [vmem:[#allocation2 + $0x198] sm:$0xff] %v2811
  %3463 = vst [vmem:[#allocation2 + $0x1a0] sm:$0xff] %v2955
  %3464 = vst [vmem:[#allocation2 + $0x1a8] sm:$0xff] %v2957
  %3465 = vst [vmem:[#allocation2 + $0x1b0] sm:$0xff] %v3101
  %3466 = vst [vmem:[#allocation2 + $0x1b8] sm:$0xff] %v3103
  %3467 = vst [vmem:[#allocation2 + $0x1c0] sm:$0xff] %v3247
  %3468 = vst [vmem:[#allocation2 + $0x1c8] sm:$0xff] %v3249
  %3469 = vst [vmem:[#allocation2 + $0x1d0] sm:$0xff] %v3393
  %3470 = vst [vmem:[#allocation2 + $0x1d8] sm:$0xff] %v3395
  %3471 = vst [vmem:[#allocation2 + $0x1e0] sm:$0xff] %v2667
  %3472 = vst [vmem:[#allocation2 + $0x1e8] sm:$0xff] %v2669
  %3473 = vst [vmem:[#allocation2 + $0x1f0] sm:$0xff] %v2813
  %3474 = vst [vmem:[#allocation2 + $0x1f8] sm:$0xff] %v2815
  %3475 = vst [vmem:[#allocation2 + $0x200] sm:$0xff] %v2959
  %3476 = vst [vmem:[#allocation2 + $0x208] sm:$0xff] %v2961
  %3477 = vst [vmem:[#allocation2 + $0x210] sm:$0xff] %v3105
  %3478 = vst [vmem:[#allocation2 + $0x218] sm:$0xff] %v3107
  %3479 = vst [vmem:[#allocation2 + $0x220] sm:$0xff] %v3251
  %3480 = vst [vmem:[#allocation2 + $0x228] sm:$0xff] %v3253
  %3481 = vst [vmem:[#allocation2 + $0x230] sm:$0xff] %v3397
  %3482 = vst [vmem:[#allocation2 + $0x238] sm:$0xff] %v3399
  %3483 = vst [vmem:[#allocation2 + $0x240] sm:$0xff] %v2673
  %3484 = vst [vmem:[#allocation2 + $0x248] sm:$0xff] %v2675
  %3485 = vst [vmem:[#allocation2 + $0x250] sm:$0xff] %v2819
  %3486 = vst [vmem:[#allocation2 + $0x258] sm:$0xff] %v2821
  %3487 = vst [vmem:[#allocation2 + $0x260] sm:$0xff] %v2965
  %3488 = vst [vmem:[#allocation2 + $0x268] sm:$0xff] %v2967
  %3489 = vst [vmem:[#allocation2 + $0x270] sm:$0xff] %v3111
  %3490 = vst [vmem:[#allocation2 + $0x278] sm:$0xff] %v3113
  %3491 = vst [vmem:[#allocation2 + $0x280] sm:$0xff] %v3257
  %3492 = vst [vmem:[#allocation2 + $0x288] sm:$0xff] %v3259
  %3493 = vst [vmem:[#allocation2 + $0x290] sm:$0xff] %v3403
  %3494 = vst [vmem:[#allocation2 + $0x298] sm:$0xff] %v3405
  %3495 = vst [vmem:[#allocation2 + $0x2a0] sm:$0xff] %v2677
  %3496 = vst [vmem:[#allocation2 + $0x2a8] sm:$0xff] %v2679
  %3497 = vst [vmem:[#allocation2 + $0x2b0] sm:$0xff] %v2823
  %3498 = vst [vmem:[#allocation2 + $0x2b8] sm:$0xff] %v2825
  %3499 = vst [vmem:[#allocation2 + $0x2c0] sm:$0xff] %v2969
  %3500 = vst [vmem:[#allocation2 + $0x2c8] sm:$0xff] %v2971
  %3501 = vst [vmem:[#allocation2 + $0x2d0] sm:$0xff] %v3115
  %3502 = vst [vmem:[#allocation2 + $0x2d8] sm:$0xff] %v3117
  %3503 = vst [vmem:[#allocation2 + $0x2e0] sm:$0xff] %v3261
  %3504 = vst [vmem:[#allocation2 + $0x2e8] sm:$0xff] %v3263
  %3505 = vst [vmem:[#allocation2 + $0x2f0] sm:$0xff] %v3407
  %3506 = vst [vmem:[#allocation2 + $0x2f8] sm:$0xff] %v3409
  %s3507 = ssub.s32 0, 0
  %s3508 = smul.u32 %s3507, 8
  %v3509 = vld [vmem:[%s4] sm:$0xff]
  %v3510 = vld [vmem:[%s4 + $0x8] sm:$0xf]
  %v3511 = vld [vmem:[#allocation3] sm:$0xff]
  %v3512 = vld [vmem:[#allocation3 + $0x8] sm:$0xff]
  %v3513 = vld [vmem:[#allocation3 + $0x10] sm:$0xff]
  %v3514 = vld [vmem:[#allocation3 + $0x18] sm:$0xff]
  loop: start=0, step=1, limit=8
  $region50: #{wav2vec_gru_forward.1} parent=0 // loop_pre_header
    _
  $region51: #{wav2vec_gru_forward.1} parent=0 // loop_header
    %s3516 = sphi 0, %s3520
    %p3517 = scmp.ge.s32.totalorder %s3516, 8
    %v3521 = vphi %v3511, %v6492
    %v3522 = vphi %v3512, %v6493
    %v3523 = vphi %v3513, %v6494
    %v3524 = vphi %v3514, %v6495
  $region52: #{wav2vec_gru_forward.1} parent=0 // loop_header_branch
    %3519 = sbr.rel (%p3517) target = $region56
  $region53: #{wav2vec_gru_forward.1} parent=0 // loop_body
    %s3525 = ssub.s32 7, %s3516
    %s3526 = smul.u32 %s3525, 12
    %s3527 = smul.addr %s3526, 8
    %s3528 = scalar_lea.vmem [#allocation2], %s3527
    %v3529 = vld [vmem:[%s3528] sm:$0xff]
    %v3530 = vld [vmem:[%s3528 + $0x8] sm:$0xff]
    %v3531 = vld [vmem:[%s3528 + $0x10] sm:$0xff]
    %v3532 = vld [vmem:[%s3528 + $0x18] sm:$0xff]
    %v3533 = vld [vmem:[%s3528 + $0x20] sm:$0xff]
    %v3534 = vld [vmem:[%s3528 + $0x28] sm:$0xff]
    %v3535 = vld [vmem:[%s3528 + $0x30] sm:$0xff]
    %v3536 = vld [vmem:[%s3528 + $0x38] sm:$0xff]
    %v3537 = vld [vmem:[%s3528 + $0x40] sm:$0xff]
    %v3538 = vld [vmem:[%s3528 + $0x48] sm:$0xff]
    %v3539 = vld [vmem:[%s3528 + $0x50] sm:$0xff]
    %v3540 = vld [vmem:[%s3528 + $0x58] sm:$0xff]
    %v3541 = vpack.c.bf16 %v3521, %v3521
    %v3542 = vpack.c.bf16 %v3522, %v3522
    %v3543 = vpack.c.bf16 %v3523, %v3523
    %v3544 = vpack.c.bf16 %v3524, %v3524
    %v3545 = vld [vmem:[%s2] sm:$0xff]
    %v3546 = vld [vmem:[%s2 + $0x8] sm:$0xff]
    %v3547 = vld [vmem:[%s2 + $0x10] sm:$0xff]
    %v3548 = vld [vmem:[%s2 + $0x18] sm:$0xff]
    %v3549 = vld [vmem:[%s2 + $0x20] sm:$0xff]
    %v3550 = vld [vmem:[%s2 + $0x28] sm:$0xff]
    %v3551 = vld [vmem:[%s2 + $0x30] sm:$0xff]
    %v3552 = vld [vmem:[%s2 + $0x38] sm:$0xff]
    %v3553 = vld [vmem:[%s2 + $0x40] sm:$0xff]
    %v3554 = vld [vmem:[%s2 + $0x48] sm:$0xff]
    %v3555 = vld [vmem:[%s2 + $0x50] sm:$0xff]
    %v3556 = vld [vmem:[%s2 + $0x58] sm:$0xff]
    %v3557 = vld [vmem:[%s2 + $0x60] sm:$0xff]
    %v3558 = vld [vmem:[%s2 + $0x68] sm:$0xff]
    %v3559 = vld [vmem:[%s2 + $0x70] sm:$0xff]
    %v3560 = vld [vmem:[%s2 + $0x78] sm:$0xff]
    %v3561 = vld [vmem:[%s2 + $0x80] sm:$0xff]
    %v3562 = vld [vmem:[%s2 + $0x88] sm:$0xff]
    %v3563 = vld [vmem:[%s2 + $0x90] sm:$0xff]
    %v3564 = vld [vmem:[%s2 + $0x98] sm:$0xff]
    %v3565 = vld [vmem:[%s2 + $0xa0] sm:$0xff]
    %v3566 = vld [vmem:[%s2 + $0xa8] sm:$0xff]
    %v3567 = vld [vmem:[%s2 + $0xb0] sm:$0xff]
    %v3568 = vld [vmem:[%s2 + $0xb8] sm:$0xff]
    %v3569 = vld [vmem:[%s2 + $0xc0] sm:$0xff]
    %v3570 = vld [vmem:[%s2 + $0xc8] sm:$0xff]
    %v3571 = vld [vmem:[%s2 + $0xd0] sm:$0xff]
    %v3572 = vld [vmem:[%s2 + $0xd8] sm:$0xff]
    %v3573 = vld [vmem:[%s2 + $0xe0] sm:$0xff]
    %v3574 = vld [vmem:[%s2 + $0xe8] sm:$0xff]
    %v3575 = vld [vmem:[%s2 + $0xf0] sm:$0xff]
    %v3576 = vld [vmem:[%s2 + $0xf8] sm:$0xff]
    %v3577 = vld [vmem:[%s2 + $0x100] sm:$0xff]
    %v3578 = vld [vmem:[%s2 + $0x108] sm:$0xff]
    %v3579 = vld [vmem:[%s2 + $0x110] sm:$0xff]
    %v3580 = vld [vmem:[%s2 + $0x118] sm:$0xff]
    %v3581 = vld [vmem:[%s2 + $0x120] sm:$0xff]
    %v3582 = vld [vmem:[%s2 + $0x128] sm:$0xff]
    %v3583 = vld [vmem:[%s2 + $0x130] sm:$0xff]
    %v3584 = vld [vmem:[%s2 + $0x138] sm:$0xff]
    %v3585 = vld [vmem:[%s2 + $0x140] sm:$0xff]
    %v3586 = vld [vmem:[%s2 + $0x148] sm:$0xff]
    %v3587 = vld [vmem:[%s2 + $0x150] sm:$0xff]
    %v3588 = vld [vmem:[%s2 + $0x158] sm:$0xff]
    %v3589 = vld [vmem:[%s2 + $0x160] sm:$0xff]
    %v3590 = vld [vmem:[%s2 + $0x168] sm:$0xff]
    %v3591 = vld [vmem:[%s2 + $0x170] sm:$0xff]
    %v3592 = vld [vmem:[%s2 + $0x178] sm:$0xff]
    %v3593 = vld [vmem:[%s2 + $0x180] sm:$0xff]
    %v3594 = vld [vmem:[%s2 + $0x188] sm:$0xff]
    %v3595 = vld [vmem:[%s2 + $0x190] sm:$0xff]
    %v3596 = vld [vmem:[%s2 + $0x198] sm:$0xff]
    %v3597 = vld [vmem:[%s2 + $0x1a0] sm:$0xff]
    %v3598 = vld [vmem:[%s2 + $0x1a8] sm:$0xff]
    %v3599 = vld [vmem:[%s2 + $0x1b0] sm:$0xff]
    %v3600 = vld [vmem:[%s2 + $0x1b8] sm:$0xff]
    %v3601 = vld [vmem:[%s2 + $0x1c0] sm:$0xff]
    %v3602 = vld [vmem:[%s2 + $0x1c8] sm:$0xff]
    %v3603 = vld [vmem:[%s2 + $0x1d0] sm:$0xff]
    %v3604 = vld [vmem:[%s2 + $0x1d8] sm:$0xff]
    %v3605 = vld [vmem:[%s2 + $0x1e0] sm:$0xff]
    %v3606 = vld [vmem:[%s2 + $0x1e8] sm:$0xff]
    %v3607 = vld [vmem:[%s2 + $0x1f0] sm:$0xff]
    %v3608 = vld [vmem:[%s2 + $0x1f8] sm:$0xff]
    %v3609 = vld [vmem:[%s2 + $0x200] sm:$0xff]
    %v3610 = vld [vmem:[%s2 + $0x208] sm:$0xff]
    %v3611 = vld [vmem:[%s2 + $0x210] sm:$0xff]
    %v3612 = vld [vmem:[%s2 + $0x218] sm:$0xff]
    %v3613 = vld [vmem:[%s2 + $0x220] sm:$0xff]
    %v3614 = vld [vmem:[%s2 + $0x228] sm:$0xff]
    %v3615 = vld [vmem:[%s2 + $0x230] sm:$0xff]
    %v3616 = vld [vmem:[%s2 + $0x238] sm:$0xff]
    %v3617 = vld [vmem:[%s2 + $0x240] sm:$0xff]
    %v3618 = vld [vmem:[%s2 + $0x248] sm:$0xff]
    %v3619 = vld [vmem:[%s2 + $0x250] sm:$0xff]
    %v3620 = vld [vmem:[%s2 + $0x258] sm:$0xff]
    %v3621 = vld [vmem:[%s2 + $0x260] sm:$0xff]
    %v3622 = vld [vmem:[%s2 + $0x268] sm:$0xff]
    %v3623 = vld [vmem:[%s2 + $0x270] sm:$0xff]
    %v3624 = vld [vmem:[%s2 + $0x278] sm:$0xff]
    %v3625 = vld [vmem:[%s2 + $0x280] sm:$0xff]
    %v3626 = vld [vmem:[%s2 + $0x288] sm:$0xff]
    %v3627 = vld [vmem:[%s2 + $0x290] sm:$0xff]
    %v3628 = vld [vmem:[%s2 + $0x298] sm:$0xff]
    %v3629 = vld [vmem:[%s2 + $0x2a0] sm:$0xff]
    %v3630 = vld [vmem:[%s2 + $0x2a8] sm:$0xff]
    %v3631 = vld [vmem:[%s2 + $0x2b0] sm:$0xff]
    %v3632 = vld [vmem:[%s2 + $0x2b8] sm:$0xff]
    %v3633 = vld [vmem:[%s2 + $0x2c0] sm:$0xff]
    %v3634 = vld [vmem:[%s2 + $0x2c8] sm:$0xff]
    %v3635 = vld [vmem:[%s2 + $0x2d0] sm:$0xff]
    %v3636 = vld [vmem:[%s2 + $0x2d8] sm:$0xff]
    %v3637 = vld [vmem:[%s2 + $0x2e0] sm:$0xff]
    %v3638 = vld [vmem:[%s2 + $0x2e8] sm:$0xff]
    %v3639 = vld [vmem:[%s2 + $0x2f0] sm:$0xff]
    %v3640 = vld [vmem:[%s2 + $0x2f8] sm:$0xff]
    %v3641 = vld [vmem:[%s2 + $0x300] sm:$0xff]
    %v3642 = vld [vmem:[%s2 + $0x308] sm:$0xff]
    %v3643 = vld [vmem:[%s2 + $0x310] sm:$0xff]
    %v3644 = vld [vmem:[%s2 + $0x318] sm:$0xff]
    %v3645 = vld [vmem:[%s2 + $0x320] sm:$0xff]
    %v3646 = vld [vmem:[%s2 + $0x328] sm:$0xff]
    %v3647 = vld [vmem:[%s2 + $0x330] sm:$0xff]
    %v3648 = vld [vmem:[%s2 + $0x338] sm:$0xff]
    %v3649 = vld [vmem:[%s2 + $0x340] sm:$0xff]
    %v3650 = vld [vmem:[%s2 + $0x348] sm:$0xff]
    %v3651 = vld [vmem:[%s2 + $0x350] sm:$0xff]
    %v3652 = vld [vmem:[%s2 + $0x358] sm:$0xff]
    %v3653 = vld [vmem:[%s2 + $0x360] sm:$0xff]
    %v3654 = vld [vmem:[%s2 + $0x368] sm:$0xff]
    %v3655 = vld [vmem:[%s2 + $0x370] sm:$0xff]
    %v3656 = vld [vmem:[%s2 + $0x378] sm:$0xff]
    %v3657 = vld [vmem:[%s2 + $0x380] sm:$0xff]
    %v3658 = vld [vmem:[%s2 + $0x388] sm:$0xff]
    %v3659 = vld [vmem:[%s2 + $0x390] sm:$0xff]
    %v3660 = vld [vmem:[%s2 + $0x398] sm:$0xff]
    %v3661 = vld [vmem:[%s2 + $0x3a0] sm:$0xff]
    %v3662 = vld [vmem:[%s2 + $0x3a8] sm:$0xff]
    %v3663 = vld [vmem:[%s2 + $0x3b0] sm:$0xff]
    %v3664 = vld [vmem:[%s2 + $0x3b8] sm:$0xff]
    %v3665 = vld [vmem:[%s2 + $0x3c0] sm:$0xff]
    %v3666 = vld [vmem:[%s2 + $0x3c8] sm:$0xff]
    %v3667 = vld [vmem:[%s2 + $0x3d0] sm:$0xff]
    %v3668 = vld [vmem:[%s2 + $0x3d8] sm:$0xff]
    %v3669 = vld [vmem:[%s2 + $0x3e0] sm:$0xff]
    %v3670 = vld [vmem:[%s2 + $0x3e8] sm:$0xff]
    %v3671 = vld [vmem:[%s2 + $0x3f0] sm:$0xff]
    %v3672 = vld [vmem:[%s2 + $0x3f8] sm:$0xff]
    %v3673 = vld [vmem:[%s2 + $0x400] sm:$0xff]
    %v3674 = vld [vmem:[%s2 + $0x408] sm:$0xff]
    %v3675 = vld [vmem:[%s2 + $0x410] sm:$0xff]
    %v3676 = vld [vmem:[%s2 + $0x418] sm:$0xff]
    %v3677 = vld [vmem:[%s2 + $0x420] sm:$0xff]
    %v3678 = vld [vmem:[%s2 + $0x428] sm:$0xff]
    %v3679 = vld [vmem:[%s2 + $0x430] sm:$0xff]
    %v3680 = vld [vmem:[%s2 + $0x438] sm:$0xff]
    %v3681 = vld [vmem:[%s2 + $0x440] sm:$0xff]
    %v3682 = vld [vmem:[%s2 + $0x448] sm:$0xff]
    %v3683 = vld [vmem:[%s2 + $0x450] sm:$0xff]
    %v3684 = vld [vmem:[%s2 + $0x458] sm:$0xff]
    %v3685 = vld [vmem:[%s2 + $0x460] sm:$0xff]
    %v3686 = vld [vmem:[%s2 + $0x468] sm:$0xff]
    %v3687 = vld [vmem:[%s2 + $0x470] sm:$0xff]
    %v3688 = vld [vmem:[%s2 + $0x478] sm:$0xff]
    %v3689 = vld [vmem:[%s2 + $0x480] sm:$0xff]
    %v3690 = vld [vmem:[%s2 + $0x488] sm:$0xff]
    %v3691 = vld [vmem:[%s2 + $0x490] sm:$0xff]
    %v3692 = vld [vmem:[%s2 + $0x498] sm:$0xff]
    %v3693 = vld [vmem:[%s2 + $0x4a0] sm:$0xff]
    %v3694 = vld [vmem:[%s2 + $0x4a8] sm:$0xff]
    %v3695 = vld [vmem:[%s2 + $0x4b0] sm:$0xff]
    %v3696 = vld [vmem:[%s2 + $0x4b8] sm:$0xff]
    %v3697 = vld [vmem:[%s2 + $0x4c0] sm:$0xff]
    %v3698 = vld [vmem:[%s2 + $0x4c8] sm:$0xff]
    %v3699 = vld [vmem:[%s2 + $0x4d0] sm:$0xff]
    %v3700 = vld [vmem:[%s2 + $0x4d8] sm:$0xff]
    %v3701 = vld [vmem:[%s2 + $0x4e0] sm:$0xff]
    %v3702 = vld [vmem:[%s2 + $0x4e8] sm:$0xff]
    %v3703 = vld [vmem:[%s2 + $0x4f0] sm:$0xff]
    %v3704 = vld [vmem:[%s2 + $0x4f8] sm:$0xff]
    %v3705 = vld [vmem:[%s2 + $0x500] sm:$0xff]
    %v3706 = vld [vmem:[%s2 + $0x508] sm:$0xff]
    %v3707 = vld [vmem:[%s2 + $0x510] sm:$0xff]
    %v3708 = vld [vmem:[%s2 + $0x518] sm:$0xff]
    %v3709 = vld [vmem:[%s2 + $0x520] sm:$0xff]
    %v3710 = vld [vmem:[%s2 + $0x528] sm:$0xff]
    %v3711 = vld [vmem:[%s2 + $0x530] sm:$0xff]
    %v3712 = vld [vmem:[%s2 + $0x538] sm:$0xff]
    %v3713 = vld [vmem:[%s2 + $0x540] sm:$0xff]
    %v3714 = vld [vmem:[%s2 + $0x548] sm:$0xff]
    %v3715 = vld [vmem:[%s2 + $0x550] sm:$0xff]
    %v3716 = vld [vmem:[%s2 + $0x558] sm:$0xff]
    %v3717 = vld [vmem:[%s2 + $0x560] sm:$0xff]
    %v3718 = vld [vmem:[%s2 + $0x568] sm:$0xff]
    %v3719 = vld [vmem:[%s2 + $0x570] sm:$0xff]
    %v3720 = vld [vmem:[%s2 + $0x578] sm:$0xff]
    %v3721 = vld [vmem:[%s2 + $0x580] sm:$0xff]
    %v3722 = vld [vmem:[%s2 + $0x588] sm:$0xff]
    %v3723 = vld [vmem:[%s2 + $0x590] sm:$0xff]
    %v3724 = vld [vmem:[%s2 + $0x598] sm:$0xff]
    %v3725 = vld [vmem:[%s2 + $0x5a0] sm:$0xff]
    %v3726 = vld [vmem:[%s2 + $0x5a8] sm:$0xff]
    %v3727 = vld [vmem:[%s2 + $0x5b0] sm:$0xff]
    %v3728 = vld [vmem:[%s2 + $0x5b8] sm:$0xff]
    %v3729 = vld [vmem:[%s2 + $0x5c0] sm:$0xff]
    %v3730 = vld [vmem:[%s2 + $0x5c8] sm:$0xff]
    %v3731 = vld [vmem:[%s2 + $0x5d0] sm:$0xff]
    %v3732 = vld [vmem:[%s2 + $0x5d8] sm:$0xff]
    %v3733 = vld [vmem:[%s2 + $0x5e0] sm:$0xff]
    %v3734 = vld [vmem:[%s2 + $0x5e8] sm:$0xff]
    %v3735 = vld [vmem:[%s2 + $0x5f0] sm:$0xff]
    %v3736 = vld [vmem:[%s2 + $0x5f8] sm:$0xff]
    %v3737 = vld [vmem:[%s2 + $0x600] sm:$0xff]
    %v3738 = vld [vmem:[%s2 + $0x608] sm:$0xff]
    %v3739 = vld [vmem:[%s2 + $0x610] sm:$0xff]
    %v3740 = vld [vmem:[%s2 + $0x618] sm:$0xff]
    %v3741 = vld [vmem:[%s2 + $0x620] sm:$0xff]
    %v3742 = vld [vmem:[%s2 + $0x628] sm:$0xff]
    %v3743 = vld [vmem:[%s2 + $0x630] sm:$0xff]
    %v3744 = vld [vmem:[%s2 + $0x638] sm:$0xff]
    %v3745 = vld [vmem:[%s2 + $0x640] sm:$0xff]
    %v3746 = vld [vmem:[%s2 + $0x648] sm:$0xff]
    %v3747 = vld [vmem:[%s2 + $0x650] sm:$0xff]
    %v3748 = vld [vmem:[%s2 + $0x658] sm:$0xff]
    %v3749 = vld [vmem:[%s2 + $0x660] sm:$0xff]
    %v3750 = vld [vmem:[%s2 + $0x668] sm:$0xff]
    %v3751 = vld [vmem:[%s2 + $0x670] sm:$0xff]
    %v3752 = vld [vmem:[%s2 + $0x678] sm:$0xff]
    %v3753 = vld [vmem:[%s2 + $0x680] sm:$0xff]
    %v3754 = vld [vmem:[%s2 + $0x688] sm:$0xff]
    %v3755 = vld [vmem:[%s2 + $0x690] sm:$0xff]
    %v3756 = vld [vmem:[%s2 + $0x698] sm:$0xff]
    %v3757 = vld [vmem:[%s2 + $0x6a0] sm:$0xff]
    %v3758 = vld [vmem:[%s2 + $0x6a8] sm:$0xff]
    %v3759 = vld [vmem:[%s2 + $0x6b0] sm:$0xff]
    %v3760 = vld [vmem:[%s2 + $0x6b8] sm:$0xff]
    %v3761 = vld [vmem:[%s2 + $0x6c0] sm:$0xff]
    %v3762 = vld [vmem:[%s2 + $0x6c8] sm:$0xff]
    %v3763 = vld [vmem:[%s2 + $0x6d0] sm:$0xff]
    %v3764 = vld [vmem:[%s2 + $0x6d8] sm:$0xff]
    %v3765 = vld [vmem:[%s2 + $0x6e0] sm:$0xff]
    %v3766 = vld [vmem:[%s2 + $0x6e8] sm:$0xff]
    %v3767 = vld [vmem:[%s2 + $0x6f0] sm:$0xff]
    %v3768 = vld [vmem:[%s2 + $0x6f8] sm:$0xff]
    %v3769 = vld [vmem:[%s2 + $0x700] sm:$0xff]
    %v3770 = vld [vmem:[%s2 + $0x708] sm:$0xff]
    %v3771 = vld [vmem:[%s2 + $0x710] sm:$0xff]
    %v3772 = vld [vmem:[%s2 + $0x718] sm:$0xff]
    %v3773 = vld [vmem:[%s2 + $0x720] sm:$0xff]
    %v3774 = vld [vmem:[%s2 + $0x728] sm:$0xff]
    %v3775 = vld [vmem:[%s2 + $0x730] sm:$0xff]
    %v3776 = vld [vmem:[%s2 + $0x738] sm:$0xff]
    %v3777 = vld [vmem:[%s2 + $0x740] sm:$0xff]
    %v3778 = vld [vmem:[%s2 + $0x748] sm:$0xff]
    %v3779 = vld [vmem:[%s2 + $0x750] sm:$0xff]
    %v3780 = vld [vmem:[%s2 + $0x758] sm:$0xff]
    %v3781 = vld [vmem:[%s2 + $0x760] sm:$0xff]
    %v3782 = vld [vmem:[%s2 + $0x768] sm:$0xff]
    %v3783 = vld [vmem:[%s2 + $0x770] sm:$0xff]
    %v3784 = vld [vmem:[%s2 + $0x778] sm:$0xff]
    %v3785 = vld [vmem:[%s2 + $0x780] sm:$0xff]
    %v3786 = vld [vmem:[%s2 + $0x788] sm:$0xff]
    %v3787 = vld [vmem:[%s2 + $0x790] sm:$0xff]
    %v3788 = vld [vmem:[%s2 + $0x798] sm:$0xff]
    %v3789 = vld [vmem:[%s2 + $0x7a0] sm:$0xff]
    %v3790 = vld [vmem:[%s2 + $0x7a8] sm:$0xff]
    %v3791 = vld [vmem:[%s2 + $0x7b0] sm:$0xff]
    %v3792 = vld [vmem:[%s2 + $0x7b8] sm:$0xff]
    %v3793 = vld [vmem:[%s2 + $0x7c0] sm:$0xff]
    %v3794 = vld [vmem:[%s2 + $0x7c8] sm:$0xff]
    %v3795 = vld [vmem:[%s2 + $0x7d0] sm:$0xff]
    %v3796 = vld [vmem:[%s2 + $0x7d8] sm:$0xff]
    %v3797 = vld [vmem:[%s2 + $0x7e0] sm:$0xff]
    %v3798 = vld [vmem:[%s2 + $0x7e8] sm:$0xff]
    %v3799 = vld [vmem:[%s2 + $0x7f0] sm:$0xff]
    %v3800 = vld [vmem:[%s2 + $0x7f8] sm:$0xff]
    %v3801 = vld [vmem:[%s2 + $0x800] sm:$0xff]
    %v3802 = vld [vmem:[%s2 + $0x808] sm:$0xff]
    %v3803 = vld [vmem:[%s2 + $0x810] sm:$0xff]
    %v3804 = vld [vmem:[%s2 + $0x818] sm:$0xff]
    %v3805 = vld [vmem:[%s2 + $0x820] sm:$0xff]
    %v3806 = vld [vmem:[%s2 + $0x828] sm:$0xff]
    %v3807 = vld [vmem:[%s2 + $0x830] sm:$0xff]
    %v3808 = vld [vmem:[%s2 + $0x838] sm:$0xff]
    %v3809 = vld [vmem:[%s2 + $0x840] sm:$0xff]
    %v3810 = vld [vmem:[%s2 + $0x848] sm:$0xff]
    %v3811 = vld [vmem:[%s2 + $0x850] sm:$0xff]
    %v3812 = vld [vmem:[%s2 + $0x858] sm:$0xff]
    %v3813 = vld [vmem:[%s2 + $0x860] sm:$0xff]
    %v3814 = vld [vmem:[%s2 + $0x868] sm:$0xff]
    %v3815 = vld [vmem:[%s2 + $0x870] sm:$0xff]
    %v3816 = vld [vmem:[%s2 + $0x878] sm:$0xff]
    %v3817 = vld [vmem:[%s2 + $0x880] sm:$0xff]
    %v3818 = vld [vmem:[%s2 + $0x888] sm:$0xff]
    %v3819 = vld [vmem:[%s2 + $0x890] sm:$0xff]
    %v3820 = vld [vmem:[%s2 + $0x898] sm:$0xff]
    %v3821 = vld [vmem:[%s2 + $0x8a0] sm:$0xff]
    %v3822 = vld [vmem:[%s2 + $0x8a8] sm:$0xff]
    %v3823 = vld [vmem:[%s2 + $0x8b0] sm:$0xff]
    %v3824 = vld [vmem:[%s2 + $0x8b8] sm:$0xff]
    %v3825 = vld [vmem:[%s2 + $0x8c0] sm:$0xff]
    %v3826 = vld [vmem:[%s2 + $0x8c8] sm:$0xff]
    %v3827 = vld [vmem:[%s2 + $0x8d0] sm:$0xff]
    %v3828 = vld [vmem:[%s2 + $0x8d8] sm:$0xff]
    %v3829 = vld [vmem:[%s2 + $0x8e0] sm:$0xff]
    %v3830 = vld [vmem:[%s2 + $0x8e8] sm:$0xff]
    %v3831 = vld [vmem:[%s2 + $0x8f0] sm:$0xff]
    %v3832 = vld [vmem:[%s2 + $0x8f8] sm:$0xff]
    %v3833 = vld [vmem:[%s2 + $0x900] sm:$0xff]
    %v3834 = vld [vmem:[%s2 + $0x908] sm:$0xff]
    %v3835 = vld [vmem:[%s2 + $0x910] sm:$0xff]
    %v3836 = vld [vmem:[%s2 + $0x918] sm:$0xff]
    %v3837 = vld [vmem:[%s2 + $0x920] sm:$0xff]
    %v3838 = vld [vmem:[%s2 + $0x928] sm:$0xff]
    %v3839 = vld [vmem:[%s2 + $0x930] sm:$0xff]
    %v3840 = vld [vmem:[%s2 + $0x938] sm:$0xff]
    %v3841 = vld [vmem:[%s2 + $0x940] sm:$0xff]
    %v3842 = vld [vmem:[%s2 + $0x948] sm:$0xff]
    %v3843 = vld [vmem:[%s2 + $0x950] sm:$0xff]
    %v3844 = vld [vmem:[%s2 + $0x958] sm:$0xff]
    %v3845 = vld [vmem:[%s2 + $0x960] sm:$0xff]
    %v3846 = vld [vmem:[%s2 + $0x968] sm:$0xff]
    %v3847 = vld [vmem:[%s2 + $0x970] sm:$0xff]
    %v3848 = vld [vmem:[%s2 + $0x978] sm:$0xff]
    %v3849 = vld [vmem:[%s2 + $0x980] sm:$0xff]
    %v3850 = vld [vmem:[%s2 + $0x988] sm:$0xff]
    %v3851 = vld [vmem:[%s2 + $0x990] sm:$0xff]
    %v3852 = vld [vmem:[%s2 + $0x998] sm:$0xff]
    %v3853 = vld [vmem:[%s2 + $0x9a0] sm:$0xff]
    %v3854 = vld [vmem:[%s2 + $0x9a8] sm:$0xff]
    %v3855 = vld [vmem:[%s2 + $0x9b0] sm:$0xff]
    %v3856 = vld [vmem:[%s2 + $0x9b8] sm:$0xff]
    %v3857 = vld [vmem:[%s2 + $0x9c0] sm:$0xff]
    %v3858 = vld [vmem:[%s2 + $0x9c8] sm:$0xff]
    %v3859 = vld [vmem:[%s2 + $0x9d0] sm:$0xff]
    %v3860 = vld [vmem:[%s2 + $0x9d8] sm:$0xff]
    %v3861 = vld [vmem:[%s2 + $0x9e0] sm:$0xff]
    %v3862 = vld [vmem:[%s2 + $0x9e8] sm:$0xff]
    %v3863 = vld [vmem:[%s2 + $0x9f0] sm:$0xff]
    %v3864 = vld [vmem:[%s2 + $0x9f8] sm:$0xff]
    %v3865 = vld [vmem:[%s2 + $0xa00] sm:$0xff]
    %v3866 = vld [vmem:[%s2 + $0xa08] sm:$0xff]
    %v3867 = vld [vmem:[%s2 + $0xa10] sm:$0xff]
    %v3868 = vld [vmem:[%s2 + $0xa18] sm:$0xff]
    %v3869 = vld [vmem:[%s2 + $0xa20] sm:$0xff]
    %v3870 = vld [vmem:[%s2 + $0xa28] sm:$0xff]
    %v3871 = vld [vmem:[%s2 + $0xa30] sm:$0xff]
    %v3872 = vld [vmem:[%s2 + $0xa38] sm:$0xff]
    %v3873 = vld [vmem:[%s2 + $0xa40] sm:$0xff]
    %v3874 = vld [vmem:[%s2 + $0xa48] sm:$0xff]
    %v3875 = vld [vmem:[%s2 + $0xa50] sm:$0xff]
    %v3876 = vld [vmem:[%s2 + $0xa58] sm:$0xff]
    %v3877 = vld [vmem:[%s2 + $0xa60] sm:$0xff]
    %v3878 = vld [vmem:[%s2 + $0xa68] sm:$0xff]
    %v3879 = vld [vmem:[%s2 + $0xa70] sm:$0xff]
    %v3880 = vld [vmem:[%s2 + $0xa78] sm:$0xff]
    %v3881 = vld [vmem:[%s2 + $0xa80] sm:$0xff]
    %v3882 = vld [vmem:[%s2 + $0xa88] sm:$0xff]
    %v3883 = vld [vmem:[%s2 + $0xa90] sm:$0xff]
    %v3884 = vld [vmem:[%s2 + $0xa98] sm:$0xff]
    %v3885 = vld [vmem:[%s2 + $0xaa0] sm:$0xff]
    %v3886 = vld [vmem:[%s2 + $0xaa8] sm:$0xff]
    %v3887 = vld [vmem:[%s2 + $0xab0] sm:$0xff]
    %v3888 = vld [vmem:[%s2 + $0xab8] sm:$0xff]
    %v3889 = vld [vmem:[%s2 + $0xac0] sm:$0xff]
    %v3890 = vld [vmem:[%s2 + $0xac8] sm:$0xff]
    %v3891 = vld [vmem:[%s2 + $0xad0] sm:$0xff]
    %v3892 = vld [vmem:[%s2 + $0xad8] sm:$0xff]
    %v3893 = vld [vmem:[%s2 + $0xae0] sm:$0xff]
    %v3894 = vld [vmem:[%s2 + $0xae8] sm:$0xff]
    %v3895 = vld [vmem:[%s2 + $0xaf0] sm:$0xff]
    %v3896 = vld [vmem:[%s2 + $0xaf8] sm:$0xff]
    %v3897 = vld [vmem:[%s2 + $0xb00] sm:$0xff]
    %v3898 = vld [vmem:[%s2 + $0xb08] sm:$0xff]
    %v3899 = vld [vmem:[%s2 + $0xb10] sm:$0xff]
    %v3900 = vld [vmem:[%s2 + $0xb18] sm:$0xff]
    %v3901 = vld [vmem:[%s2 + $0xb20] sm:$0xff]
    %v3902 = vld [vmem:[%s2 + $0xb28] sm:$0xff]
    %v3903 = vld [vmem:[%s2 + $0xb30] sm:$0xff]
    %v3904 = vld [vmem:[%s2 + $0xb38] sm:$0xff]
    %v3905 = vld [vmem:[%s2 + $0xb40] sm:$0xff]
    %v3906 = vld [vmem:[%s2 + $0xb48] sm:$0xff]
    %v3907 = vld [vmem:[%s2 + $0xb50] sm:$0xff]
    %v3908 = vld [vmem:[%s2 + $0xb58] sm:$0xff]
    %v3909 = vld [vmem:[%s2 + $0xb60] sm:$0xff]
    %v3910 = vld [vmem:[%s2 + $0xb68] sm:$0xff]
    %v3911 = vld [vmem:[%s2 + $0xb70] sm:$0xff]
    %v3912 = vld [vmem:[%s2 + $0xb78] sm:$0xff]
    %v3913 = vld [vmem:[%s2 + $0xb80] sm:$0xff]
    %v3914 = vld [vmem:[%s2 + $0xb88] sm:$0xff]
    %v3915 = vld [vmem:[%s2 + $0xb90] sm:$0xff]
    %v3916 = vld [vmem:[%s2 + $0xb98] sm:$0xff]
    %v3917 = vld [vmem:[%s2 + $0xba0] sm:$0xff]
    %v3918 = vld [vmem:[%s2 + $0xba8] sm:$0xff]
    %v3919 = vld [vmem:[%s2 + $0xbb0] sm:$0xff]
    %v3920 = vld [vmem:[%s2 + $0xbb8] sm:$0xff]
    %v3921 = vld [vmem:[%s2 + $0xbc0] sm:$0xff]
    %v3922 = vld [vmem:[%s2 + $0xbc8] sm:$0xff]
    %v3923 = vld [vmem:[%s2 + $0xbd0] sm:$0xff]
    %v3924 = vld [vmem:[%s2 + $0xbd8] sm:$0xff]
    %v3925 = vld [vmem:[%s2 + $0xbe0] sm:$0xff]
    %v3926 = vld [vmem:[%s2 + $0xbe8] sm:$0xff]
    %v3927 = vld [vmem:[%s2 + $0xbf0] sm:$0xff]
    %v3928 = vld [vmem:[%s2 + $0xbf8] sm:$0xff]
    %v3931 = vlaneseq
    %v3932 = vshrl.u32 %v3931, 7
    %v3933 = vsub.s32 0, %v3932
    %v3934 = vrot.slane %v3509, %v3933
    %v3935 = vlaneseq
    %v3936 = vshrl.u32 %v3935, 7
    %v3937 = vsub.s32 1, %v3936
    %v3938 = vrot.slane %v3509, %v3937
    %v3939 = vlaneseq
    %v3940 = vshrl.u32 %v3939, 7
    %v3941 = vsub.s32 2, %v3940
    %v3942 = vrot.slane %v3509, %v3941
    %v3943 = vlaneseq
    %v3944 = vshrl.u32 %v3943, 7
    %v3945 = vsub.s32 3, %v3944
    %v3946 = vrot.slane %v3509, %v3945
    %v3947 = vlaneseq
    %v3948 = vshrl.u32 %v3947, 7
    %v3949 = vsub.s32 4, %v3948
    %v3950 = vrot.slane %v3509, %v3949
    %v3951 = vlaneseq
    %v3952 = vshrl.u32 %v3951, 7
    %v3953 = vsub.s32 5, %v3952
    %v3954 = vrot.slane %v3509, %v3953
    %v3955 = vlaneseq
    %v3956 = vshrl.u32 %v3955, 7
    %v3957 = vsub.s32 6, %v3956
    %v3958 = vrot.slane %v3509, %v3957
    %v3959 = vlaneseq
    %v3960 = vshrl.u32 %v3959, 7
    %v3961 = vsub.s32 7, %v3960
    %v3962 = vrot.slane %v3509, %v3961
    %v3963 = vlaneseq
    %v3964 = vshrl.u32 %v3963, 7
    %v3965 = vsub.s32 0, %v3964
    %v3966 = vrot.slane %v3510, %v3965
    %v3967 = vlaneseq
    %v3968 = vshrl.u32 %v3967, 7
    %v3969 = vsub.s32 1, %v3968
    %v3970 = vrot.slane %v3510, %v3969
    %v3971 = vlaneseq
    %v3972 = vshrl.u32 %v3971, 7
    %v3973 = vsub.s32 2, %v3972
    %v3974 = vrot.slane %v3510, %v3973
    %v3975 = vlaneseq
    %v3976 = vshrl.u32 %v3975, 7
    %v3977 = vsub.s32 3, %v3976
    %v3978 = vrot.slane %v3510, %v3977
    %v4375 = vunpack.c.l.b16 %v3545
    %v4376 = vunpack.c.h.b16 %v3545
    %v4377 = vunpack.c.l.b16 %v3546
    %v4378 = vunpack.c.h.b16 %v3546
    %v4379 = vunpack.c.l.b16 %v3547
    %v4380 = vunpack.c.h.b16 %v3547
    %v4381 = vunpack.c.l.b16 %v3548
    %v4382 = vunpack.c.h.b16 %v3548
    %v4383 = vunpack.c.l.b16 %v3549
    %v4384 = vunpack.c.h.b16 %v3549
    %v4385 = vunpack.c.l.b16 %v3550
    %v4386 = vunpack.c.h.b16 %v3550
    %v4387 = vunpack.c.l.b16 %v3551
    %v4388 = vunpack.c.h.b16 %v3551
    %v4389 = vunpack.c.l.b16 %v3552
    %v4390 = vunpack.c.h.b16 %v3552
    %v4391 = vunpack.c.l.b16 %v3553
    %v4392 = vunpack.c.h.b16 %v3553
    %v4393 = vunpack.c.l.b16 %v3554
    %v4394 = vunpack.c.h.b16 %v3554
    %v4395 = vunpack.c.l.b16 %v3555
    %v4396 = vunpack.c.h.b16 %v3555
    %v4397 = vunpack.c.l.b16 %v3556
    %v4398 = vunpack.c.h.b16 %v3556
    %v4399 = vunpack.c.l.b16 %v3557
    %v4400 = vunpack.c.h.b16 %v3557
    %v4401 = vunpack.c.l.b16 %v3558
    %v4402 = vunpack.c.h.b16 %v3558
    %v4403 = vunpack.c.l.b16 %v3559
    %v4404 = vunpack.c.h.b16 %v3559
    %v4405 = vunpack.c.l.b16 %v3560
    %v4406 = vunpack.c.h.b16 %v3560
    %v4407 = vunpack.c.l.b16 %v3561
    %v4408 = vunpack.c.h.b16 %v3561
    %v4409 = vunpack.c.l.b16 %v3562
    %v4410 = vunpack.c.h.b16 %v3562
    %v4411 = vunpack.c.l.b16 %v3563
    %v4412 = vunpack.c.h.b16 %v3563
    %v4413 = vunpack.c.l.b16 %v3564
    %v4414 = vunpack.c.h.b16 %v3564
    %v4415 = vunpack.c.l.b16 %v3565
    %v4416 = vunpack.c.h.b16 %v3565
    %v4417 = vunpack.c.l.b16 %v3566
    %v4418 = vunpack.c.h.b16 %v3566
    %v4419 = vunpack.c.l.b16 %v3567
    %v4420 = vunpack.c.h.b16 %v3567
    %v4421 = vunpack.c.l.b16 %v3568
    %v4422 = vunpack.c.h.b16 %v3568
    %v4423 = vunpack.c.l.b16 %v3569
    %v4424 = vunpack.c.h.b16 %v3569
    %v4425 = vunpack.c.l.b16 %v3570
    %v4426 = vunpack.c.h.b16 %v3570
    %v4427 = vunpack.c.l.b16 %v3571
    %v4428 = vunpack.c.h.b16 %v3571
    %v4429 = vunpack.c.l.b16 %v3572
    %v4430 = vunpack.c.h.b16 %v3572
    %v4431 = vunpack.c.l.b16 %v3573
    %v4432 = vunpack.c.h.b16 %v3573
    %v4433 = vunpack.c.l.b16 %v3574
    %v4434 = vunpack.c.h.b16 %v3574
    %v4435 = vunpack.c.l.b16 %v3575
    %v4436 = vunpack.c.h.b16 %v3575
    %v4437 = vunpack.c.l.b16 %v3576
    %v4438 = vunpack.c.h.b16 %v3576
    %v4439 = vunpack.c.l.b16 %v3577
    %v4440 = vunpack.c.h.b16 %v3577
    %v4441 = vunpack.c.l.b16 %v3578
    %v4442 = vunpack.c.h.b16 %v3578
    %v4443 = vunpack.c.l.b16 %v3579
    %v4444 = vunpack.c.h.b16 %v3579
    %v4445 = vunpack.c.l.b16 %v3580
    %v4446 = vunpack.c.h.b16 %v3580
    %v4447 = vunpack.c.l.b16 %v3581
    %v4448 = vunpack.c.h.b16 %v3581
    %v4449 = vunpack.c.l.b16 %v3582
    %v4450 = vunpack.c.h.b16 %v3582
    %v4451 = vunpack.c.l.b16 %v3583
    %v4452 = vunpack.c.h.b16 %v3583
    %v4453 = vunpack.c.l.b16 %v3584
    %v4454 = vunpack.c.h.b16 %v3584
    %v4455 = vunpack.c.l.b16 %v3585
    %v4456 = vunpack.c.h.b16 %v3585
    %v4457 = vunpack.c.l.b16 %v3586
    %v4458 = vunpack.c.h.b16 %v3586
    %v4459 = vunpack.c.l.b16 %v3587
    %v4460 = vunpack.c.h.b16 %v3587
    %v4461 = vunpack.c.l.b16 %v3588
    %v4462 = vunpack.c.h.b16 %v3588
    %v4463 = vunpack.c.l.b16 %v3589
    %v4464 = vunpack.c.h.b16 %v3589
    %v4465 = vunpack.c.l.b16 %v3590
    %v4466 = vunpack.c.h.b16 %v3590
    %v4467 = vunpack.c.l.b16 %v3591
    %v4468 = vunpack.c.h.b16 %v3591
    %v4469 = vunpack.c.l.b16 %v3592
    %v4470 = vunpack.c.h.b16 %v3592
    %v4471 = vunpack.c.l.b16 %v3593
    %v4472 = vunpack.c.h.b16 %v3593
    %v4473 = vunpack.c.l.b16 %v3594
    %v4474 = vunpack.c.h.b16 %v3594
    %v4475 = vunpack.c.l.b16 %v3595
    %v4476 = vunpack.c.h.b16 %v3595
    %v4477 = vunpack.c.l.b16 %v3596
    %v4478 = vunpack.c.h.b16 %v3596
    %v4479 = vunpack.c.l.b16 %v3597
    %v4480 = vunpack.c.h.b16 %v3597
    %v4481 = vunpack.c.l.b16 %v3598
    %v4482 = vunpack.c.h.b16 %v3598
    %v4483 = vunpack.c.l.b16 %v3599
    %v4484 = vunpack.c.h.b16 %v3599
    %v4485 = vunpack.c.l.b16 %v3600
    %v4486 = vunpack.c.h.b16 %v3600
    %v4487 = vunpack.c.l.b16 %v3601
    %v4488 = vunpack.c.h.b16 %v3601
    %v4489 = vunpack.c.l.b16 %v3602
    %v4490 = vunpack.c.h.b16 %v3602
    %v4491 = vunpack.c.l.b16 %v3603
    %v4492 = vunpack.c.h.b16 %v3603
    %v4493 = vunpack.c.l.b16 %v3604
    %v4494 = vunpack.c.h.b16 %v3604
    %v4495 = vunpack.c.l.b16 %v3605
    %v4496 = vunpack.c.h.b16 %v3605
    %v4497 = vunpack.c.l.b16 %v3606
    %v4498 = vunpack.c.h.b16 %v3606
    %v4499 = vunpack.c.l.b16 %v3607
    %v4500 = vunpack.c.h.b16 %v3607
    %v4501 = vunpack.c.l.b16 %v3608
    %v4502 = vunpack.c.h.b16 %v3608
    %v4503 = vunpack.c.l.b16 %v3609
    %v4504 = vunpack.c.h.b16 %v3609
    %v4505 = vunpack.c.l.b16 %v3610
    %v4506 = vunpack.c.h.b16 %v3610
    %v4507 = vunpack.c.l.b16 %v3611
    %v4508 = vunpack.c.h.b16 %v3611
    %v4509 = vunpack.c.l.b16 %v3612
    %v4510 = vunpack.c.h.b16 %v3612
    %v4511 = vunpack.c.l.b16 %v3613
    %v4512 = vunpack.c.h.b16 %v3613
    %v4513 = vunpack.c.l.b16 %v3614
    %v4514 = vunpack.c.h.b16 %v3614
    %v4515 = vunpack.c.l.b16 %v3615
    %v4516 = vunpack.c.h.b16 %v3615
    %v4517 = vunpack.c.l.b16 %v3616
    %v4518 = vunpack.c.h.b16 %v3616
    %v4519 = vunpack.c.l.b16 %v3617
    %v4520 = vunpack.c.h.b16 %v3617
    %v4521 = vunpack.c.l.b16 %v3618
    %v4522 = vunpack.c.h.b16 %v3618
    %v4523 = vunpack.c.l.b16 %v3619
    %v4524 = vunpack.c.h.b16 %v3619
    %v4525 = vunpack.c.l.b16 %v3620
    %v4526 = vunpack.c.h.b16 %v3620
    %v4527 = vunpack.c.l.b16 %v3621
    %v4528 = vunpack.c.h.b16 %v3621
    %v4529 = vunpack.c.l.b16 %v3622
    %v4530 = vunpack.c.h.b16 %v3622
    %v4531 = vunpack.c.l.b16 %v3623
    %v4532 = vunpack.c.h.b16 %v3623
    %v4533 = vunpack.c.l.b16 %v3624
    %v4534 = vunpack.c.h.b16 %v3624
    %v4535 = vunpack.c.l.b16 %v3625
    %v4536 = vunpack.c.h.b16 %v3625
    %v4537 = vunpack.c.l.b16 %v3626
    %v4538 = vunpack.c.h.b16 %v3626
    %v4539 = vunpack.c.l.b16 %v3627
    %v4540 = vunpack.c.h.b16 %v3627
    %v4541 = vunpack.c.l.b16 %v3628
    %v4542 = vunpack.c.h.b16 %v3628
    %v4543 = vunpack.c.l.b16 %v3629
    %v4544 = vunpack.c.h.b16 %v3629
    %v4545 = vunpack.c.l.b16 %v3630
    %v4546 = vunpack.c.h.b16 %v3630
    %v4547 = vunpack.c.l.b16 %v3631
    %v4548 = vunpack.c.h.b16 %v3631
    %v4549 = vunpack.c.l.b16 %v3632
    %v4550 = vunpack.c.h.b16 %v3632
    %v4551 = vunpack.c.l.b16 %v3633
    %v4552 = vunpack.c.h.b16 %v3633
    %v4553 = vunpack.c.l.b16 %v3634
    %v4554 = vunpack.c.h.b16 %v3634
    %v4555 = vunpack.c.l.b16 %v3635
    %v4556 = vunpack.c.h.b16 %v3635
    %v4557 = vunpack.c.l.b16 %v3636
    %v4558 = vunpack.c.h.b16 %v3636
    %v4559 = vunpack.c.l.b16 %v3637
    %v4560 = vunpack.c.h.b16 %v3637
    %v4561 = vunpack.c.l.b16 %v3638
    %v4562 = vunpack.c.h.b16 %v3638
    %v4563 = vunpack.c.l.b16 %v3639
    %v4564 = vunpack.c.h.b16 %v3639
    %v4565 = vunpack.c.l.b16 %v3640
    %v4566 = vunpack.c.h.b16 %v3640
    %v4567 = vunpack.c.l.b16 %v3641
    %v4568 = vunpack.c.h.b16 %v3641
    %v4569 = vunpack.c.l.b16 %v3642
    %v4570 = vunpack.c.h.b16 %v3642
    %v4571 = vunpack.c.l.b16 %v3643
    %v4572 = vunpack.c.h.b16 %v3643
    %v4573 = vunpack.c.l.b16 %v3644
    %v4574 = vunpack.c.h.b16 %v3644
    %v4575 = vunpack.c.l.b16 %v3645
    %v4576 = vunpack.c.h.b16 %v3645
    %v4577 = vunpack.c.l.b16 %v3646
    %v4578 = vunpack.c.h.b16 %v3646
    %v4579 = vunpack.c.l.b16 %v3647
    %v4580 = vunpack.c.h.b16 %v3647
    %v4581 = vunpack.c.l.b16 %v3648
    %v4582 = vunpack.c.h.b16 %v3648
    %v4583 = vunpack.c.l.b16 %v3649
    %v4584 = vunpack.c.h.b16 %v3649
    %v4585 = vunpack.c.l.b16 %v3650
    %v4586 = vunpack.c.h.b16 %v3650
    %v4587 = vunpack.c.l.b16 %v3651
    %v4588 = vunpack.c.h.b16 %v3651
    %v4589 = vunpack.c.l.b16 %v3652
    %v4590 = vunpack.c.h.b16 %v3652
    %v4591 = vunpack.c.l.b16 %v3653
    %v4592 = vunpack.c.h.b16 %v3653
    %v4593 = vunpack.c.l.b16 %v3654
    %v4594 = vunpack.c.h.b16 %v3654
    %v4595 = vunpack.c.l.b16 %v3655
    %v4596 = vunpack.c.h.b16 %v3655
    %v4597 = vunpack.c.l.b16 %v3656
    %v4598 = vunpack.c.h.b16 %v3656
    %v4599 = vunpack.c.l.b16 %v3657
    %v4600 = vunpack.c.h.b16 %v3657
    %v4601 = vunpack.c.l.b16 %v3658
    %v4602 = vunpack.c.h.b16 %v3658
    %v4603 = vunpack.c.l.b16 %v3659
    %v4604 = vunpack.c.h.b16 %v3659
    %v4605 = vunpack.c.l.b16 %v3660
    %v4606 = vunpack.c.h.b16 %v3660
    %v4607 = vunpack.c.l.b16 %v3661
    %v4608 = vunpack.c.h.b16 %v3661
    %v4609 = vunpack.c.l.b16 %v3662
    %v4610 = vunpack.c.h.b16 %v3662
    %v4611 = vunpack.c.l.b16 %v3663
    %v4612 = vunpack.c.h.b16 %v3663
    %v4613 = vunpack.c.l.b16 %v3664
    %v4614 = vunpack.c.h.b16 %v3664
    %v4615 = vunpack.c.l.b16 %v3665
    %v4616 = vunpack.c.h.b16 %v3665
    %v4617 = vunpack.c.l.b16 %v3666
    %v4618 = vunpack.c.h.b16 %v3666
    %v4619 = vunpack.c.l.b16 %v3667
    %v4620 = vunpack.c.h.b16 %v3667
    %v4621 = vunpack.c.l.b16 %v3668
    %v4622 = vunpack.c.h.b16 %v3668
    %v4623 = vunpack.c.l.b16 %v3669
    %v4624 = vunpack.c.h.b16 %v3669
    %v4625 = vunpack.c.l.b16 %v3670
    %v4626 = vunpack.c.h.b16 %v3670
    %v4627 = vunpack.c.l.b16 %v3671
    %v4628 = vunpack.c.h.b16 %v3671
    %v4629 = vunpack.c.l.b16 %v3672
    %v4630 = vunpack.c.h.b16 %v3672
    %v4631 = vunpack.c.l.b16 %v3673
    %v4632 = vunpack.c.h.b16 %v3673
    %v4633 = vunpack.c.l.b16 %v3674
    %v4634 = vunpack.c.h.b16 %v3674
    %v4635 = vunpack.c.l.b16 %v3675
    %v4636 = vunpack.c.h.b16 %v3675
    %v4637 = vunpack.c.l.b16 %v3676
    %v4638 = vunpack.c.h.b16 %v3676
    %v4639 = vunpack.c.l.b16 %v3677
    %v4640 = vunpack.c.h.b16 %v3677
    %v4641 = vunpack.c.l.b16 %v3678
    %v4642 = vunpack.c.h.b16 %v3678
    %v4643 = vunpack.c.l.b16 %v3679
    %v4644 = vunpack.c.h.b16 %v3679
    %v4645 = vunpack.c.l.b16 %v3680
    %v4646 = vunpack.c.h.b16 %v3680
    %v4647 = vunpack.c.l.b16 %v3681
    %v4648 = vunpack.c.h.b16 %v3681
    %v4649 = vunpack.c.l.b16 %v3682
    %v4650 = vunpack.c.h.b16 %v3682
    %v4651 = vunpack.c.l.b16 %v3683
    %v4652 = vunpack.c.h.b16 %v3683
    %v4653 = vunpack.c.l.b16 %v3684
    %v4654 = vunpack.c.h.b16 %v3684
    %v4655 = vunpack.c.l.b16 %v3685
    %v4656 = vunpack.c.h.b16 %v3685
    %v4657 = vunpack.c.l.b16 %v3686
    %v4658 = vunpack.c.h.b16 %v3686
    %v4659 = vunpack.c.l.b16 %v3687
    %v4660 = vunpack.c.h.b16 %v3687
    %v4661 = vunpack.c.l.b16 %v3688
    %v4662 = vunpack.c.h.b16 %v3688
    %v4663 = vunpack.c.l.b16 %v3689
    %v4664 = vunpack.c.h.b16 %v3689
    %v4665 = vunpack.c.l.b16 %v3690
    %v4666 = vunpack.c.h.b16 %v3690
    %v4667 = vunpack.c.l.b16 %v3691
    %v4668 = vunpack.c.h.b16 %v3691
    %v4669 = vunpack.c.l.b16 %v3692
    %v4670 = vunpack.c.h.b16 %v3692
    %v4671 = vunpack.c.l.b16 %v3693
    %v4672 = vunpack.c.h.b16 %v3693
    %v4673 = vunpack.c.l.b16 %v3694
    %v4674 = vunpack.c.h.b16 %v3694
    %v4675 = vunpack.c.l.b16 %v3695
    %v4676 = vunpack.c.h.b16 %v3695
    %v4677 = vunpack.c.l.b16 %v3696
    %v4678 = vunpack.c.h.b16 %v3696
    %v4679 = vunpack.c.l.b16 %v3697
    %v4680 = vunpack.c.h.b16 %v3697
    %v4681 = vunpack.c.l.b16 %v3698
    %v4682 = vunpack.c.h.b16 %v3698
    %v4683 = vunpack.c.l.b16 %v3699
    %v4684 = vunpack.c.h.b16 %v3699
    %v4685 = vunpack.c.l.b16 %v3700
    %v4686 = vunpack.c.h.b16 %v3700
    %v4687 = vunpack.c.l.b16 %v3701
    %v4688 = vunpack.c.h.b16 %v3701
    %v4689 = vunpack.c.l.b16 %v3702
    %v4690 = vunpack.c.h.b16 %v3702
    %v4691 = vunpack.c.l.b16 %v3703
    %v4692 = vunpack.c.h.b16 %v3703
    %v4693 = vunpack.c.l.b16 %v3704
    %v4694 = vunpack.c.h.b16 %v3704
    %v4695 = vunpack.c.l.b16 %v3705
    %v4696 = vunpack.c.h.b16 %v3705
    %v4697 = vunpack.c.l.b16 %v3706
    %v4698 = vunpack.c.h.b16 %v3706
    %v4699 = vunpack.c.l.b16 %v3707
    %v4700 = vunpack.c.h.b16 %v3707
    %v4701 = vunpack.c.l.b16 %v3708
    %v4702 = vunpack.c.h.b16 %v3708
    %v4703 = vunpack.c.l.b16 %v3709
    %v4704 = vunpack.c.h.b16 %v3709
    %v4705 = vunpack.c.l.b16 %v3710
    %v4706 = vunpack.c.h.b16 %v3710
    %v4707 = vunpack.c.l.b16 %v3711
    %v4708 = vunpack.c.h.b16 %v3711
    %v4709 = vunpack.c.l.b16 %v3712
    %v4710 = vunpack.c.h.b16 %v3712
    %v4711 = vunpack.c.l.b16 %v3713
    %v4712 = vunpack.c.h.b16 %v3713
    %v4713 = vunpack.c.l.b16 %v3714
    %v4714 = vunpack.c.h.b16 %v3714
    %v4715 = vunpack.c.l.b16 %v3715
    %v4716 = vunpack.c.h.b16 %v3715
    %v4717 = vunpack.c.l.b16 %v3716
    %v4718 = vunpack.c.h.b16 %v3716
    %v4719 = vunpack.c.l.b16 %v3717
    %v4720 = vunpack.c.h.b16 %v3717
    %v4721 = vunpack.c.l.b16 %v3718
    %v4722 = vunpack.c.h.b16 %v3718
    %v4723 = vunpack.c.l.b16 %v3719
    %v4724 = vunpack.c.h.b16 %v3719
    %v4725 = vunpack.c.l.b16 %v3720
    %v4726 = vunpack.c.h.b16 %v3720
    %v4727 = vunpack.c.l.b16 %v3721
    %v4728 = vunpack.c.h.b16 %v3721
    %v4729 = vunpack.c.l.b16 %v3722
    %v4730 = vunpack.c.h.b16 %v3722
    %v4731 = vunpack.c.l.b16 %v3723
    %v4732 = vunpack.c.h.b16 %v3723
    %v4733 = vunpack.c.l.b16 %v3724
    %v4734 = vunpack.c.h.b16 %v3724
    %v4735 = vunpack.c.l.b16 %v3725
    %v4736 = vunpack.c.h.b16 %v3725
    %v4737 = vunpack.c.l.b16 %v3726
    %v4738 = vunpack.c.h.b16 %v3726
    %v4739 = vunpack.c.l.b16 %v3727
    %v4740 = vunpack.c.h.b16 %v3727
    %v4741 = vunpack.c.l.b16 %v3728
    %v4742 = vunpack.c.h.b16 %v3728
    %v4743 = vunpack.c.l.b16 %v3729
    %v4744 = vunpack.c.h.b16 %v3729
    %v4745 = vunpack.c.l.b16 %v3730
    %v4746 = vunpack.c.h.b16 %v3730
    %v4747 = vunpack.c.l.b16 %v3731
    %v4748 = vunpack.c.h.b16 %v3731
    %v4749 = vunpack.c.l.b16 %v3732
    %v4750 = vunpack.c.h.b16 %v3732
    %v4751 = vunpack.c.l.b16 %v3733
    %v4752 = vunpack.c.h.b16 %v3733
    %v4753 = vunpack.c.l.b16 %v3734
    %v4754 = vunpack.c.h.b16 %v3734
    %v4755 = vunpack.c.l.b16 %v3735
    %v4756 = vunpack.c.h.b16 %v3735
    %v4757 = vunpack.c.l.b16 %v3736
    %v4758 = vunpack.c.h.b16 %v3736
    %v4759 = vunpack.c.l.b16 %v3737
    %v4760 = vunpack.c.h.b16 %v3737
    %v4761 = vunpack.c.l.b16 %v3738
    %v4762 = vunpack.c.h.b16 %v3738
    %v4763 = vunpack.c.l.b16 %v3739
    %v4764 = vunpack.c.h.b16 %v3739
    %v4765 = vunpack.c.l.b16 %v3740
    %v4766 = vunpack.c.h.b16 %v3740
    %v4767 = vunpack.c.l.b16 %v3741
    %v4768 = vunpack.c.h.b16 %v3741
    %v4769 = vunpack.c.l.b16 %v3742
    %v4770 = vunpack.c.h.b16 %v3742
    %v4771 = vunpack.c.l.b16 %v3743
    %v4772 = vunpack.c.h.b16 %v3743
    %v4773 = vunpack.c.l.b16 %v3744
    %v4774 = vunpack.c.h.b16 %v3744
    %v4775 = vunpack.c.l.b16 %v3745
    %v4776 = vunpack.c.h.b16 %v3745
    %v4777 = vunpack.c.l.b16 %v3746
    %v4778 = vunpack.c.h.b16 %v3746
    %v4779 = vunpack.c.l.b16 %v3747
    %v4780 = vunpack.c.h.b16 %v3747
    %v4781 = vunpack.c.l.b16 %v3748
    %v4782 = vunpack.c.h.b16 %v3748
    %v4783 = vunpack.c.l.b16 %v3749
    %v4784 = vunpack.c.h.b16 %v3749
    %v4785 = vunpack.c.l.b16 %v3750
    %v4786 = vunpack.c.h.b16 %v3750
    %v4787 = vunpack.c.l.b16 %v3751
    %v4788 = vunpack.c.h.b16 %v3751
    %v4789 = vunpack.c.l.b16 %v3752
    %v4790 = vunpack.c.h.b16 %v3752
    %v4791 = vunpack.c.l.b16 %v3753
    %v4792 = vunpack.c.h.b16 %v3753
    %v4793 = vunpack.c.l.b16 %v3754
    %v4794 = vunpack.c.h.b16 %v3754
    %v4795 = vunpack.c.l.b16 %v3755
    %v4796 = vunpack.c.h.b16 %v3755
    %v4797 = vunpack.c.l.b16 %v3756
    %v4798 = vunpack.c.h.b16 %v3756
    %v4799 = vunpack.c.l.b16 %v3757
    %v4800 = vunpack.c.h.b16 %v3757
    %v4801 = vunpack.c.l.b16 %v3758
    %v4802 = vunpack.c.h.b16 %v3758
    %v4803 = vunpack.c.l.b16 %v3759
    %v4804 = vunpack.c.h.b16 %v3759
    %v4805 = vunpack.c.l.b16 %v3760
    %v4806 = vunpack.c.h.b16 %v3760
    %v4807 = vunpack.c.l.b16 %v3761
    %v4808 = vunpack.c.h.b16 %v3761
    %v4809 = vunpack.c.l.b16 %v3762
    %v4810 = vunpack.c.h.b16 %v3762
    %v4811 = vunpack.c.l.b16 %v3763
    %v4812 = vunpack.c.h.b16 %v3763
    %v4813 = vunpack.c.l.b16 %v3764
    %v4814 = vunpack.c.h.b16 %v3764
    %v4815 = vunpack.c.l.b16 %v3765
    %v4816 = vunpack.c.h.b16 %v3765
    %v4817 = vunpack.c.l.b16 %v3766
    %v4818 = vunpack.c.h.b16 %v3766
    %v4819 = vunpack.c.l.b16 %v3767
    %v4820 = vunpack.c.h.b16 %v3767
    %v4821 = vunpack.c.l.b16 %v3768
    %v4822 = vunpack.c.h.b16 %v3768
    %v4823 = vunpack.c.l.b16 %v3769
    %v4824 = vunpack.c.h.b16 %v3769
    %v4825 = vunpack.c.l.b16 %v3770
    %v4826 = vunpack.c.h.b16 %v3770
    %v4827 = vunpack.c.l.b16 %v3771
    %v4828 = vunpack.c.h.b16 %v3771
    %v4829 = vunpack.c.l.b16 %v3772
    %v4830 = vunpack.c.h.b16 %v3772
    %v4831 = vunpack.c.l.b16 %v3773
    %v4832 = vunpack.c.h.b16 %v3773
    %v4833 = vunpack.c.l.b16 %v3774
    %v4834 = vunpack.c.h.b16 %v3774
    %v4835 = vunpack.c.l.b16 %v3775
    %v4836 = vunpack.c.h.b16 %v3775
    %v4837 = vunpack.c.l.b16 %v3776
    %v4838 = vunpack.c.h.b16 %v3776
    %v4839 = vunpack.c.l.b16 %v3777
    %v4840 = vunpack.c.h.b16 %v3777
    %v4841 = vunpack.c.l.b16 %v3778
    %v4842 = vunpack.c.h.b16 %v3778
    %v4843 = vunpack.c.l.b16 %v3779
    %v4844 = vunpack.c.h.b16 %v3779
    %v4845 = vunpack.c.l.b16 %v3780
    %v4846 = vunpack.c.h.b16 %v3780
    %v4847 = vunpack.c.l.b16 %v3781
    %v4848 = vunpack.c.h.b16 %v3781
    %v4849 = vunpack.c.l.b16 %v3782
    %v4850 = vunpack.c.h.b16 %v3782
    %v4851 = vunpack.c.l.b16 %v3783
    %v4852 = vunpack.c.h.b16 %v3783
    %v4853 = vunpack.c.l.b16 %v3784
    %v4854 = vunpack.c.h.b16 %v3784
    %v4855 = vunpack.c.l.b16 %v3785
    %v4856 = vunpack.c.h.b16 %v3785
    %v4857 = vunpack.c.l.b16 %v3786
    %v4858 = vunpack.c.h.b16 %v3786
    %v4859 = vunpack.c.l.b16 %v3787
    %v4860 = vunpack.c.h.b16 %v3787
    %v4861 = vunpack.c.l.b16 %v3788
    %v4862 = vunpack.c.h.b16 %v3788
    %v4863 = vunpack.c.l.b16 %v3789
    %v4864 = vunpack.c.h.b16 %v3789
    %v4865 = vunpack.c.l.b16 %v3790
    %v4866 = vunpack.c.h.b16 %v3790
    %v4867 = vunpack.c.l.b16 %v3791
    %v4868 = vunpack.c.h.b16 %v3791
    %v4869 = vunpack.c.l.b16 %v3792
    %v4870 = vunpack.c.h.b16 %v3792
    %v4871 = vunpack.c.l.b16 %v3793
    %v4872 = vunpack.c.h.b16 %v3793
    %v4873 = vunpack.c.l.b16 %v3794
    %v4874 = vunpack.c.h.b16 %v3794
    %v4875 = vunpack.c.l.b16 %v3795
    %v4876 = vunpack.c.h.b16 %v3795
    %v4877 = vunpack.c.l.b16 %v3796
    %v4878 = vunpack.c.h.b16 %v3796
    %v4879 = vunpack.c.l.b16 %v3797
    %v4880 = vunpack.c.h.b16 %v3797
    %v4881 = vunpack.c.l.b16 %v3798
    %v4882 = vunpack.c.h.b16 %v3798
    %v4883 = vunpack.c.l.b16 %v3799
    %v4884 = vunpack.c.h.b16 %v3799
    %v4885 = vunpack.c.l.b16 %v3800
    %v4886 = vunpack.c.h.b16 %v3800
    %v4887 = vunpack.c.l.b16 %v3801
    %v4888 = vunpack.c.h.b16 %v3801
    %v4889 = vunpack.c.l.b16 %v3802
    %v4890 = vunpack.c.h.b16 %v3802
    %v4891 = vunpack.c.l.b16 %v3803
    %v4892 = vunpack.c.h.b16 %v3803
    %v4893 = vunpack.c.l.b16 %v3804
    %v4894 = vunpack.c.h.b16 %v3804
    %v4895 = vunpack.c.l.b16 %v3805
    %v4896 = vunpack.c.h.b16 %v3805
    %v4897 = vunpack.c.l.b16 %v3806
    %v4898 = vunpack.c.h.b16 %v3806
    %v4899 = vunpack.c.l.b16 %v3807
    %v4900 = vunpack.c.h.b16 %v3807
    %v4901 = vunpack.c.l.b16 %v3808
    %v4902 = vunpack.c.h.b16 %v3808
    %v4903 = vunpack.c.l.b16 %v3809
    %v4904 = vunpack.c.h.b16 %v3809
    %v4905 = vunpack.c.l.b16 %v3810
    %v4906 = vunpack.c.h.b16 %v3810
    %v4907 = vunpack.c.l.b16 %v3811
    %v4908 = vunpack.c.h.b16 %v3811
    %v4909 = vunpack.c.l.b16 %v3812
    %v4910 = vunpack.c.h.b16 %v3812
    %v4911 = vunpack.c.l.b16 %v3813
    %v4912 = vunpack.c.h.b16 %v3813
    %v4913 = vunpack.c.l.b16 %v3814
    %v4914 = vunpack.c.h.b16 %v3814
    %v4915 = vunpack.c.l.b16 %v3815
    %v4916 = vunpack.c.h.b16 %v3815
    %v4917 = vunpack.c.l.b16 %v3816
    %v4918 = vunpack.c.h.b16 %v3816
    %v4919 = vunpack.c.l.b16 %v3817
    %v4920 = vunpack.c.h.b16 %v3817
    %v4921 = vunpack.c.l.b16 %v3818
    %v4922 = vunpack.c.h.b16 %v3818
    %v4923 = vunpack.c.l.b16 %v3819
    %v4924 = vunpack.c.h.b16 %v3819
    %v4925 = vunpack.c.l.b16 %v3820
    %v4926 = vunpack.c.h.b16 %v3820
    %v4927 = vunpack.c.l.b16 %v3821
    %v4928 = vunpack.c.h.b16 %v3821
    %v4929 = vunpack.c.l.b16 %v3822
    %v4930 = vunpack.c.h.b16 %v3822
    %v4931 = vunpack.c.l.b16 %v3823
    %v4932 = vunpack.c.h.b16 %v3823
    %v4933 = vunpack.c.l.b16 %v3824
    %v4934 = vunpack.c.h.b16 %v3824
    %v4935 = vunpack.c.l.b16 %v3825
    %v4936 = vunpack.c.h.b16 %v3825
    %v4937 = vunpack.c.l.b16 %v3826
    %v4938 = vunpack.c.h.b16 %v3826
    %v4939 = vunpack.c.l.b16 %v3827
    %v4940 = vunpack.c.h.b16 %v3827
    %v4941 = vunpack.c.l.b16 %v3828
    %v4942 = vunpack.c.h.b16 %v3828
    %v4943 = vunpack.c.l.b16 %v3829
    %v4944 = vunpack.c.h.b16 %v3829
    %v4945 = vunpack.c.l.b16 %v3830
    %v4946 = vunpack.c.h.b16 %v3830
    %v4947 = vunpack.c.l.b16 %v3831
    %v4948 = vunpack.c.h.b16 %v3831
    %v4949 = vunpack.c.l.b16 %v3832
    %v4950 = vunpack.c.h.b16 %v3832
    %v4951 = vunpack.c.l.b16 %v3833
    %v4952 = vunpack.c.h.b16 %v3833
    %v4953 = vunpack.c.l.b16 %v3834
    %v4954 = vunpack.c.h.b16 %v3834
    %v4955 = vunpack.c.l.b16 %v3835
    %v4956 = vunpack.c.h.b16 %v3835
    %v4957 = vunpack.c.l.b16 %v3836
    %v4958 = vunpack.c.h.b16 %v3836
    %v4959 = vunpack.c.l.b16 %v3837
    %v4960 = vunpack.c.h.b16 %v3837
    %v4961 = vunpack.c.l.b16 %v3838
    %v4962 = vunpack.c.h.b16 %v3838
    %v4963 = vunpack.c.l.b16 %v3839
    %v4964 = vunpack.c.h.b16 %v3839
    %v4965 = vunpack.c.l.b16 %v3840
    %v4966 = vunpack.c.h.b16 %v3840
    %v4967 = vunpack.c.l.b16 %v3841
    %v4968 = vunpack.c.h.b16 %v3841
    %v4969 = vunpack.c.l.b16 %v3842
    %v4970 = vunpack.c.h.b16 %v3842
    %v4971 = vunpack.c.l.b16 %v3843
    %v4972 = vunpack.c.h.b16 %v3843
    %v4973 = vunpack.c.l.b16 %v3844
    %v4974 = vunpack.c.h.b16 %v3844
    %v4975 = vunpack.c.l.b16 %v3845
    %v4976 = vunpack.c.h.b16 %v3845
    %v4977 = vunpack.c.l.b16 %v3846
    %v4978 = vunpack.c.h.b16 %v3846
    %v4979 = vunpack.c.l.b16 %v3847
    %v4980 = vunpack.c.h.b16 %v3847
    %v4981 = vunpack.c.l.b16 %v3848
    %v4982 = vunpack.c.h.b16 %v3848
    %v4983 = vunpack.c.l.b16 %v3849
    %v4984 = vunpack.c.h.b16 %v3849
    %v4985 = vunpack.c.l.b16 %v3850
    %v4986 = vunpack.c.h.b16 %v3850
    %v4987 = vunpack.c.l.b16 %v3851
    %v4988 = vunpack.c.h.b16 %v3851
    %v4989 = vunpack.c.l.b16 %v3852
    %v4990 = vunpack.c.h.b16 %v3852
    %v4991 = vunpack.c.l.b16 %v3853
    %v4992 = vunpack.c.h.b16 %v3853
    %v4993 = vunpack.c.l.b16 %v3854
    %v4994 = vunpack.c.h.b16 %v3854
    %v4995 = vunpack.c.l.b16 %v3855
    %v4996 = vunpack.c.h.b16 %v3855
    %v4997 = vunpack.c.l.b16 %v3856
    %v4998 = vunpack.c.h.b16 %v3856
    %v4999 = vunpack.c.l.b16 %v3857
    %v5000 = vunpack.c.h.b16 %v3857
    %v5001 = vunpack.c.l.b16 %v3858
    %v5002 = vunpack.c.h.b16 %v3858
    %v5003 = vunpack.c.l.b16 %v3859
    %v5004 = vunpack.c.h.b16 %v3859
    %v5005 = vunpack.c.l.b16 %v3860
    %v5006 = vunpack.c.h.b16 %v3860
    %v5007 = vunpack.c.l.b16 %v3861
    %v5008 = vunpack.c.h.b16 %v3861
    %v5009 = vunpack.c.l.b16 %v3862
    %v5010 = vunpack.c.h.b16 %v3862
    %v5011 = vunpack.c.l.b16 %v3863
    %v5012 = vunpack.c.h.b16 %v3863
    %v5013 = vunpack.c.l.b16 %v3864
    %v5014 = vunpack.c.h.b16 %v3864
    %v5015 = vunpack.c.l.b16 %v3865
    %v5016 = vunpack.c.h.b16 %v3865
    %v5017 = vunpack.c.l.b16 %v3866
    %v5018 = vunpack.c.h.b16 %v3866
    %v5019 = vunpack.c.l.b16 %v3867
    %v5020 = vunpack.c.h.b16 %v3867
    %v5021 = vunpack.c.l.b16 %v3868
    %v5022 = vunpack.c.h.b16 %v3868
    %v5023 = vunpack.c.l.b16 %v3869
    %v5024 = vunpack.c.h.b16 %v3869
    %v5025 = vunpack.c.l.b16 %v3870
    %v5026 = vunpack.c.h.b16 %v3870
    %v5027 = vunpack.c.l.b16 %v3871
    %v5028 = vunpack.c.h.b16 %v3871
    %v5029 = vunpack.c.l.b16 %v3872
    %v5030 = vunpack.c.h.b16 %v3872
    %v5031 = vunpack.c.l.b16 %v3873
    %v5032 = vunpack.c.h.b16 %v3873
    %v5033 = vunpack.c.l.b16 %v3874
    %v5034 = vunpack.c.h.b16 %v3874
    %v5035 = vunpack.c.l.b16 %v3875
    %v5036 = vunpack.c.h.b16 %v3875
    %v5037 = vunpack.c.l.b16 %v3876
    %v5038 = vunpack.c.h.b16 %v3876
    %v5039 = vunpack.c.l.b16 %v3877
    %v5040 = vunpack.c.h.b16 %v3877
    %v5041 = vunpack.c.l.b16 %v3878
    %v5042 = vunpack.c.h.b16 %v3878
    %v5043 = vunpack.c.l.b16 %v3879
    %v5044 = vunpack.c.h.b16 %v3879
    %v5045 = vunpack.c.l.b16 %v3880
    %v5046 = vunpack.c.h.b16 %v3880
    %v5047 = vunpack.c.l.b16 %v3881
    %v5048 = vunpack.c.h.b16 %v3881
    %v5049 = vunpack.c.l.b16 %v3882
    %v5050 = vunpack.c.h.b16 %v3882
    %v5051 = vunpack.c.l.b16 %v3883
    %v5052 = vunpack.c.h.b16 %v3883
    %v5053 = vunpack.c.l.b16 %v3884
    %v5054 = vunpack.c.h.b16 %v3884
    %v5055 = vunpack.c.l.b16 %v3885
    %v5056 = vunpack.c.h.b16 %v3885
    %v5057 = vunpack.c.l.b16 %v3886
    %v5058 = vunpack.c.h.b16 %v3886
    %v5059 = vunpack.c.l.b16 %v3887
    %v5060 = vunpack.c.h.b16 %v3887
    %v5061 = vunpack.c.l.b16 %v3888
    %v5062 = vunpack.c.h.b16 %v3888
    %v5063 = vunpack.c.l.b16 %v3889
    %v5064 = vunpack.c.h.b16 %v3889
    %v5065 = vunpack.c.l.b16 %v3890
    %v5066 = vunpack.c.h.b16 %v3890
    %v5067 = vunpack.c.l.b16 %v3891
    %v5068 = vunpack.c.h.b16 %v3891
    %v5069 = vunpack.c.l.b16 %v3892
    %v5070 = vunpack.c.h.b16 %v3892
    %v5071 = vunpack.c.l.b16 %v3893
    %v5072 = vunpack.c.h.b16 %v3893
    %v5073 = vunpack.c.l.b16 %v3894
    %v5074 = vunpack.c.h.b16 %v3894
    %v5075 = vunpack.c.l.b16 %v3895
    %v5076 = vunpack.c.h.b16 %v3895
    %v5077 = vunpack.c.l.b16 %v3896
    %v5078 = vunpack.c.h.b16 %v3896
    %v5079 = vunpack.c.l.b16 %v3897
    %v5080 = vunpack.c.h.b16 %v3897
    %v5081 = vunpack.c.l.b16 %v3898
    %v5082 = vunpack.c.h.b16 %v3898
    %v5083 = vunpack.c.l.b16 %v3899
    %v5084 = vunpack.c.h.b16 %v3899
    %v5085 = vunpack.c.l.b16 %v3900
    %v5086 = vunpack.c.h.b16 %v3900
    %v5087 = vunpack.c.l.b16 %v3901
    %v5088 = vunpack.c.h.b16 %v3901
    %v5089 = vunpack.c.l.b16 %v3902
    %v5090 = vunpack.c.h.b16 %v3902
    %v5091 = vunpack.c.l.b16 %v3903
    %v5092 = vunpack.c.h.b16 %v3903
    %v5093 = vunpack.c.l.b16 %v3904
    %v5094 = vunpack.c.h.b16 %v3904
    %v5095 = vunpack.c.l.b16 %v3905
    %v5096 = vunpack.c.h.b16 %v3905
    %v5097 = vunpack.c.l.b16 %v3906
    %v5098 = vunpack.c.h.b16 %v3906
    %v5099 = vunpack.c.l.b16 %v3907
    %v5100 = vunpack.c.h.b16 %v3907
    %v5101 = vunpack.c.l.b16 %v3908
    %v5102 = vunpack.c.h.b16 %v3908
    %v5103 = vunpack.c.l.b16 %v3909
    %v5104 = vunpack.c.h.b16 %v3909
    %v5105 = vunpack.c.l.b16 %v3910
    %v5106 = vunpack.c.h.b16 %v3910
    %v5107 = vunpack.c.l.b16 %v3911
    %v5108 = vunpack.c.h.b16 %v3911
    %v5109 = vunpack.c.l.b16 %v3912
    %v5110 = vunpack.c.h.b16 %v3912
    %v5111 = vunpack.c.l.b16 %v3913
    %v5112 = vunpack.c.h.b16 %v3913
    %v5113 = vunpack.c.l.b16 %v3914
    %v5114 = vunpack.c.h.b16 %v3914
    %v5115 = vunpack.c.l.b16 %v3915
    %v5116 = vunpack.c.h.b16 %v3915
    %v5117 = vunpack.c.l.b16 %v3916
    %v5118 = vunpack.c.h.b16 %v3916
    %v5119 = vunpack.c.l.b16 %v3917
    %v5120 = vunpack.c.h.b16 %v3917
    %v5121 = vunpack.c.l.b16 %v3918
    %v5122 = vunpack.c.h.b16 %v3918
    %v5123 = vunpack.c.l.b16 %v3919
    %v5124 = vunpack.c.h.b16 %v3919
    %v5125 = vunpack.c.l.b16 %v3920
    %v5126 = vunpack.c.h.b16 %v3920
    %v5127 = vunpack.c.l.b16 %v3921
    %v5128 = vunpack.c.h.b16 %v3921
    %v5129 = vunpack.c.l.b16 %v3922
    %v5130 = vunpack.c.h.b16 %v3922
    %v5131 = vunpack.c.l.b16 %v3923
    %v5132 = vunpack.c.h.b16 %v3923
    %v5133 = vunpack.c.l.b16 %v3924
    %v5134 = vunpack.c.h.b16 %v3924
    %v5135 = vunpack.c.l.b16 %v3925
    %v5136 = vunpack.c.h.b16 %v3925
    %v5137 = vunpack.c.l.b16 %v3926
    %v5138 = vunpack.c.h.b16 %v3926
    %v5139 = vunpack.c.l.b16 %v3927
    %v5140 = vunpack.c.h.b16 %v3927
    %v5141 = vunpack.c.l.b16 %v3928
    %v5142 = vunpack.c.h.b16 %v3928
    %v5143 = vpack.c.b16 %v4387, %v4375
    %v5144 = vpack.c.b16 %v4388, %v4376
    %v5145 = vpack.c.b16 %v4389, %v4377
    %v5146 = vpack.c.b16 %v4390, %v4378
    %v5147 = vpack.c.b16 %v4391, %v4379
    %v5148 = vpack.c.b16 %v4392, %v4380
    %v5149 = vpack.c.b16 %v4393, %v4381
    %v5150 = vpack.c.b16 %v4394, %v4382
    %v5151 = vpack.c.b16 %v4395, %v4383
    %v5152 = vpack.c.b16 %v4396, %v4384
    %v5153 = vpack.c.b16 %v4397, %v4385
    %v5154 = vpack.c.b16 %v4398, %v4386
    %v5155 = vpack.c.b16 %v4411, %v4399
    %v5156 = vpack.c.b16 %v4412, %v4400
    %v5157 = vpack.c.b16 %v4413, %v4401
    %v5158 = vpack.c.b16 %v4414, %v4402
    %v5159 = vpack.c.b16 %v4415, %v4403
    %v5160 = vpack.c.b16 %v4416, %v4404
    %v5161 = vpack.c.b16 %v4417, %v4405
    %v5162 = vpack.c.b16 %v4418, %v4406
    %v5163 = vpack.c.b16 %v4419, %v4407
    %v5164 = vpack.c.b16 %v4420, %v4408
    %v5165 = vpack.c.b16 %v4421, %v4409
    %v5166 = vpack.c.b16 %v4422, %v4410
    %v5167 = vpack.c.b16 %v4435, %v4423
    %v5168 = vpack.c.b16 %v4436, %v4424
    %v5169 = vpack.c.b16 %v4437, %v4425
    %v5170 = vpack.c.b16 %v4438, %v4426
    %v5171 = vpack.c.b16 %v4439, %v4427
    %v5172 = vpack.c.b16 %v4440, %v4428
    %v5173 = vpack.c.b16 %v4441, %v4429
    %v5174 = vpack.c.b16 %v4442, %v4430
    %v5175 = vpack.c.b16 %v4443, %v4431
    %v5176 = vpack.c.b16 %v4444, %v4432
    %v5177 = vpack.c.b16 %v4445, %v4433
    %v5178 = vpack.c.b16 %v4446, %v4434
    %v5179 = vpack.c.b16 %v4459, %v4447
    %v5180 = vpack.c.b16 %v4460, %v4448
    %v5181 = vpack.c.b16 %v4461, %v4449
    %v5182 = vpack.c.b16 %v4462, %v4450
    %v5183 = vpack.c.b16 %v4463, %v4451
    %v5184 = vpack.c.b16 %v4464, %v4452
    %v5185 = vpack.c.b16 %v4465, %v4453
    %v5186 = vpack.c.b16 %v4466, %v4454
    %v5187 = vpack.c.b16 %v4467, %v4455
    %v5188 = vpack.c.b16 %v4468, %v4456
    %v5189 = vpack.c.b16 %v4469, %v4457
    %v5190 = vpack.c.b16 %v4470, %v4458
    %v5191 = vpack.c.b16 %v4483, %v4471
    %v5192 = vpack.c.b16 %v4484, %v4472
    %v5193 = vpack.c.b16 %v4485, %v4473
    %v5194 = vpack.c.b16 %v4486, %v4474
    %v5195 = vpack.c.b16 %v4487, %v4475
    %v5196 = vpack.c.b16 %v4488, %v4476
    %v5197 = vpack.c.b16 %v4489, %v4477
    %v5198 = vpack.c.b16 %v4490, %v4478
    %v5199 = vpack.c.b16 %v4491, %v4479
    %v5200 = vpack.c.b16 %v4492, %v4480
    %v5201 = vpack.c.b16 %v4493, %v4481
    %v5202 = vpack.c.b16 %v4494, %v4482
    %v5203 = vpack.c.b16 %v4507, %v4495
    %v5204 = vpack.c.b16 %v4508, %v4496
    %v5205 = vpack.c.b16 %v4509, %v4497
    %v5206 = vpack.c.b16 %v4510, %v4498
    %v5207 = vpack.c.b16 %v4511, %v4499
    %v5208 = vpack.c.b16 %v4512, %v4500
    %v5209 = vpack.c.b16 %v4513, %v4501
    %v5210 = vpack.c.b16 %v4514, %v4502
    %v5211 = vpack.c.b16 %v4515, %v4503
    %v5212 = vpack.c.b16 %v4516, %v4504
    %v5213 = vpack.c.b16 %v4517, %v4505
    %v5214 = vpack.c.b16 %v4518, %v4506
    %v5215 = vpack.c.b16 %v4531, %v4519
    %v5216 = vpack.c.b16 %v4532, %v4520
    %v5217 = vpack.c.b16 %v4533, %v4521
    %v5218 = vpack.c.b16 %v4534, %v4522
    %v5219 = vpack.c.b16 %v4535, %v4523
    %v5220 = vpack.c.b16 %v4536, %v4524
    %v5221 = vpack.c.b16 %v4537, %v4525
    %v5222 = vpack.c.b16 %v4538, %v4526
    %v5223 = vpack.c.b16 %v4539, %v4527
    %v5224 = vpack.c.b16 %v4540, %v4528
    %v5225 = vpack.c.b16 %v4541, %v4529
    %v5226 = vpack.c.b16 %v4542, %v4530
    %v5227 = vpack.c.b16 %v4555, %v4543
    %v5228 = vpack.c.b16 %v4556, %v4544
    %v5229 = vpack.c.b16 %v4557, %v4545
    %v5230 = vpack.c.b16 %v4558, %v4546
    %v5231 = vpack.c.b16 %v4559, %v4547
    %v5232 = vpack.c.b16 %v4560, %v4548
    %v5233 = vpack.c.b16 %v4561, %v4549
    %v5234 = vpack.c.b16 %v4562, %v4550
    %v5235 = vpack.c.b16 %v4563, %v4551
    %v5236 = vpack.c.b16 %v4564, %v4552
    %v5237 = vpack.c.b16 %v4565, %v4553
    %v5238 = vpack.c.b16 %v4566, %v4554
    %v5239 = vpack.c.b16 %v4579, %v4567
    %v5240 = vpack.c.b16 %v4580, %v4568
    %v5241 = vpack.c.b16 %v4581, %v4569
    %v5242 = vpack.c.b16 %v4582, %v4570
    %v5243 = vpack.c.b16 %v4583, %v4571
    %v5244 = vpack.c.b16 %v4584, %v4572
    %v5245 = vpack.c.b16 %v4585, %v4573
    %v5246 = vpack.c.b16 %v4586, %v4574
    %v5247 = vpack.c.b16 %v4587, %v4575
    %v5248 = vpack.c.b16 %v4588, %v4576
    %v5249 = vpack.c.b16 %v4589, %v4577
    %v5250 = vpack.c.b16 %v4590, %v4578
    %v5251 = vpack.c.b16 %v4603, %v4591
    %v5252 = vpack.c.b16 %v4604, %v4592
    %v5253 = vpack.c.b16 %v4605, %v4593
    %v5254 = vpack.c.b16 %v4606, %v4594
    %v5255 = vpack.c.b16 %v4607, %v4595
    %v5256 = vpack.c.b16 %v4608, %v4596
    %v5257 = vpack.c.b16 %v4609, %v4597
    %v5258 = vpack.c.b16 %v4610, %v4598
    %v5259 = vpack.c.b16 %v4611, %v4599
    %v5260 = vpack.c.b16 %v4612, %v4600
    %v5261 = vpack.c.b16 %v4613, %v4601
    %v5262 = vpack.c.b16 %v4614, %v4602
    %v5263 = vpack.c.b16 %v4627, %v4615
    %v5264 = vpack.c.b16 %v4628, %v4616
    %v5265 = vpack.c.b16 %v4629, %v4617
    %v5266 = vpack.c.b16 %v4630, %v4618
    %v5267 = vpack.c.b16 %v4631, %v4619
    %v5268 = vpack.c.b16 %v4632, %v4620
    %v5269 = vpack.c.b16 %v4633, %v4621
    %v5270 = vpack.c.b16 %v4634, %v4622
    %v5271 = vpack.c.b16 %v4635, %v4623
    %v5272 = vpack.c.b16 %v4636, %v4624
    %v5273 = vpack.c.b16 %v4637, %v4625
    %v5274 = vpack.c.b16 %v4638, %v4626
    %v5275 = vpack.c.b16 %v4651, %v4639
    %v5276 = vpack.c.b16 %v4652, %v4640
    %v5277 = vpack.c.b16 %v4653, %v4641
    %v5278 = vpack.c.b16 %v4654, %v4642
    %v5279 = vpack.c.b16 %v4655, %v4643
    %v5280 = vpack.c.b16 %v4656, %v4644
    %v5281 = vpack.c.b16 %v4657, %v4645
    %v5282 = vpack.c.b16 %v4658, %v4646
    %v5283 = vpack.c.b16 %v4659, %v4647
    %v5284 = vpack.c.b16 %v4660, %v4648
    %v5285 = vpack.c.b16 %v4661, %v4649
    %v5286 = vpack.c.b16 %v4662, %v4650
    %v5287 = vpack.c.b16 %v4675, %v4663
    %v5288 = vpack.c.b16 %v4676, %v4664
    %v5289 = vpack.c.b16 %v4677, %v4665
    %v5290 = vpack.c.b16 %v4678, %v4666
    %v5291 = vpack.c.b16 %v4679, %v4667
    %v5292 = vpack.c.b16 %v4680, %v4668
    %v5293 = vpack.c.b16 %v4681, %v4669
    %v5294 = vpack.c.b16 %v4682, %v4670
    %v5295 = vpack.c.b16 %v4683, %v4671
    %v5296 = vpack.c.b16 %v4684, %v4672
    %v5297 = vpack.c.b16 %v4685, %v4673
    %v5298 = vpack.c.b16 %v4686, %v4674
    %v5299 = vpack.c.b16 %v4699, %v4687
    %v5300 = vpack.c.b16 %v4700, %v4688
    %v5301 = vpack.c.b16 %v4701, %v4689
    %v5302 = vpack.c.b16 %v4702, %v4690
    %v5303 = vpack.c.b16 %v4703, %v4691
    %v5304 = vpack.c.b16 %v4704, %v4692
    %v5305 = vpack.c.b16 %v4705, %v4693
    %v5306 = vpack.c.b16 %v4706, %v4694
    %v5307 = vpack.c.b16 %v4707, %v4695
    %v5308 = vpack.c.b16 %v4708, %v4696
    %v5309 = vpack.c.b16 %v4709, %v4697
    %v5310 = vpack.c.b16 %v4710, %v4698
    %v5311 = vpack.c.b16 %v4723, %v4711
    %v5312 = vpack.c.b16 %v4724, %v4712
    %v5313 = vpack.c.b16 %v4725, %v4713
    %v5314 = vpack.c.b16 %v4726, %v4714
    %v5315 = vpack.c.b16 %v4727, %v4715
    %v5316 = vpack.c.b16 %v4728, %v4716
    %v5317 = vpack.c.b16 %v4729, %v4717
    %v5318 = vpack.c.b16 %v4730, %v4718
    %v5319 = vpack.c.b16 %v4731, %v4719
    %v5320 = vpack.c.b16 %v4732, %v4720
    %v5321 = vpack.c.b16 %v4733, %v4721
    %v5322 = vpack.c.b16 %v4734, %v4722
    %v5323 = vpack.c.b16 %v4747, %v4735
    %v5324 = vpack.c.b16 %v4748, %v4736
    %v5325 = vpack.c.b16 %v4749, %v4737
    %v5326 = vpack.c.b16 %v4750, %v4738
    %v5327 = vpack.c.b16 %v4751, %v4739
    %v5328 = vpack.c.b16 %v4752, %v4740
    %v5329 = vpack.c.b16 %v4753, %v4741
    %v5330 = vpack.c.b16 %v4754, %v4742
    %v5331 = vpack.c.b16 %v4755, %v4743
    %v5332 = vpack.c.b16 %v4756, %v4744
    %v5333 = vpack.c.b16 %v4757, %v4745
    %v5334 = vpack.c.b16 %v4758, %v4746
    %v5335 = vpack.c.b16 %v4771, %v4759
    %v5336 = vpack.c.b16 %v4772, %v4760
    %v5337 = vpack.c.b16 %v4773, %v4761
    %v5338 = vpack.c.b16 %v4774, %v4762
    %v5339 = vpack.c.b16 %v4775, %v4763
    %v5340 = vpack.c.b16 %v4776, %v4764
    %v5341 = vpack.c.b16 %v4777, %v4765
    %v5342 = vpack.c.b16 %v4778, %v4766
    %v5343 = vpack.c.b16 %v4779, %v4767
    %v5344 = vpack.c.b16 %v4780, %v4768
    %v5345 = vpack.c.b16 %v4781, %v4769
    %v5346 = vpack.c.b16 %v4782, %v4770
    %v5347 = vpack.c.b16 %v4795, %v4783
    %v5348 = vpack.c.b16 %v4796, %v4784
    %v5349 = vpack.c.b16 %v4797, %v4785
    %v5350 = vpack.c.b16 %v4798, %v4786
    %v5351 = vpack.c.b16 %v4799, %v4787
    %v5352 = vpack.c.b16 %v4800, %v4788
    %v5353 = vpack.c.b16 %v4801, %v4789
    %v5354 = vpack.c.b16 %v4802, %v4790
    %v5355 = vpack.c.b16 %v4803, %v4791
    %v5356 = vpack.c.b16 %v4804, %v4792
    %v5357 = vpack.c.b16 %v4805, %v4793
    %v5358 = vpack.c.b16 %v4806, %v4794
    %v5359 = vpack.c.b16 %v4819, %v4807
    %v5360 = vpack.c.b16 %v4820, %v4808
    %v5361 = vpack.c.b16 %v4821, %v4809
    %v5362 = vpack.c.b16 %v4822, %v4810
    %v5363 = vpack.c.b16 %v4823, %v4811
    %v5364 = vpack.c.b16 %v4824, %v4812
    %v5365 = vpack.c.b16 %v4825, %v4813
    %v5366 = vpack.c.b16 %v4826, %v4814
    %v5367 = vpack.c.b16 %v4827, %v4815
    %v5368 = vpack.c.b16 %v4828, %v4816
    %v5369 = vpack.c.b16 %v4829, %v4817
    %v5370 = vpack.c.b16 %v4830, %v4818
    %v5371 = vpack.c.b16 %v4843, %v4831
    %v5372 = vpack.c.b16 %v4844, %v4832
    %v5373 = vpack.c.b16 %v4845, %v4833
    %v5374 = vpack.c.b16 %v4846, %v4834
    %v5375 = vpack.c.b16 %v4847, %v4835
    %v5376 = vpack.c.b16 %v4848, %v4836
    %v5377 = vpack.c.b16 %v4849, %v4837
    %v5378 = vpack.c.b16 %v4850, %v4838
    %v5379 = vpack.c.b16 %v4851, %v4839
    %v5380 = vpack.c.b16 %v4852, %v4840
    %v5381 = vpack.c.b16 %v4853, %v4841
    %v5382 = vpack.c.b16 %v4854, %v4842
    %v5383 = vpack.c.b16 %v4867, %v4855
    %v5384 = vpack.c.b16 %v4868, %v4856
    %v5385 = vpack.c.b16 %v4869, %v4857
    %v5386 = vpack.c.b16 %v4870, %v4858
    %v5387 = vpack.c.b16 %v4871, %v4859
    %v5388 = vpack.c.b16 %v4872, %v4860
    %v5389 = vpack.c.b16 %v4873, %v4861
    %v5390 = vpack.c.b16 %v4874, %v4862
    %v5391 = vpack.c.b16 %v4875, %v4863
    %v5392 = vpack.c.b16 %v4876, %v4864
    %v5393 = vpack.c.b16 %v4877, %v4865
    %v5394 = vpack.c.b16 %v4878, %v4866
    %v5395 = vpack.c.b16 %v4891, %v4879
    %v5396 = vpack.c.b16 %v4892, %v4880
    %v5397 = vpack.c.b16 %v4893, %v4881
    %v5398 = vpack.c.b16 %v4894, %v4882
    %v5399 = vpack.c.b16 %v4895, %v4883
    %v5400 = vpack.c.b16 %v4896, %v4884
    %v5401 = vpack.c.b16 %v4897, %v4885
    %v5402 = vpack.c.b16 %v4898, %v4886
    %v5403 = vpack.c.b16 %v4899, %v4887
    %v5404 = vpack.c.b16 %v4900, %v4888
    %v5405 = vpack.c.b16 %v4901, %v4889
    %v5406 = vpack.c.b16 %v4902, %v4890
    %v5407 = vpack.c.b16 %v4915, %v4903
    %v5408 = vpack.c.b16 %v4916, %v4904
    %v5409 = vpack.c.b16 %v4917, %v4905
    %v5410 = vpack.c.b16 %v4918, %v4906
    %v5411 = vpack.c.b16 %v4919, %v4907
    %v5412 = vpack.c.b16 %v4920, %v4908
    %v5413 = vpack.c.b16 %v4921, %v4909
    %v5414 = vpack.c.b16 %v4922, %v4910
    %v5415 = vpack.c.b16 %v4923, %v4911
    %v5416 = vpack.c.b16 %v4924, %v4912
    %v5417 = vpack.c.b16 %v4925, %v4913
    %v5418 = vpack.c.b16 %v4926, %v4914
    %v5419 = vpack.c.b16 %v4939, %v4927
    %v5420 = vpack.c.b16 %v4940, %v4928
    %v5421 = vpack.c.b16 %v4941, %v4929
    %v5422 = vpack.c.b16 %v4942, %v4930
    %v5423 = vpack.c.b16 %v4943, %v4931
    %v5424 = vpack.c.b16 %v4944, %v4932
    %v5425 = vpack.c.b16 %v4945, %v4933
    %v5426 = vpack.c.b16 %v4946, %v4934
    %v5427 = vpack.c.b16 %v4947, %v4935
    %v5428 = vpack.c.b16 %v4948, %v4936
    %v5429 = vpack.c.b16 %v4949, %v4937
    %v5430 = vpack.c.b16 %v4950, %v4938
    %v5431 = vpack.c.b16 %v4963, %v4951
    %v5432 = vpack.c.b16 %v4964, %v4952
    %v5433 = vpack.c.b16 %v4965, %v4953
    %v5434 = vpack.c.b16 %v4966, %v4954
    %v5435 = vpack.c.b16 %v4967, %v4955
    %v5436 = vpack.c.b16 %v4968, %v4956
    %v5437 = vpack.c.b16 %v4969, %v4957
    %v5438 = vpack.c.b16 %v4970, %v4958
    %v5439 = vpack.c.b16 %v4971, %v4959
    %v5440 = vpack.c.b16 %v4972, %v4960
    %v5441 = vpack.c.b16 %v4973, %v4961
    %v5442 = vpack.c.b16 %v4974, %v4962
    %v5443 = vpack.c.b16 %v4987, %v4975
    %v5444 = vpack.c.b16 %v4988, %v4976
    %v5445 = vpack.c.b16 %v4989, %v4977
    %v5446 = vpack.c.b16 %v4990, %v4978
    %v5447 = vpack.c.b16 %v4991, %v4979
    %v5448 = vpack.c.b16 %v4992, %v4980
    %v5449 = vpack.c.b16 %v4993, %v4981
    %v5450 = vpack.c.b16 %v4994, %v4982
    %v5451 = vpack.c.b16 %v4995, %v4983
    %v5452 = vpack.c.b16 %v4996, %v4984
    %v5453 = vpack.c.b16 %v4997, %v4985
    %v5454 = vpack.c.b16 %v4998, %v4986
    %v5455 = vpack.c.b16 %v5011, %v4999
    %v5456 = vpack.c.b16 %v5012, %v5000
    %v5457 = vpack.c.b16 %v5013, %v5001
    %v5458 = vpack.c.b16 %v5014, %v5002
    %v5459 = vpack.c.b16 %v5015, %v5003
    %v5460 = vpack.c.b16 %v5016, %v5004
    %v5461 = vpack.c.b16 %v5017, %v5005
    %v5462 = vpack.c.b16 %v5018, %v5006
    %v5463 = vpack.c.b16 %v5019, %v5007
    %v5464 = vpack.c.b16 %v5020, %v5008
    %v5465 = vpack.c.b16 %v5021, %v5009
    %v5466 = vpack.c.b16 %v5022, %v5010
    %v5467 = vpack.c.b16 %v5035, %v5023
    %v5468 = vpack.c.b16 %v5036, %v5024
    %v5469 = vpack.c.b16 %v5037, %v5025
    %v5470 = vpack.c.b16 %v5038, %v5026
    %v5471 = vpack.c.b16 %v5039, %v5027
    %v5472 = vpack.c.b16 %v5040, %v5028
    %v5473 = vpack.c.b16 %v5041, %v5029
    %v5474 = vpack.c.b16 %v5042, %v5030
    %v5475 = vpack.c.b16 %v5043, %v5031
    %v5476 = vpack.c.b16 %v5044, %v5032
    %v5477 = vpack.c.b16 %v5045, %v5033
    %v5478 = vpack.c.b16 %v5046, %v5034
    %v5479 = vpack.c.b16 %v5059, %v5047
    %v5480 = vpack.c.b16 %v5060, %v5048
    %v5481 = vpack.c.b16 %v5061, %v5049
    %v5482 = vpack.c.b16 %v5062, %v5050
    %v5483 = vpack.c.b16 %v5063, %v5051
    %v5484 = vpack.c.b16 %v5064, %v5052
    %v5485 = vpack.c.b16 %v5065, %v5053
    %v5486 = vpack.c.b16 %v5066, %v5054
    %v5487 = vpack.c.b16 %v5067, %v5055
    %v5488 = vpack.c.b16 %v5068, %v5056
    %v5489 = vpack.c.b16 %v5069, %v5057
    %v5490 = vpack.c.b16 %v5070, %v5058
    %v5491 = vpack.c.b16 %v5083, %v5071
    %v5492 = vpack.c.b16 %v5084, %v5072
    %v5493 = vpack.c.b16 %v5085, %v5073
    %v5494 = vpack.c.b16 %v5086, %v5074
    %v5495 = vpack.c.b16 %v5087, %v5075
    %v5496 = vpack.c.b16 %v5088, %v5076
    %v5497 = vpack.c.b16 %v5089, %v5077
    %v5498 = vpack.c.b16 %v5090, %v5078
    %v5499 = vpack.c.b16 %v5091, %v5079
    %v5500 = vpack.c.b16 %v5092, %v5080
    %v5501 = vpack.c.b16 %v5093, %v5081
    %v5502 = vpack.c.b16 %v5094, %v5082
    %v5503 = vpack.c.b16 %v5107, %v5095
    %v5504 = vpack.c.b16 %v5108, %v5096
    %v5505 = vpack.c.b16 %v5109, %v5097
    %v5506 = vpack.c.b16 %v5110, %v5098
    %v5507 = vpack.c.b16 %v5111, %v5099
    %v5508 = vpack.c.b16 %v5112, %v5100
    %v5509 = vpack.c.b16 %v5113, %v5101
    %v5510 = vpack.c.b16 %v5114, %v5102
    %v5511 = vpack.c.b16 %v5115, %v5103
    %v5512 = vpack.c.b16 %v5116, %v5104
    %v5513 = vpack.c.b16 %v5117, %v5105
    %v5514 = vpack.c.b16 %v5118, %v5106
    %v5515 = vpack.c.b16 %v5131, %v5119
    %v5516 = vpack.c.b16 %v5132, %v5120
    %v5517 = vpack.c.b16 %v5133, %v5121
    %v5518 = vpack.c.b16 %v5134, %v5122
    %v5519 = vpack.c.b16 %v5135, %v5123
    %v5520 = vpack.c.b16 %v5136, %v5124
    %v5521 = vpack.c.b16 %v5137, %v5125
    %v5522 = vpack.c.b16 %v5138, %v5126
    %v5523 = vpack.c.b16 %v5139, %v5127
    %v5524 = vpack.c.b16 %v5140, %v5128
    %v5525 = vpack.c.b16 %v5141, %v5129
    %v5526 = vpack.c.b16 %v5142, %v5130
    %5911 = vmatprep.subr.bf16.mxu0 %v5144
    %5912 = vmatpush1.bf16.msra.mxu0 %v5143
    %5913 = vmatprep.subr.bf16.mxu0 %v5156
    %5914 = vmatpush1.bf16.msra.mxu0 %v5155
    %5915 = vmatprep.subr.bf16.mxu0 %v5168
    %5916 = vmatpush1.bf16.msra.mxu0 %v5167
    %5917 = vmatprep.subr.bf16.mxu0 %v5180
    %5918 = vmatpush1.bf16.msra.mxu0 %v5179
    %5919 = vmatprep.subr.bf16.mxu0 %v5192
    %5920 = vmatpush1.bf16.msra.mxu0 %v5191
    %5921 = vmatprep.subr.bf16.mxu0 %v5204
    %5922 = vmatpush1.bf16.msra.mxu0 %v5203
    %5923 = vmatprep.subr.bf16.mxu0 %v5216
    %5924 = vmatpush1.bf16.msra.mxu0 %v5215
    %5925 = vmatprep.subr.bf16.mxu0 %v5228
    %5926 = vmatpush1.bf16.msra.mxu0 %v5227
    %5927 = vmatprep.subr.bf16.mxu0 %v5240
    %5928 = vmatpush1.bf16.msra.mxu0 %v5239
    %5929 = vmatprep.subr.bf16.mxu0 %v5252
    %5930 = vmatpush1.bf16.msra.mxu0 %v5251
    %5931 = vmatprep.subr.bf16.mxu0 %v5264
    %5932 = vmatpush1.bf16.msra.mxu0 %v5263
    %5933 = vmatprep.subr.bf16.mxu0 %v5276
    %5934 = vmatpush1.bf16.msra.mxu0 %v5275
    %5935 = vmatprep.subr.bf16.mxu0 %v5288
    %5936 = vmatpush1.bf16.msra.mxu0 %v5287
    %5937 = vmatprep.subr.bf16.mxu0 %v5300
    %5938 = vmatpush1.bf16.msra.mxu0 %v5299
    %5939 = vmatprep.subr.bf16.mxu0 %v5312
    %5940 = vmatpush1.bf16.msra.mxu0 %v5311
    %5941 = vmatprep.subr.bf16.mxu0 %v5324
    %5942 = vmatpush1.bf16.msra.mxu0 %v5323
    %5943 = vmatprep.mubr.bf16.mxu0 %v3542
    %5944 = vmatmul.mubr.bf16.gmra.mrb[0].mxu0 %v3541
    %v5945 = vpop.f32.mrb[0].mxu0
    %v5946 = vadd.f32 %v3934, %v5945
    %v5947 = vpop.f32.mrb[0].mxu0
    %v5948 = vadd.f32 %v3938, %v5947
    %v5949 = vpop.f32.mrb[0].mxu0
    %v5950 = vpop.f32.mrb[0].mxu0
    %5951 = vdwg.mxu0
    %5952 = vmatprep.subr.bf16.mxu0 %v5336
    %5953 = vmatpush1.bf16.msra.mxu0 %v5335
    %5954 = vmatprep.subr.bf16.mxu0 %v5348
    %5955 = vmatpush1.bf16.msra.mxu0 %v5347
    %5956 = vmatprep.subr.bf16.mxu0 %v5360
    %5957 = vmatpush1.bf16.msra.mxu0 %v5359
    %5958 = vmatprep.subr.bf16.mxu0 %v5372
    %5959 = vmatpush1.bf16.msra.mxu0 %v5371
    %5960 = vmatprep.subr.bf16.mxu0 %v5384
    %5961 = vmatpush1.bf16.msra.mxu0 %v5383
    %5962 = vmatprep.subr.bf16.mxu0 %v5396
    %5963 = vmatpush1.bf16.msra.mxu0 %v5395
    %5964 = vmatprep.subr.bf16.mxu0 %v5408
    %5965 = vmatpush1.bf16.msra.mxu0 %v5407
    %5966 = vmatprep.subr.bf16.mxu0 %v5420
    %5967 = vmatpush1.bf16.msra.mxu0 %v5419
    %5968 = vmatprep.subr.bf16.mxu0 %v5432
    %5969 = vmatpush1.bf16.msra.mxu0 %v5431
    %5970 = vmatprep.subr.bf16.mxu0 %v5444
    %5971 = vmatpush1.bf16.msra.mxu0 %v5443
    %5972 = vmatprep.subr.bf16.mxu0 %v5456
    %5973 = vmatpush1.bf16.msra.mxu0 %v5455
    %5974 = vmatprep.subr.bf16.mxu0 %v5468
    %5975 = vmatpush1.bf16.msra.mxu0 %v5467
    %5976 = vmatprep.subr.bf16.mxu0 %v5480
    %5977 = vmatpush1.bf16.msra.mxu0 %v5479
    %5978 = vmatprep.subr.bf16.mxu0 %v5492
    %5979 = vmatpush1.bf16.msra.mxu0 %v5491
    %5980 = vmatprep.subr.bf16.mxu0 %v5504
    %5981 = vmatpush1.bf16.msra.mxu0 %v5503
    %5982 = vmatprep.subr.bf16.mxu0 %v5516
    %5983 = vmatpush1.bf16.msra.mxu0 %v5515
    %5984 = vmatprep.mubr.bf16.mxu0 %v3544
    %5985 = vmatmul.mubr.bf16.gmra.mrb[0].mxu0 %v3543
    %v5986 = vpop.f32.mrb[0].mxu0
    %v5987 = vadd.f32 %v5946, %v5986
    %v5988 = vpop.f32.mrb[0].mxu0
    %v5989 = vadd.f32 %v5948, %v5988
    %v5990 = vpop.f32.mrb[0].mxu0
    %v5991 = vpop.f32.mrb[0].mxu0
    %5992 = vdwg.mxu0
    %5993 = vmatprep.subr.bf16.mxu0 %v5146
    %5994 = vmatpush1.bf16.msra.mxu0 %v5145
    %5995 = vmatprep.subr.bf16.mxu0 %v5158
    %5996 = vmatpush1.bf16.msra.mxu0 %v5157
    %5997 = vmatprep.subr.bf16.mxu0 %v5170
    %5998 = vmatpush1.bf16.msra.mxu0 %v5169
    %5999 = vmatprep.subr.bf16.mxu0 %v5182
    %6000 = vmatpush1.bf16.msra.mxu0 %v5181
    %6001 = vmatprep.subr.bf16.mxu0 %v5194
    %6002 = vmatpush1.bf16.msra.mxu0 %v5193
    %6003 = vmatprep.subr.bf16.mxu0 %v5206
    %6004 = vmatpush1.bf16.msra.mxu0 %v5205
    %6005 = vmatprep.subr.bf16.mxu0 %v5218
    %6006 = vmatpush1.bf16.msra.mxu0 %v5217
    %6007 = vmatprep.subr.bf16.mxu0 %v5230
    %6008 = vmatpush1.bf16.msra.mxu0 %v5229
    %6009 = vmatprep.subr.bf16.mxu0 %v5242
    %6010 = vmatpush1.bf16.msra.mxu0 %v5241
    %6011 = vmatprep.subr.bf16.mxu0 %v5254
    %6012 = vmatpush1.bf16.msra.mxu0 %v5253
    %6013 = vmatprep.subr.bf16.mxu0 %v5266
    %6014 = vmatpush1.bf16.msra.mxu0 %v5265
    %6015 = vmatprep.subr.bf16.mxu0 %v5278
    %6016 = vmatpush1.bf16.msra.mxu0 %v5277
    %6017 = vmatprep.subr.bf16.mxu0 %v5290
    %6018 = vmatpush1.bf16.msra.mxu0 %v5289
    %6019 = vmatprep.subr.bf16.mxu0 %v5302
    %6020 = vmatpush1.bf16.msra.mxu0 %v5301
    %6021 = vmatprep.subr.bf16.mxu0 %v5314
    %6022 = vmatpush1.bf16.msra.mxu0 %v5313
    %6023 = vmatprep.subr.bf16.mxu0 %v5326
    %6024 = vmatpush1.bf16.msra.mxu0 %v5325
    %6025 = vmatprep.mubr.bf16.mxu0 %v3542
    %6026 = vmatmul.mubr.bf16.gmra.mrb[0].mxu0 %v3541
    %v6027 = vpop.f32.mrb[0].mxu0
    %v6028 = vadd.f32 %v3942, %v6027
    %v6029 = vpop.f32.mrb[0].mxu0
    %v6030 = vadd.f32 %v3946, %v6029
    %v6031 = vpop.f32.mrb[0].mxu0
    %v6032 = vpop.f32.mrb[0].mxu0
    %6033 = vdwg.mxu0
    %6034 = vmatprep.subr.bf16.mxu0 %v5338
    %6035 = vmatpush1.bf16.msra.mxu0 %v5337
    %6036 = vmatprep.subr.bf16.mxu0 %v5350
    %6037 = vmatpush1.bf16.msra.mxu0 %v5349
    %6038 = vmatprep.subr.bf16.mxu0 %v5362
    %6039 = vmatpush1.bf16.msra.mxu0 %v5361
    %6040 = vmatprep.subr.bf16.mxu0 %v5374
    %6041 = vmatpush1.bf16.msra.mxu0 %v5373
    %6042 = vmatprep.subr.bf16.mxu0 %v5386
    %6043 = vmatpush1.bf16.msra.mxu0 %v5385
    %6044 = vmatprep.subr.bf16.mxu0 %v5398
    %6045 = vmatpush1.bf16.msra.mxu0 %v5397
    %6046 = vmatprep.subr.bf16.mxu0 %v5410
    %6047 = vmatpush1.bf16.msra.mxu0 %v5409
    %6048 = vmatprep.subr.bf16.mxu0 %v5422
    %6049 = vmatpush1.bf16.msra.mxu0 %v5421
    %6050 = vmatprep.subr.bf16.mxu0 %v5434
    %6051 = vmatpush1.bf16.msra.mxu0 %v5433
    %6052 = vmatprep.subr.bf16.mxu0 %v5446
    %6053 = vmatpush1.bf16.msra.mxu0 %v5445
    %6054 = vmatprep.subr.bf16.mxu0 %v5458
    %6055 = vmatpush1.bf16.msra.mxu0 %v5457
    %6056 = vmatprep.subr.bf16.mxu0 %v5470
    %6057 = vmatpush1.bf16.msra.mxu0 %v5469
    %6058 = vmatprep.subr.bf16.mxu0 %v5482
    %6059 = vmatpush1.bf16.msra.mxu0 %v5481
    %6060 = vmatprep.subr.bf16.mxu0 %v5494
    %6061 = vmatpush1.bf16.msra.mxu0 %v5493
    %6062 = vmatprep.subr.bf16.mxu0 %v5506
    %6063 = vmatpush1.bf16.msra.mxu0 %v5505
    %6064 = vmatprep.subr.bf16.mxu0 %v5518
    %6065 = vmatpush1.bf16.msra.mxu0 %v5517
    %6066 = vmatprep.mubr.bf16.mxu0 %v3544
    %6067 = vmatmul.mubr.bf16.gmra.mrb[0].mxu0 %v3543
    %v6068 = vpop.f32.mrb[0].mxu0
    %v6069 = vadd.f32 %v6028, %v6068
    %v6070 = vpop.f32.mrb[0].mxu0
    %v6071 = vadd.f32 %v6030, %v6070
    %v6072 = vpop.f32.mrb[0].mxu0
    %v6073 = vpop.f32.mrb[0].mxu0
    %6074 = vdwg.mxu0
    %6075 = vmatprep.subr.bf16.mxu0 %v5148
    %6076 = vmatpush1.bf16.msra.mxu0 %v5147
    %6077 = vmatprep.subr.bf16.mxu0 %v5160
    %6078 = vmatpush1.bf16.msra.mxu0 %v5159
    %6079 = vmatprep.subr.bf16.mxu0 %v5172
    %6080 = vmatpush1.bf16.msra.mxu0 %v5171
    %6081 = vmatprep.subr.bf16.mxu0 %v5184
    %6082 = vmatpush1.bf16.msra.mxu0 %v5183
    %6083 = vmatprep.subr.bf16.mxu0 %v5196
    %6084 = vmatpush1.bf16.msra.mxu0 %v5195
    %6085 = vmatprep.subr.bf16.mxu0 %v5208
    %6086 = vmatpush1.bf16.msra.mxu0 %v5207
    %6087 = vmatprep.subr.bf16.mxu0 %v5220
    %6088 = vmatpush1.bf16.msra.mxu0 %v5219
    %6089 = vmatprep.subr.bf16.mxu0 %v5232
    %6090 = vmatpush1.bf16.msra.mxu0 %v5231
    %6091 = vmatprep.subr.bf16.mxu0 %v5244
    %6092 = vmatpush1.bf16.msra.mxu0 %v5243
    %6093 = vmatprep.subr.bf16.mxu0 %v5256
    %6094 = vmatpush1.bf16.msra.mxu0 %v5255
    %6095 = vmatprep.subr.bf16.mxu0 %v5268
    %6096 = vmatpush1.bf16.msra.mxu0 %v5267
    %6097 = vmatprep.subr.bf16.mxu0 %v5280
    %6098 = vmatpush1.bf16.msra.mxu0 %v5279
    %6099 = vmatprep.subr.bf16.mxu0 %v5292
    %6100 = vmatpush1.bf16.msra.mxu0 %v5291
    %6101 = vmatprep.subr.bf16.mxu0 %v5304
    %6102 = vmatpush1.bf16.msra.mxu0 %v5303
    %6103 = vmatprep.subr.bf16.mxu0 %v5316
    %6104 = vmatpush1.bf16.msra.mxu0 %v5315
    %6105 = vmatprep.subr.bf16.mxu0 %v5328
    %6106 = vmatpush1.bf16.msra.mxu0 %v5327
    %6107 = vmatprep.mubr.bf16.mxu0 %v3542
    %6108 = vmatmul.mubr.bf16.gmra.mrb[0].mxu0 %v3541
    %v6109 = vpop.f32.mrb[0].mxu0
    %v6110 = vadd.f32 %v3950, %v6109
    %v6111 = vpop.f32.mrb[0].mxu0
    %v6112 = vadd.f32 %v3954, %v6111
    %v6113 = vpop.f32.mrb[0].mxu0
    %v6114 = vpop.f32.mrb[0].mxu0
    %6115 = vdwg.mxu0
    %6116 = vmatprep.subr.bf16.mxu0 %v5340
    %6117 = vmatpush1.bf16.msra.mxu0 %v5339
    %6118 = vmatprep.subr.bf16.mxu0 %v5352
    %6119 = vmatpush1.bf16.msra.mxu0 %v5351
    %6120 = vmatprep.subr.bf16.mxu0 %v5364
    %6121 = vmatpush1.bf16.msra.mxu0 %v5363
    %6122 = vmatprep.subr.bf16.mxu0 %v5376
    %6123 = vmatpush1.bf16.msra.mxu0 %v5375
    %6124 = vmatprep.subr.bf16.mxu0 %v5388
    %6125 = vmatpush1.bf16.msra.mxu0 %v5387
    %6126 = vmatprep.subr.bf16.mxu0 %v5400
    %6127 = vmatpush1.bf16.msra.mxu0 %v5399
    %6128 = vmatprep.subr.bf16.mxu0 %v5412
    %6129 = vmatpush1.bf16.msra.mxu0 %v5411
    %6130 = vmatprep.subr.bf16.mxu0 %v5424
    %6131 = vmatpush1.bf16.msra.mxu0 %v5423
    %6132 = vmatprep.subr.bf16.mxu0 %v5436
    %6133 = vmatpush1.bf16.msra.mxu0 %v5435
    %6134 = vmatprep.subr.bf16.mxu0 %v5448
    %6135 = vmatpush1.bf16.msra.mxu0 %v5447
    %6136 = vmatprep.subr.bf16.mxu0 %v5460
    %6137 = vmatpush1.bf16.msra.mxu0 %v5459
    %6138 = vmatprep.subr.bf16.mxu0 %v5472
    %6139 = vmatpush1.bf16.msra.mxu0 %v5471
    %6140 = vmatprep.subr.bf16.mxu0 %v5484
    %6141 = vmatpush1.bf16.msra.mxu0 %v5483
    %6142 = vmatprep.subr.bf16.mxu0 %v5496
    %6143 = vmatpush1.bf16.msra.mxu0 %v5495
    %6144 = vmatprep.subr.bf16.mxu0 %v5508
    %6145 = vmatpush1.bf16.msra.mxu0 %v5507
    %6146 = vmatprep.subr.bf16.mxu0 %v5520
    %6147 = vmatpush1.bf16.msra.mxu0 %v5519
    %6148 = vmatprep.mubr.bf16.mxu0 %v3544
    %6149 = vmatmul.mubr.bf16.gmra.mrb[0].mxu0 %v3543
    %v6150 = vpop.f32.mrb[0].mxu0
    %v6151 = vadd.f32 %v6110, %v6150
    %v6152 = vpop.f32.mrb[0].mxu0
    %v6153 = vadd.f32 %v6112, %v6152
    %v6154 = vpop.f32.mrb[0].mxu0
    %v6155 = vpop.f32.mrb[0].mxu0
    %6156 = vdwg.mxu0
    %6157 = vmatprep.subr.bf16.mxu0 %v5150
    %6158 = vmatpush1.bf16.msra.mxu0 %v5149
    %6159 = vmatprep.subr.bf16.mxu0 %v5162
    %6160 = vmatpush1.bf16.msra.mxu0 %v5161
    %6161 = vmatprep.subr.bf16.mxu0 %v5174
    %6162 = vmatpush1.bf16.msra.mxu0 %v5173
    %6163 = vmatprep.subr.bf16.mxu0 %v5186
    %6164 = vmatpush1.bf16.msra.mxu0 %v5185
    %6165 = vmatprep.subr.bf16.mxu0 %v5198
    %6166 = vmatpush1.bf16.msra.mxu0 %v5197
    %6167 = vmatprep.subr.bf16.mxu0 %v5210
    %6168 = vmatpush1.bf16.msra.mxu0 %v5209
    %6169 = vmatprep.subr.bf16.mxu0 %v5222
    %6170 = vmatpush1.bf16.msra.mxu0 %v5221
    %6171 = vmatprep.subr.bf16.mxu0 %v5234
    %6172 = vmatpush1.bf16.msra.mxu0 %v5233
    %6173 = vmatprep.subr.bf16.mxu0 %v5246
    %6174 = vmatpush1.bf16.msra.mxu0 %v5245
    %6175 = vmatprep.subr.bf16.mxu0 %v5258
    %6176 = vmatpush1.bf16.msra.mxu0 %v5257
    %6177 = vmatprep.subr.bf16.mxu0 %v5270
    %6178 = vmatpush1.bf16.msra.mxu0 %v5269
    %6179 = vmatprep.subr.bf16.mxu0 %v5282
    %6180 = vmatpush1.bf16.msra.mxu0 %v5281
    %6181 = vmatprep.subr.bf16.mxu0 %v5294
    %6182 = vmatpush1.bf16.msra.mxu0 %v5293
    %6183 = vmatprep.subr.bf16.mxu0 %v5306
    %6184 = vmatpush1.bf16.msra.mxu0 %v5305
    %6185 = vmatprep.subr.bf16.mxu0 %v5318
    %6186 = vmatpush1.bf16.msra.mxu0 %v5317
    %6187 = vmatprep.subr.bf16.mxu0 %v5330
    %6188 = vmatpush1.bf16.msra.mxu0 %v5329
    %6189 = vmatprep.mubr.bf16.mxu0 %v3542
    %6190 = vmatmul.mubr.bf16.gmra.mrb[0].mxu0 %v3541
    %v6191 = vpop.f32.mrb[0].mxu0
    %v6192 = vadd.f32 %v3958, %v6191
    %v6193 = vpop.f32.mrb[0].mxu0
    %v6194 = vadd.f32 %v3962, %v6193
    %v6195 = vpop.f32.mrb[0].mxu0
    %v6196 = vpop.f32.mrb[0].mxu0
    %6197 = vdwg.mxu0
    %6198 = vmatprep.subr.bf16.mxu0 %v5342
    %6199 = vmatpush1.bf16.msra.mxu0 %v5341
    %6200 = vmatprep.subr.bf16.mxu0 %v5354
    %6201 = vmatpush1.bf16.msra.mxu0 %v5353
    %6202 = vmatprep.subr.bf16.mxu0 %v5366
    %6203 = vmatpush1.bf16.msra.mxu0 %v5365
    %6204 = vmatprep.subr.bf16.mxu0 %v5378
    %6205 = vmatpush1.bf16.msra.mxu0 %v5377
    %6206 = vmatprep.subr.bf16.mxu0 %v5390
    %6207 = vmatpush1.bf16.msra.mxu0 %v5389
    %6208 = vmatprep.subr.bf16.mxu0 %v5402
    %6209 = vmatpush1.bf16.msra.mxu0 %v5401
    %6210 = vmatprep.subr.bf16.mxu0 %v5414
    %6211 = vmatpush1.bf16.msra.mxu0 %v5413
    %6212 = vmatprep.subr.bf16.mxu0 %v5426
    %6213 = vmatpush1.bf16.msra.mxu0 %v5425
    %6214 = vmatprep.subr.bf16.mxu0 %v5438
    %6215 = vmatpush1.bf16.msra.mxu0 %v5437
    %6216 = vmatprep.subr.bf16.mxu0 %v5450
    %6217 = vmatpush1.bf16.msra.mxu0 %v5449
    %6218 = vmatprep.subr.bf16.mxu0 %v5462
    %6219 = vmatpush1.bf16.msra.mxu0 %v5461
    %6220 = vmatprep.subr.bf16.mxu0 %v5474
    %6221 = vmatpush1.bf16.msra.mxu0 %v5473
    %6222 = vmatprep.subr.bf16.mxu0 %v5486
    %6223 = vmatpush1.bf16.msra.mxu0 %v5485
    %6224 = vmatprep.subr.bf16.mxu0 %v5498
    %6225 = vmatpush1.bf16.msra.mxu0 %v5497
    %6226 = vmatprep.subr.bf16.mxu0 %v5510
    %6227 = vmatpush1.bf16.msra.mxu0 %v5509
    %6228 = vmatprep.subr.bf16.mxu0 %v5522
    %6229 = vmatpush1.bf16.msra.mxu0 %v5521
    %6230 = vmatprep.mubr.bf16.mxu0 %v3544
    %6231 = vmatmul.mubr.bf16.gmra.mrb[0].mxu0 %v3543
    %v6232 = vpop.f32.mrb[0].mxu0
    %v6233 = vadd.f32 %v6192, %v6232
    %v6234 = vpop.f32.mrb[0].mxu0
    %v6235 = vadd.f32 %v6194, %v6234
    %v6236 = vpop.f32.mrb[0].mxu0
    %v6237 = vpop.f32.mrb[0].mxu0
    %6238 = vdwg.mxu0
    %6239 = vmatprep.subr.bf16.mxu0 %v5152
    %6240 = vmatpush1.bf16.msra.mxu0 %v5151
    %6241 = vmatprep.subr.bf16.mxu0 %v5164
    %6242 = vmatpush1.bf16.msra.mxu0 %v5163
    %6243 = vmatprep.subr.bf16.mxu0 %v5176
    %6244 = vmatpush1.bf16.msra.mxu0 %v5175
    %6245 = vmatprep.subr.bf16.mxu0 %v5188
    %6246 = vmatpush1.bf16.msra.mxu0 %v5187
    %6247 = vmatprep.subr.bf16.mxu0 %v5200
    %6248 = vmatpush1.bf16.msra.mxu0 %v5199
    %6249 = vmatprep.subr.bf16.mxu0 %v5212
    %6250 = vmatpush1.bf16.msra.mxu0 %v5211
    %6251 = vmatprep.subr.bf16.mxu0 %v5224
    %6252 = vmatpush1.bf16.msra.mxu0 %v5223
    %6253 = vmatprep.subr.bf16.mxu0 %v5236
    %6254 = vmatpush1.bf16.msra.mxu0 %v5235
    %6255 = vmatprep.subr.bf16.mxu0 %v5248
    %6256 = vmatpush1.bf16.msra.mxu0 %v5247
    %6257 = vmatprep.subr.bf16.mxu0 %v5260
    %6258 = vmatpush1.bf16.msra.mxu0 %v5259
    %6259 = vmatprep.subr.bf16.mxu0 %v5272
    %6260 = vmatpush1.bf16.msra.mxu0 %v5271
    %6261 = vmatprep.subr.bf16.mxu0 %v5284
    %6262 = vmatpush1.bf16.msra.mxu0 %v5283
    %6263 = vmatprep.subr.bf16.mxu0 %v5296
    %6264 = vmatpush1.bf16.msra.mxu0 %v5295
    %6265 = vmatprep.subr.bf16.mxu0 %v5308
    %6266 = vmatpush1.bf16.msra.mxu0 %v5307
    %6267 = vmatprep.subr.bf16.mxu0 %v5320
    %6268 = vmatpush1.bf16.msra.mxu0 %v5319
    %6269 = vmatprep.subr.bf16.mxu0 %v5332
    %6270 = vmatpush1.bf16.msra.mxu0 %v5331
    %6271 = vmatprep.mubr.bf16.mxu0 %v3542
    %6272 = vmatmul.mubr.bf16.gmra.mrb[0].mxu0 %v3541
    %v6273 = vpop.f32.mrb[0].mxu0
    %v6274 = vadd.f32 %v3966, %v6273
    %v6275 = vpop.f32.mrb[0].mxu0
    %v6276 = vadd.f32 %v3970, %v6275
    %v6277 = vpop.f32.mrb[0].mxu0
    %v6278 = vpop.f32.mrb[0].mxu0
    %6279 = vdwg.mxu0
    %6280 = vmatprep.subr.bf16.mxu0 %v5344
    %6281 = vmatpush1.bf16.msra.mxu0 %v5343
    %6282 = vmatprep.subr.bf16.mxu0 %v5356
    %6283 = vmatpush1.bf16.msra.mxu0 %v5355
    %6284 = vmatprep.subr.bf16.mxu0 %v5368
    %6285 = vmatpush1.bf16.msra.mxu0 %v5367
    %6286 = vmatprep.subr.bf16.mxu0 %v5380
    %6287 = vmatpush1.bf16.msra.mxu0 %v5379
    %6288 = vmatprep.subr.bf16.mxu0 %v5392
    %6289 = vmatpush1.bf16.msra.mxu0 %v5391
    %6290 = vmatprep.subr.bf16.mxu0 %v5404
    %6291 = vmatpush1.bf16.msra.mxu0 %v5403
    %6292 = vmatprep.subr.bf16.mxu0 %v5416
    %6293 = vmatpush1.bf16.msra.mxu0 %v5415
    %6294 = vmatprep.subr.bf16.mxu0 %v5428
    %6295 = vmatpush1.bf16.msra.mxu0 %v5427
    %6296 = vmatprep.subr.bf16.mxu0 %v5440
    %6297 = vmatpush1.bf16.msra.mxu0 %v5439
    %6298 = vmatprep.subr.bf16.mxu0 %v5452
    %6299 = vmatpush1.bf16.msra.mxu0 %v5451
    %6300 = vmatprep.subr.bf16.mxu0 %v5464
    %6301 = vmatpush1.bf16.msra.mxu0 %v5463
    %6302 = vmatprep.subr.bf16.mxu0 %v5476
    %6303 = vmatpush1.bf16.msra.mxu0 %v5475
    %6304 = vmatprep.subr.bf16.mxu0 %v5488
    %6305 = vmatpush1.bf16.msra.mxu0 %v5487
    %6306 = vmatprep.subr.bf16.mxu0 %v5500
    %6307 = vmatpush1.bf16.msra.mxu0 %v5499
    %6308 = vmatprep.subr.bf16.mxu0 %v5512
    %6309 = vmatpush1.bf16.msra.mxu0 %v5511
    %6310 = vmatprep.subr.bf16.mxu0 %v5524
    %6311 = vmatpush1.bf16.msra.mxu0 %v5523
    %6312 = vmatprep.mubr.bf16.mxu0 %v3544
    %6313 = vmatmul.mubr.bf16.gmra.mrb[0].mxu0 %v3543
    %v6314 = vpop.f32.mrb[0].mxu0
    %v6315 = vadd.f32 %v6274, %v6314
    %v6316 = vpop.f32.mrb[0].mxu0
    %v6317 = vadd.f32 %v6276, %v6316
    %v6318 = vpop.f32.mrb[0].mxu0
    %v6319 = vpop.f32.mrb[0].mxu0
    %6320 = vdwg.mxu0
    %6321 = vmatprep.subr.bf16.mxu0 %v5154
    %6322 = vmatpush1.bf16.msra.mxu0 %v5153
    %6323 = vmatprep.subr.bf16.mxu0 %v5166
    %6324 = vmatpush1.bf16.msra.mxu0 %v5165
    %6325 = vmatprep.subr.bf16.mxu0 %v5178
    %6326 = vmatpush1.bf16.msra.mxu0 %v5177
    %6327 = vmatprep.subr.bf16.mxu0 %v5190
    %6328 = vmatpush1.bf16.msra.mxu0 %v5189
    %6329 = vmatprep.subr.bf16.mxu0 %v5202
    %6330 = vmatpush1.bf16.msra.mxu0 %v5201
    %6331 = vmatprep.subr.bf16.mxu0 %v5214
    %6332 = vmatpush1.bf16.msra.mxu0 %v5213
    %6333 = vmatprep.subr.bf16.mxu0 %v5226
    %6334 = vmatpush1.bf16.msra.mxu0 %v5225
    %6335 = vmatprep.subr.bf16.mxu0 %v5238
    %6336 = vmatpush1.bf16.msra.mxu0 %v5237
    %6337 = vmatprep.subr.bf16.mxu0 %v5250
    %6338 = vmatpush1.bf16.msra.mxu0 %v5249
    %6339 = vmatprep.subr.bf16.mxu0 %v5262
    %6340 = vmatpush1.bf16.msra.mxu0 %v5261
    %6341 = vmatprep.subr.bf16.mxu0 %v5274
    %6342 = vmatpush1.bf16.msra.mxu0 %v5273
    %6343 = vmatprep.subr.bf16.mxu0 %v5286
    %6344 = vmatpush1.bf16.msra.mxu0 %v5285
    %6345 = vmatprep.subr.bf16.mxu0 %v5298
    %6346 = vmatpush1.bf16.msra.mxu0 %v5297
    %6347 = vmatprep.subr.bf16.mxu0 %v5310
    %6348 = vmatpush1.bf16.msra.mxu0 %v5309
    %6349 = vmatprep.subr.bf16.mxu0 %v5322
    %6350 = vmatpush1.bf16.msra.mxu0 %v5321
    %6351 = vmatprep.subr.bf16.mxu0 %v5334
    %6352 = vmatpush1.bf16.msra.mxu0 %v5333
    %6353 = vmatprep.mubr.bf16.mxu0 %v3542
    %6354 = vmatmul.mubr.bf16.gmra.mrb[0].mxu0 %v3541
    %v6355 = vpop.f32.mrb[0].mxu0
    %v6356 = vadd.f32 %v3974, %v6355
    %v6357 = vpop.f32.mrb[0].mxu0
    %v6358 = vadd.f32 %v3978, %v6357
    %v6359 = vpop.f32.mrb[0].mxu0
    %v6360 = vpop.f32.mrb[0].mxu0
    %6361 = vdwg.mxu0
    %6362 = vmatprep.subr.bf16.mxu0 %v5346
    %6363 = vmatpush1.bf16.msra.mxu0 %v5345
    %6364 = vmatprep.subr.bf16.mxu0 %v5358
    %6365 = vmatpush1.bf16.msra.mxu0 %v5357
    %6366 = vmatprep.subr.bf16.mxu0 %v5370
    %6367 = vmatpush1.bf16.msra.mxu0 %v5369
    %6368 = vmatprep.subr.bf16.mxu0 %v5382
    %6369 = vmatpush1.bf16.msra.mxu0 %v5381
    %6370 = vmatprep.subr.bf16.mxu0 %v5394
    %6371 = vmatpush1.bf16.msra.mxu0 %v5393
    %6372 = vmatprep.subr.bf16.mxu0 %v5406
    %6373 = vmatpush1.bf16.msra.mxu0 %v5405
    %6374 = vmatprep.subr.bf16.mxu0 %v5418
    %6375 = vmatpush1.bf16.msra.mxu0 %v5417
    %6376 = vmatprep.subr.bf16.mxu0 %v5430
    %6377 = vmatpush1.bf16.msra.mxu0 %v5429
    %6378 = vmatprep.subr.bf16.mxu0 %v5442
    %6379 = vmatpush1.bf16.msra.mxu0 %v5441
    %6380 = vmatprep.subr.bf16.mxu0 %v5454
    %6381 = vmatpush1.bf16.msra.mxu0 %v5453
    %6382 = vmatprep.subr.bf16.mxu0 %v5466
    %6383 = vmatpush1.bf16.msra.mxu0 %v5465
    %6384 = vmatprep.subr.bf16.mxu0 %v5478
    %6385 = vmatpush1.bf16.msra.mxu0 %v5477
    %6386 = vmatprep.subr.bf16.mxu0 %v5490
    %6387 = vmatpush1.bf16.msra.mxu0 %v5489
    %6388 = vmatprep.subr.bf16.mxu0 %v5502
    %6389 = vmatpush1.bf16.msra.mxu0 %v5501
    %6390 = vmatprep.subr.bf16.mxu0 %v5514
    %6391 = vmatpush1.bf16.msra.mxu0 %v5513
    %6392 = vmatprep.subr.bf16.mxu0 %v5526
    %6393 = vmatpush1.bf16.msra.mxu0 %v5525
    %6394 = vmatprep.mubr.bf16.mxu0 %v3544
    %6395 = vmatmul.mubr.bf16.gmra.mrb[0].mxu0 %v3543
    %v6396 = vpop.f32.mrb[0].mxu0
    %v6397 = vadd.f32 %v6356, %v6396
    %v6398 = vpop.f32.mrb[0].mxu0
    %v6399 = vadd.f32 %v6358, %v6398
    %v6400 = vpop.f32.mrb[0].mxu0
    %v6401 = vpop.f32.mrb[0].mxu0
    %6402 = vdwg.mxu0
    %v6403 = vadd.f32 %v3529, %v5987
    %v6404 = vadd.f32 %v3530, %v5989
    %v6405 = vadd.f32 %v3531, %v6069
    %v6406 = vadd.f32 %v3532, %v6071
    %v6407 = vxor.u32 %v6403, 2147483648
    %v6408 = vxor.u32 %v6404, 2147483648
    %v6409 = vxor.u32 %v6405, 2147483648
    %v6410 = vxor.u32 %v6406, 2147483648
    %v6411 = vmul.f32 %v6407, 1.442695
    %v6412 = vpow.pop %v6411
    %v6413 = vmul.f32 %v6408, 1.442695
    %v6414 = vpow.pop %v6413
    %v6415 = vmul.f32 %v6409, 1.442695
    %v6416 = vpow.pop %v6415
    %v6417 = vmul.f32 %v6410, 1.442695
    %v6418 = vpow.pop %v6417
    %v6419 = vadd.f32 %v6412, 1.0
    %v6420 = vadd.f32 %v6414, 1.0
    %v6421 = vadd.f32 %v6416, 1.0
    %v6422 = vadd.f32 %v6418, 1.0
    %v6423 = vrcp.pop %v6419
    %v6424 = vmul.f32 1.0, %v6423
    %v6425 = vrcp.pop %v6420
    %v6426 = vmul.f32 1.0, %v6425
    %v6427 = vrcp.pop %v6421
    %v6428 = vmul.f32 1.0, %v6427
    %v6429 = vrcp.pop %v6422
    %v6430 = vmul.f32 1.0, %v6429
    %v6431 = vadd.f32 %v3533, %v6151
    %v6432 = vadd.f32 %v3534, %v6153
    %v6433 = vadd.f32 %v3535, %v6233
    %v6434 = vadd.f32 %v3536, %v6235
    %v6435 = vxor.u32 %v6431, 2147483648
    %v6436 = vxor.u32 %v6432, 2147483648
    %v6437 = vxor.u32 %v6433, 2147483648
    %v6438 = vxor.u32 %v6434, 2147483648
    %v6439 = vmul.f32 %v6435, 1.442695
    %v6440 = vpow.pop %v6439
    %v6441 = vmul.f32 %v6436, 1.442695
    %v6442 = vpow.pop %v6441
    %v6443 = vmul.f32 %v6437, 1.442695
    %v6444 = vpow.pop %v6443
    %v6445 = vmul.f32 %v6438, 1.442695
    %v6446 = vpow.pop %v6445
    %v6447 = vadd.f32 %v6440, 1.0
    %v6448 = vadd.f32 %v6442, 1.0
    %v6449 = vadd.f32 %v6444, 1.0
    %v6450 = vadd.f32 %v6446, 1.0
    %v6451 = vrcp.pop %v6447
    %v6452 = vmul.f32 1.0, %v6451
    %v6453 = vrcp.pop %v6448
    %v6454 = vmul.f32 1.0, %v6453
    %v6455 = vrcp.pop %v6449
    %v6456 = vmul.f32 1.0, %v6455
    %v6457 = vrcp.pop %v6450
    %v6458 = vmul.f32 1.0, %v6457
    %v6459 = vmul.f32 %v6424, %v6315
    %v6460 = vmul.f32 %v6426, %v6317
    %v6461 = vmul.f32 %v6428, %v6397
    %v6462 = vmul.f32 %v6430, %v6399
    %v6463 = vadd.f32 %v3537, %v6459
    %v6464 = vadd.f32 %v3538, %v6460
    %v6465 = vadd.f32 %v3539, %v6461
    %v6466 = vadd.f32 %v3540, %v6462
    %v6467 = vtanh.pop %v6463
    %v6468 = vtanh.pop %v6464
    %v6469 = vtanh.pop %v6465
    %v6470 = vtanh.pop %v6466
    %v6471 = vsub.f32 1.0, %v6452
    %v6472 = vsub.f32 1.0, %v6454
    %v6473 = vsub.f32 1.0, %v6456
    %v6474 = vsub.f32 1.0, %v6458
    %v6475 = vmul.f32 %v6471, %v6467
    %v6476 = vmul.f32 %v6472, %v6468
    %v6477 = vmul.f32 %v6473, %v6469
    %v6478 = vmul.f32 %v6474, %v6470
    %v6479 = vmul.f32 %v6452, %v3521
    %v6480 = vmul.f32 %v6454, %v3522
    %v6481 = vmul.f32 %v6456, %v3523
    %v6482 = vmul.f32 %v6458, %v3524
    %v6483 = vadd.f32 %v6475, %v6479
    %v6484 = vadd.f32 %v6476, %v6480
    %v6485 = vadd.f32 %v6477, %v6481
    %v6486 = vadd.f32 %v6478, %v6482
    %s6487 = sadd.s32 %s3508, %s3525
    %p6488 = scmp.lt.s32.totalorder %s6487, 8
    %s6489 = scalar_select %p6488, 1, 0
    %v6490 = vstv %s6489
    %vm6491 = vcmp.eq.s32.totalorder %v6490, 1
    %v6492 = vsel %vm6491, %v6483, %v3521
    %v6493 = vsel %vm6491, %v6484, %v3522
    %v6494 = vsel %vm6491, %v6485, %v3523
    %v6495 = vsel %vm6491, %v6486, %v3524
  $region54: #{wav2vec_gru_forward.1} parent=0 // loop_footer
    %s3520 = sadd.s32 1, %s3516
  $region55: #{wav2vec_gru_forward.1} parent=0 // loop_footer_branch
    %3515 = sbr.rel target = $region51
  $region56: #{wav2vec_gru_forward.1} parent=0 // loop_exit
    _
  %6496 = vst [vmem:[#allocation3] sm:$0xff] %v3521
  %6497 = vst [vmem:[#allocation3 + $0x8] sm:$0xff] %v3522
  %6498 = vst [vmem:[#allocation3 + $0x10] sm:$0xff] %v3523
  %6499 = vst [vmem:[#allocation3 + $0x18] sm:$0xff] %v3524
  // Predicated region
  $region57: #{wav2vec_gru_forward.1} parent=0 // pred_check
    %p6500 = pneg %p63
  $region58: #{wav2vec_gru_forward.1} parent=0 // pred_check_branch
    %6502 = sbr.rel (%p6500) target = $region60
  $region59: #{wav2vec_gru_forward.1} parent=0 // pred_region
    %v6503 = vld [vmem:[%s5] sm:$0xff]
    %v6504 = vld [vmem:[%s5 + $0x8] sm:$0xff]
    %v6505 = vld [vmem:[%s5 + $0x10] sm:$0xff]
    %v6506 = vld [vmem:[%s5 + $0x18] sm:$0xff]
    %v6507 = vld [vmem:[%s5 + $0x20] sm:$0xff]
    %v6508 = vld [vmem:[%s5 + $0x28] sm:$0xff]
    %v6509 = vld [vmem:[%s5 + $0x30] sm:$0xff]
    %v6510 = vld [vmem:[%s5 + $0x38] sm:$0xff]
    %v6511 = vld [vmem:[%s5 + $0x40] sm:$0xff]
    %v6512 = vld [vmem:[%s5 + $0x48] sm:$0xff]
    %v6513 = vld [vmem:[%s5 + $0x50] sm:$0xff]
    %v6514 = vld [vmem:[%s5 + $0x58] sm:$0xff]
    %v6515 = vld [vmem:[%s5 + $0x60] sm:$0xff]
    %v6516 = vld [vmem:[%s5 + $0x68] sm:$0xff]
    %v6517 = vld [vmem:[%s5 + $0x70] sm:$0xff]
    %v6518 = vld [vmem:[%s5 + $0x78] sm:$0xff]
    %v6519 = vld [vmem:[%s5 + $0x80] sm:$0xff]
    %v6520 = vld [vmem:[%s5 + $0x88] sm:$0xff]
    %v6521 = vld [vmem:[%s5 + $0x90] sm:$0xff]
    %v6522 = vld [vmem:[%s5 + $0x98] sm:$0xff]
    %v6523 = vld [vmem:[%s5 + $0xa0] sm:$0xff]
    %v6524 = vld [vmem:[%s5 + $0xa8] sm:$0xff]
    %v6525 = vld [vmem:[%s5 + $0xb0] sm:$0xff]
    %v6526 = vld [vmem:[%s5 + $0xb8] sm:$0xff]
    %v6527 = vld [vmem:[%s5 + $0xc0] sm:$0xff]
    %v6528 = vld [vmem:[%s5 + $0xc8] sm:$0xff]
    %v6529 = vld [vmem:[%s5 + $0xd0] sm:$0xff]
    %v6530 = vld [vmem:[%s5 + $0xd8] sm:$0xff]
    %v6531 = vld [vmem:[%s5 + $0xe0] sm:$0xff]
    %v6532 = vld [vmem:[%s5 + $0xe8] sm:$0xff]
    %v6533 = vld [vmem:[%s5 + $0xf0] sm:$0xff]
    %v6534 = vld [vmem:[%s5 + $0xf8] sm:$0xff]
    %v6535 = vld [vmem:[%s5 + $0x100] sm:$0xff]
    %v6536 = vld [vmem:[%s5 + $0x108] sm:$0xff]
    %v6537 = vld [vmem:[%s5 + $0x110] sm:$0xff]
    %v6538 = vld [vmem:[%s5 + $0x118] sm:$0xff]
    %v6539 = vld [vmem:[%s5 + $0x120] sm:$0xff]
    %v6540 = vld [vmem:[%s5 + $0x128] sm:$0xff]
    %v6541 = vld [vmem:[%s5 + $0x130] sm:$0xff]
    %v6542 = vld [vmem:[%s5 + $0x138] sm:$0xff]
    %v6543 = vld [vmem:[%s5 + $0x140] sm:$0xff]
    %v6544 = vld [vmem:[%s5 + $0x148] sm:$0xff]
    %v6545 = vld [vmem:[%s5 + $0x150] sm:$0xff]
    %v6546 = vld [vmem:[%s5 + $0x158] sm:$0xff]
    %v6547 = vld [vmem:[%s5 + $0x160] sm:$0xff]
    %v6548 = vld [vmem:[%s5 + $0x168] sm:$0xff]
    %v6549 = vld [vmem:[%s5 + $0x170] sm:$0xff]
    %v6550 = vld [vmem:[%s5 + $0x178] sm:$0xff]
    %v6551 = vld [vmem:[%s5 + $0x180] sm:$0xff]
    %v6552 = vld [vmem:[%s5 + $0x188] sm:$0xff]
    %v6553 = vld [vmem:[%s5 + $0x190] sm:$0xff]
    %v6554 = vld [vmem:[%s5 + $0x198] sm:$0xff]
    %v6555 = vld [vmem:[%s5 + $0x1a0] sm:$0xff]
    %v6556 = vld [vmem:[%s5 + $0x1a8] sm:$0xff]
    %v6557 = vld [vmem:[%s5 + $0x1b0] sm:$0xff]
    %v6558 = vld [vmem:[%s5 + $0x1b8] sm:$0xff]
    %v6559 = vld [vmem:[%s5 + $0x1c0] sm:$0xff]
    %v6560 = vld [vmem:[%s5 + $0x1c8] sm:$0xff]
    %v6561 = vld [vmem:[%s5 + $0x1d0] sm:$0xff]
    %v6562 = vld [vmem:[%s5 + $0x1d8] sm:$0xff]
    %v6563 = vld [vmem:[%s5 + $0x1e0] sm:$0xff]
    %v6564 = vld [vmem:[%s5 + $0x1e8] sm:$0xff]
    %v6565 = vld [vmem:[%s5 + $0x1f0] sm:$0xff]
    %v6566 = vld [vmem:[%s5 + $0x1f8] sm:$0xff]
    %v6567 = vld [vmem:[%s5 + $0x200] sm:$0xff]
    %v6568 = vld [vmem:[%s5 + $0x208] sm:$0xff]
    %v6569 = vld [vmem:[%s5 + $0x210] sm:$0xff]
    %v6570 = vld [vmem:[%s5 + $0x218] sm:$0xff]
    %v6571 = vld [vmem:[%s5 + $0x220] sm:$0xff]
    %v6572 = vld [vmem:[%s5 + $0x228] sm:$0xff]
    %v6573 = vld [vmem:[%s5 + $0x230] sm:$0xff]
    %v6574 = vld [vmem:[%s5 + $0x238] sm:$0xff]
    %v6575 = vld [vmem:[%s5 + $0x240] sm:$0xff]
    %v6576 = vld [vmem:[%s5 + $0x248] sm:$0xff]
    %v6577 = vld [vmem:[%s5 + $0x250] sm:$0xff]
    %v6578 = vld [vmem:[%s5 + $0x258] sm:$0xff]
    %v6579 = vld [vmem:[%s5 + $0x260] sm:$0xff]
    %v6580 = vld [vmem:[%s5 + $0x268] sm:$0xff]
    %v6581 = vld [vmem:[%s5 + $0x270] sm:$0xff]
    %v6582 = vld [vmem:[%s5 + $0x278] sm:$0xff]
    %v6583 = vld [vmem:[%s5 + $0x280] sm:$0xff]
    %v6584 = vld [vmem:[%s5 + $0x288] sm:$0xff]
    %v6585 = vld [vmem:[%s5 + $0x290] sm:$0xff]
    %v6586 = vld [vmem:[%s5 + $0x298] sm:$0xff]
    %v6587 = vld [vmem:[%s5 + $0x2a0] sm:$0xff]
    %v6588 = vld [vmem:[%s5 + $0x2a8] sm:$0xff]
    %v6589 = vld [vmem:[%s5 + $0x2b0] sm:$0xff]
    %v6590 = vld [vmem:[%s5 + $0x2b8] sm:$0xff]
    %v6591 = vld [vmem:[%s5 + $0x2c0] sm:$0xff]
    %v6592 = vld [vmem:[%s5 + $0x2c8] sm:$0xff]
    %v6593 = vld [vmem:[%s5 + $0x2d0] sm:$0xff]
    %v6594 = vld [vmem:[%s5 + $0x2d8] sm:$0xff]
    %v6595 = vld [vmem:[%s5 + $0x2e0] sm:$0xff]
    %v6596 = vld [vmem:[%s5 + $0x2e8] sm:$0xff]
    %v6597 = vld [vmem:[%s5 + $0x2f0] sm:$0xff]
    %v6598 = vld [vmem:[%s5 + $0x2f8] sm:$0xff]
    %v6599 = vld [vmem:[%s5 + $0x300] sm:$0xff]
    %v6600 = vld [vmem:[%s5 + $0x308] sm:$0xff]
    %v6601 = vld [vmem:[%s5 + $0x310] sm:$0xff]
    %v6602 = vld [vmem:[%s5 + $0x318] sm:$0xff]
    %v6603 = vld [vmem:[%s5 + $0x320] sm:$0xff]
    %v6604 = vld [vmem:[%s5 + $0x328] sm:$0xff]
    %v6605 = vld [vmem:[%s5 + $0x330] sm:$0xff]
    %v6606 = vld [vmem:[%s5 + $0x338] sm:$0xff]
    %v6607 = vld [vmem:[%s5 + $0x340] sm:$0xff]
    %v6608 = vld [vmem:[%s5 + $0x348] sm:$0xff]
    %v6609 = vld [vmem:[%s5 + $0x350] sm:$0xff]
    %v6610 = vld [vmem:[%s5 + $0x358] sm:$0xff]
    %v6611 = vld [vmem:[%s5 + $0x360] sm:$0xff]
    %v6612 = vld [vmem:[%s5 + $0x368] sm:$0xff]
    %v6613 = vld [vmem:[%s5 + $0x370] sm:$0xff]
    %v6614 = vld [vmem:[%s5 + $0x378] sm:$0xff]
    %v6615 = vld [vmem:[%s5 + $0x380] sm:$0xff]
    %v6616 = vld [vmem:[%s5 + $0x388] sm:$0xff]
    %v6617 = vld [vmem:[%s5 + $0x390] sm:$0xff]
    %v6618 = vld [vmem:[%s5 + $0x398] sm:$0xff]
    %v6619 = vld [vmem:[%s5 + $0x3a0] sm:$0xff]
    %v6620 = vld [vmem:[%s5 + $0x3a8] sm:$0xff]
    %v6621 = vld [vmem:[%s5 + $0x3b0] sm:$0xff]
    %v6622 = vld [vmem:[%s5 + $0x3b8] sm:$0xff]
    %v6623 = vld [vmem:[%s5 + $0x3c0] sm:$0xff]
    %v6624 = vld [vmem:[%s5 + $0x3c8] sm:$0xff]
    %v6625 = vld [vmem:[%s5 + $0x3d0] sm:$0xff]
    %v6626 = vld [vmem:[%s5 + $0x3d8] sm:$0xff]
    %v6627 = vld [vmem:[%s5 + $0x3e0] sm:$0xff]
    %v6628 = vld [vmem:[%s5 + $0x3e8] sm:$0xff]
    %v6629 = vld [vmem:[%s5 + $0x3f0] sm:$0xff]
    %v6630 = vld [vmem:[%s5 + $0x3f8] sm:$0xff]
    %v6631 = vld [vmem:[%s6] sm:$0x3]
    %v6633 = vlaneseq
    %v6634 = vshrl.u32 %v6633, 7
    %v6635 = vsub.s32 0, %v6634
    %v6636 = vrot.slane %v6631, %v6635
    %v6637 = vlaneseq
    %v6638 = vshrl.u32 %v6637, 7
    %v6639 = vsub.s32 1, %v6638
    %v6640 = vrot.slane %v6631, %v6639
    %6643 = vmatprep.subr.mxu0 %v6504
    %6644 = vmatpush1.msra.mxu0 %v6503
    %6645 = vmatprep.subr.mxu0 %v6506
    %6646 = vmatpush1.msra.mxu0 %v6505
    %6647 = vmatprep.subr.mxu0 %v6508
    %6648 = vmatpush1.msra.mxu0 %v6507
    %6649 = vmatprep.subr.mxu0 %v6510
    %6650 = vmatpush1.msra.mxu0 %v6509
    %6651 = vmatprep.subr.mxu0 %v6512
    %6652 = vmatpush1.msra.mxu0 %v6511
    %6653 = vmatprep.subr.mxu0 %v6514
    %6654 = vmatpush1.msra.mxu0 %v6513
    %6655 = vmatprep.subr.mxu0 %v6516
    %6656 = vmatpush1.msra.mxu0 %v6515
    %6657 = vmatprep.subr.mxu0 %v6518
    %6658 = vmatpush1.msra.mxu0 %v6517
    %6659 = vmatprep.subr.mxu0 %v6520
    %6660 = vmatpush1.msra.mxu0 %v6519
    %6661 = vmatprep.subr.mxu0 %v6522
    %6662 = vmatpush1.msra.mxu0 %v6521
    %6663 = vmatprep.subr.mxu0 %v6524
    %6664 = vmatpush1.msra.mxu0 %v6523
    %6665 = vmatprep.subr.mxu0 %v6526
    %6666 = vmatpush1.msra.mxu0 %v6525
    %6667 = vmatprep.subr.mxu0 %v6528
    %6668 = vmatpush1.msra.mxu0 %v6527
    %6669 = vmatprep.subr.mxu0 %v6530
    %6670 = vmatpush1.msra.mxu0 %v6529
    %6671 = vmatprep.subr.mxu0 %v6532
    %6672 = vmatpush1.msra.mxu0 %v6531
    %6673 = vmatprep.subr.mxu0 %v6534
    %6674 = vmatpush1.msra.mxu0 %v6533
    %6675 = vmatprep.subr.mxu0 %v6536
    %6676 = vmatpush1.msra.mxu0 %v6535
    %6677 = vmatprep.subr.mxu0 %v6538
    %6678 = vmatpush1.msra.mxu0 %v6537
    %6679 = vmatprep.subr.mxu0 %v6540
    %6680 = vmatpush1.msra.mxu0 %v6539
    %6681 = vmatprep.subr.mxu0 %v6542
    %6682 = vmatpush1.msra.mxu0 %v6541
    %6683 = vmatprep.subr.mxu0 %v6544
    %6684 = vmatpush1.msra.mxu0 %v6543
    %6685 = vmatprep.subr.mxu0 %v6546
    %6686 = vmatpush1.msra.mxu0 %v6545
    %6687 = vmatprep.subr.mxu0 %v6548
    %6688 = vmatpush1.msra.mxu0 %v6547
    %6689 = vmatprep.subr.mxu0 %v6550
    %6690 = vmatpush1.msra.mxu0 %v6549
    %6691 = vmatprep.subr.mxu0 %v6552
    %6692 = vmatpush1.msra.mxu0 %v6551
    %6693 = vmatprep.subr.mxu0 %v6554
    %6694 = vmatpush1.msra.mxu0 %v6553
    %6695 = vmatprep.subr.mxu0 %v6556
    %6696 = vmatpush1.msra.mxu0 %v6555
    %6697 = vmatprep.subr.mxu0 %v6558
    %6698 = vmatpush1.msra.mxu0 %v6557
    %6699 = vmatprep.subr.mxu0 %v6560
    %6700 = vmatpush1.msra.mxu0 %v6559
    %6701 = vmatprep.subr.mxu0 %v6562
    %6702 = vmatpush1.msra.mxu0 %v6561
    %6703 = vmatprep.subr.mxu0 %v6564
    %6704 = vmatpush1.msra.mxu0 %v6563
    %6705 = vmatprep.subr.mxu0 %v6566
    %6706 = vmatpush1.msra.mxu0 %v6565
    %6707 = vmatprep.mubr.f32.mxu0 %v3522
    %6708 = vmatmul.mubr.f32.gmra.mrb[0].mxu0 %v3521
    %v6709 = vpop.f32.mrb[0].mxu0
    %v6710 = vadd.f32 %v6636, %v6709
    %v6711 = vpop.f32.mrb[0].mxu0
    %v6712 = vadd.f32 %v6640, %v6711
    %6713 = vdwg.mxu0
    %6714 = vmatprep.subr.mxu0 %v6568
    %6715 = vmatpush1.msra.mxu0 %v6567
    %6716 = vmatprep.subr.mxu0 %v6570
    %6717 = vmatpush1.msra.mxu0 %v6569
    %6718 = vmatprep.subr.mxu0 %v6572
    %6719 = vmatpush1.msra.mxu0 %v6571
    %6720 = vmatprep.subr.mxu0 %v6574
    %6721 = vmatpush1.msra.mxu0 %v6573
    %6722 = vmatprep.subr.mxu0 %v6576
    %6723 = vmatpush1.msra.mxu0 %v6575
    %6724 = vmatprep.subr.mxu0 %v6578
    %6725 = vmatpush1.msra.mxu0 %v6577
    %6726 = vmatprep.subr.mxu0 %v6580
    %6727 = vmatpush1.msra.mxu0 %v6579
    %6728 = vmatprep.subr.mxu0 %v6582
    %6729 = vmatpush1.msra.mxu0 %v6581
    %6730 = vmatprep.subr.mxu0 %v6584
    %6731 = vmatpush1.msra.mxu0 %v6583
    %6732 = vmatprep.subr.mxu0 %v6586
    %6733 = vmatpush1.msra.mxu0 %v6585
    %6734 = vmatprep.subr.mxu0 %v6588
    %6735 = vmatpush1.msra.mxu0 %v6587
    %6736 = vmatprep.subr.mxu0 %v6590
    %6737 = vmatpush1.msra.mxu0 %v6589
    %6738 = vmatprep.subr.mxu0 %v6592
    %6739 = vmatpush1.msra.mxu0 %v6591
    %6740 = vmatprep.subr.mxu0 %v6594
    %6741 = vmatpush1.msra.mxu0 %v6593
    %6742 = vmatprep.subr.mxu0 %v6596
    %6743 = vmatpush1.msra.mxu0 %v6595
    %6744 = vmatprep.subr.mxu0 %v6598
    %6745 = vmatpush1.msra.mxu0 %v6597
    %6746 = vmatprep.subr.mxu0 %v6600
    %6747 = vmatpush1.msra.mxu0 %v6599
    %6748 = vmatprep.subr.mxu0 %v6602
    %6749 = vmatpush1.msra.mxu0 %v6601
    %6750 = vmatprep.subr.mxu0 %v6604
    %6751 = vmatpush1.msra.mxu0 %v6603
    %6752 = vmatprep.subr.mxu0 %v6606
    %6753 = vmatpush1.msra.mxu0 %v6605
    %6754 = vmatprep.subr.mxu0 %v6608
    %6755 = vmatpush1.msra.mxu0 %v6607
    %6756 = vmatprep.subr.mxu0 %v6610
    %6757 = vmatpush1.msra.mxu0 %v6609
    %6758 = vmatprep.subr.mxu0 %v6612
    %6759 = vmatpush1.msra.mxu0 %v6611
    %6760 = vmatprep.subr.mxu0 %v6614
    %6761 = vmatpush1.msra.mxu0 %v6613
    %6762 = vmatprep.subr.mxu0 %v6616
    %6763 = vmatpush1.msra.mxu0 %v6615
    %6764 = vmatprep.subr.mxu0 %v6618
    %6765 = vmatpush1.msra.mxu0 %v6617
    %6766 = vmatprep.subr.mxu0 %v6620
    %6767 = vmatpush1.msra.mxu0 %v6619
    %6768 = vmatprep.subr.mxu0 %v6622
    %6769 = vmatpush1.msra.mxu0 %v6621
    %6770 = vmatprep.subr.mxu0 %v6624
    %6771 = vmatpush1.msra.mxu0 %v6623
    %6772 = vmatprep.subr.mxu0 %v6626
    %6773 = vmatpush1.msra.mxu0 %v6625
    %6774 = vmatprep.subr.mxu0 %v6628
    %6775 = vmatpush1.msra.mxu0 %v6627
    %6776 = vmatprep.subr.mxu0 %v6630
    %6777 = vmatpush1.msra.mxu0 %v6629
    %6778 = vmatprep.mubr.f32.mxu0 %v3524
    %6779 = vmatmul.mubr.f32.gmra.mrb[0].mxu0 %v3523
    %v6780 = vpop.f32.mrb[0].mxu0
    %v6781 = vadd.f32 %v6710, %v6780
    %v6782 = vpop.f32.mrb[0].mxu0
    %v6783 = vadd.f32 %v6712, %v6782
    %6784 = vdwg.mxu0
    %v6785 = vmax.f32 %v6781, 0.0
    %v6786 = vmax.f32 %v6783, 0.0
    %v6787 = vld [vmem:[%s7] sm:$0xff]
    %v6788 = vld [vmem:[%s7 + $0x8] sm:$0xff]
    %v6789 = vld [vmem:[%s7 + $0x10] sm:$0xff]
    %v6790 = vld [vmem:[%s7 + $0x18] sm:$0xff]
    %v6791 = vld [vmem:[%s7 + $0x20] sm:$0xff]
    %v6792 = vld [vmem:[%s7 + $0x28] sm:$0xff]
    %v6793 = vld [vmem:[%s7 + $0x30] sm:$0xff]
    %v6794 = vld [vmem:[%s7 + $0x38] sm:$0xff]
    %v6795 = vld [vmem:[%s7 + $0x40] sm:$0xff]
    %v6796 = vld [vmem:[%s7 + $0x48] sm:$0xff]
    %v6797 = vld [vmem:[%s7 + $0x50] sm:$0xff]
    %v6798 = vld [vmem:[%s7 + $0x58] sm:$0xff]
    %v6799 = vld [vmem:[%s7 + $0x60] sm:$0xff]
    %v6800 = vld [vmem:[%s7 + $0x68] sm:$0xff]
    %v6801 = vld [vmem:[%s7 + $0x70] sm:$0xff]
    %v6802 = vld [vmem:[%s7 + $0x78] sm:$0xff]
    %v6803 = vld [vmem:[%s7 + $0x80] sm:$0xff]
    %v6804 = vld [vmem:[%s7 + $0x88] sm:$0xff]
    %v6805 = vld [vmem:[%s7 + $0x90] sm:$0xff]
    %v6806 = vld [vmem:[%s7 + $0x98] sm:$0xff]
    %v6807 = vld [vmem:[%s7 + $0xa0] sm:$0xff]
    %v6808 = vld [vmem:[%s7 + $0xa8] sm:$0xff]
    %v6809 = vld [vmem:[%s7 + $0xb0] sm:$0xff]
    %v6810 = vld [vmem:[%s7 + $0xb8] sm:$0xff]
    %v6811 = vld [vmem:[%s7 + $0xc0] sm:$0xff]
    %v6812 = vld [vmem:[%s7 + $0xc8] sm:$0xff]
    %v6813 = vld [vmem:[%s7 + $0xd0] sm:$0xff]
    %v6814 = vld [vmem:[%s7 + $0xd8] sm:$0xff]
    %v6815 = vld [vmem:[%s7 + $0xe0] sm:$0xff]
    %v6816 = vld [vmem:[%s7 + $0xe8] sm:$0xff]
    %v6817 = vld [vmem:[%s7 + $0xf0] sm:$0xff]
    %v6818 = vld [vmem:[%s7 + $0xf8] sm:$0xff]
    %v6819 = vld [vmem:[%s8] sm:$0x1]
    %v6821 = vlaneseq
    %v6822 = vshrl.u32 %v6821, 7
    %v6823 = vsub.s32 0, %v6822
    %v6824 = vrot.slane %v6819, %v6823
    %6826 = vmatprep.subr.mxu0 0.0
    %6827 = vmatpush1.msra.mxu0 %v6787
    %6828 = vmatprep.subr.mxu0 0.0
    %6829 = vmatpush1.msra.mxu0 %v6788
    %6830 = vmatprep.subr.mxu0 0.0
    %6831 = vmatpush1.msra.mxu0 %v6789
    %6832 = vmatprep.subr.mxu0 0.0
    %6833 = vmatpush1.msra.mxu0 %v6790
    %6834 = vmatprep.subr.mxu0 0.0
    %6835 = vmatpush1.msra.mxu0 %v6791
    %6836 = vmatprep.subr.mxu0 0.0
    %6837 = vmatpush1.msra.mxu0 %v6792
    %6838 = vmatprep.subr.mxu0 0.0
    %6839 = vmatpush1.msra.mxu0 %v6793
    %6840 = vmatprep.subr.mxu0 0.0
    %6841 = vmatpush1.msra.mxu0 %v6794
    %6842 = vmatprep.subr.mxu0 0.0
    %6843 = vmatpush1.msra.mxu0 %v6795
    %6844 = vmatprep.subr.mxu0 0.0
    %6845 = vmatpush1.msra.mxu0 %v6796
    %6846 = vmatprep.subr.mxu0 0.0
    %6847 = vmatpush1.msra.mxu0 %v6797
    %6848 = vmatprep.subr.mxu0 0.0
    %6849 = vmatpush1.msra.mxu0 %v6798
    %6850 = vmatprep.subr.mxu0 0.0
    %6851 = vmatpush1.msra.mxu0 %v6799
    %6852 = vmatprep.subr.mxu0 0.0
    %6853 = vmatpush1.msra.mxu0 %v6800
    %6854 = vmatprep.subr.mxu0 0.0
    %6855 = vmatpush1.msra.mxu0 %v6801
    %6856 = vmatprep.subr.mxu0 0.0
    %6857 = vmatpush1.msra.mxu0 %v6802
    %6858 = vmatprep.subr.mxu0 0.0
    %6859 = vmatpush1.msra.mxu0 %v6803
    %6860 = vmatprep.subr.mxu0 0.0
    %6861 = vmatpush1.msra.mxu0 %v6804
    %6862 = vmatprep.subr.mxu0 0.0
    %6863 = vmatpush1.msra.mxu0 %v6805
    %6864 = vmatprep.subr.mxu0 0.0
    %6865 = vmatpush1.msra.mxu0 %v6806
    %6866 = vmatprep.subr.mxu0 0.0
    %6867 = vmatpush1.msra.mxu0 %v6807
    %6868 = vmatprep.subr.mxu0 0.0
    %6869 = vmatpush1.msra.mxu0 %v6808
    %6870 = vmatprep.subr.mxu0 0.0
    %6871 = vmatpush1.msra.mxu0 %v6809
    %6872 = vmatprep.subr.mxu0 0.0
    %6873 = vmatpush1.msra.mxu0 %v6810
    %6874 = vmatprep.subr.mxu0 0.0
    %6875 = vmatpush1.msra.mxu0 %v6811
    %6876 = vmatprep.subr.mxu0 0.0
    %6877 = vmatpush1.msra.mxu0 %v6812
    %6878 = vmatprep.subr.mxu0 0.0
    %6879 = vmatpush1.msra.mxu0 %v6813
    %6880 = vmatprep.subr.mxu0 0.0
    %6881 = vmatpush1.msra.mxu0 %v6814
    %6882 = vmatprep.subr.mxu0 0.0
    %6883 = vmatpush1.msra.mxu0 %v6815
    %6884 = vmatprep.subr.mxu0 0.0
    %6885 = vmatpush1.msra.mxu0 %v6816
    %6886 = vmatprep.subr.mxu0 0.0
    %6887 = vmatpush1.msra.mxu0 %v6817
    %6888 = vmatprep.subr.mxu0 0.0
    %6889 = vmatpush1.msra.mxu0 %v6818
    %6890 = vmatprep.mubr.f32.mxu0 %v6786
    %6891 = vmatmul.mubr.f32.gmra.mrb[0].mxu0 %v6785
    %v6892 = vpop.f32.mrb[0].mxu0
    %v6893 = vadd.f32 %v6824, %v6892
    %v6894 = vpop.f32.mrb[0].mxu0
    %6895 = vdwg.mxu0
    %v6896 = vmax.f32 %v6893, 0.0
    %v6897 = vld [vmem:[%s9] sm:$0xff]
    %v6898 = vld [vmem:[%s9 + $0x8] sm:$0xff]
    %v6899 = vld [vmem:[%s9 + $0x10] sm:$0xff]
    %v6900 = vld [vmem:[%s9 + $0x18] sm:$0xff]
    %v6901 = vld [vmem:[%s9 + $0x20] sm:$0xff]
    %v6902 = vld [vmem:[%s9 + $0x28] sm:$0xff]
    %v6903 = vld [vmem:[%s9 + $0x30] sm:$0xff]
    %v6904 = vld [vmem:[%s9 + $0x38] sm:$0xff]
    %v6905 = vld [vmem:[%s9 + $0x40] sm:$0xff]
    %v6906 = vld [vmem:[%s9 + $0x48] sm:$0xff]
    %v6907 = vld [vmem:[%s9 + $0x50] sm:$0xff]
    %v6908 = vld [vmem:[%s9 + $0x58] sm:$0xff]
    %v6909 = vld [vmem:[%s9 + $0x60] sm:$0xff]
    %v6910 = vld [vmem:[%s9 + $0x68] sm:$0xff]
    %v6911 = vld [vmem:[%s9 + $0x70] sm:$0xff]
    %v6912 = vld [vmem:[%s9 + $0x78] sm:$0xff]
    %v6913 = vld [vmem:[%s10] sm:$0x1]
    %v6915 = vlaneseq
    %v6916 = vshrl.u32 %v6915, 7
    %v6917 = vsub.s32 0, %v6916
    %v6918 = vrot.slane %v6913, %v6917
    %6920 = vmatprep.subr.mxu0 0.0
    %6921 = vmatpush1.msra.mxu0 %v6897
    %6922 = vmatprep.subr.mxu0 0.0
    %6923 = vmatpush1.msra.mxu0 %v6898
    %6924 = vmatprep.subr.mxu0 0.0
    %6925 = vmatpush1.msra.mxu0 %v6899
    %6926 = vmatprep.subr.mxu0 0.0
    %6927 = vmatpush1.msra.mxu0 %v6900
    %6928 = vmatprep.subr.mxu0 0.0
    %6929 = vmatpush1.msra.mxu0 %v6901
    %6930 = vmatprep.subr.mxu0 0.0
    %6931 = vmatpush1.msra.mxu0 %v6902
    %6932 = vmatprep.subr.mxu0 0.0
    %6933 = vmatpush1.msra.mxu0 %v6903
    %6934 = vmatprep.subr.mxu0 0.0
    %6935 = vmatpush1.msra.mxu0 %v6904
    %6936 = vmatprep.subr.mxu0 0.0
    %6937 = vmatpush1.msra.mxu0 %v6905
    %6938 = vmatprep.subr.mxu0 0.0
    %6939 = vmatpush1.msra.mxu0 %v6906
    %6940 = vmatprep.subr.mxu0 0.0
    %6941 = vmatpush1.msra.mxu0 %v6907
    %6942 = vmatprep.subr.mxu0 0.0
    %6943 = vmatpush1.msra.mxu0 %v6908
    %6944 = vmatprep.subr.mxu0 0.0
    %6945 = vmatpush1.msra.mxu0 %v6909
    %6946 = vmatprep.subr.mxu0 0.0
    %6947 = vmatpush1.msra.mxu0 %v6910
    %6948 = vmatprep.subr.mxu0 0.0
    %6949 = vmatpush1.msra.mxu0 %v6911
    %6950 = vmatprep.subr.mxu0 0.0
    %6951 = vmatpush1.msra.mxu0 %v6912
    %6952 = vmatprep.subr.mxu0 0.0
    %6953 = vmatpush1.msra.mxu0 0.0
    %6954 = vmatprep.subr.mxu0 0.0
    %6955 = vmatpush1.msra.mxu0 0.0
    %6956 = vmatprep.subr.mxu0 0.0
    %6957 = vmatpush1.msra.mxu0 0.0
    %6958 = vmatprep.subr.mxu0 0.0
    %6959 = vmatpush1.msra.mxu0 0.0
    %6960 = vmatprep.subr.mxu0 0.0
    %6961 = vmatpush1.msra.mxu0 0.0
    %6962 = vmatprep.subr.mxu0 0.0
    %6963 = vmatpush1.msra.mxu0 0.0
    %6964 = vmatprep.subr.mxu0 0.0
    %6965 = vmatpush1.msra.mxu0 0.0
    %6966 = vmatprep.subr.mxu0 0.0
    %6967 = vmatpush1.msra.mxu0 0.0
    %6968 = vmatprep.subr.mxu0 0.0
    %6969 = vmatpush1.msra.mxu0 0.0
    %6970 = vmatprep.subr.mxu0 0.0
    %6971 = vmatpush1.msra.mxu0 0.0
    %6972 = vmatprep.subr.mxu0 0.0
    %6973 = vmatpush1.msra.mxu0 0.0
    %6974 = vmatprep.subr.mxu0 0.0
    %6975 = vmatpush1.msra.mxu0 0.0
    %6976 = vmatprep.subr.mxu0 0.0
    %6977 = vmatpush1.msra.mxu0 0.0
    %6978 = vmatprep.subr.mxu0 0.0
    %6979 = vmatpush1.msra.mxu0 0.0
    %6980 = vmatprep.subr.mxu0 0.0
    %6981 = vmatpush1.msra.mxu0 0.0
    %6982 = vmatprep.subr.mxu0 0.0
    %6983 = vmatpush1.msra.mxu0 0.0
    %6984 = vmatprep.mubr.f32.mxu0 0.0
    %6985 = vmatmul.mubr.f32.gmra.mrb[0].mxu0 %v6896
    %v6986 = vpop.f32.mrb[0].mxu0
    %v6987 = vadd.f32 %v6918, %v6986
    %v6988 = vpop.f32.mrb[0].mxu0
    %6989 = vdwg.mxu0
    %vm6990 = vcmask 15360
    %6991 = vst.msk [vmem:[%s11] sm:$0xff] %vm6990, %v6987
  $region60: #{wav2vec_gru_forward.1} parent=0 // pred_fallthru
    _
  // Predicated region
  $region61: #{wav2vec_gru_forward.1} parent=0 // pred_check
    _
  $region62: #{wav2vec_gru_forward.1} parent=0 // pred_check_branch
    %6993 = sbr.rel (0) target = $region64
  $region63: #{wav2vec_gru_forward.1} parent=0 // pred_region
    _
  $region64: #{wav2vec_gru_forward.1} parent=0 // pred_fallthru
    _
  // Predicated region
  $region65: #{wav2vec_gru_forward.1} parent=0 // pred_check
    _
  $region66: #{wav2vec_gru_forward.1} parent=0 // pred_check_branch
    %6995 = sbr.rel (0) target = $region68
  $region67: #{wav2vec_gru_forward.1} parent=0 // pred_region
    _
  $region68: #{wav2vec_gru_forward.1} parent=0 // pred_fallthru
    _

</llo_original>
